<compile_context>
chip_gen: v6e
topology: v6e:2x2x1
jax: 0.10.0
libtpu: 0.0.40
codegen_flags: <defaults>
</compile_context>

<pallas_src>
import functools

import jax
import jax.numpy as jnp
from jax.experimental import pallas as pl
from jax.experimental.pallas import tpu as pltpu


def _interp_matrix(n_in, n_out):
    """1-D linear interpolation matrix (n_out, n_in), align_corners=True."""
    if n_in == 1:
        return jnp.ones((n_out, 1), jnp.float32)
    src = jnp.arange(n_out, dtype=jnp.float32) * ((n_in - 1) / max(n_out - 1, 1))
    lo = jnp.clip(jnp.floor(src), 0, n_in - 2)
    frac = (src - lo)[:, None]
    lo = lo[:, None]
    cols = jnp.arange(n_in, dtype=jnp.float32)[None, :]
    a = jnp.where(cols == lo, 1.0 - frac, 0.0) + jnp.where(cols == lo + 1, frac, 0.0)
    return a.astype(jnp.float32)


def _fold_bn(w, bn, eps=1e-5):
    """Fold inference-mode BatchNorm into conv weights; return flat weights + bias."""
    gamma, beta, mean, var = bn
    scale = gamma / jnp.sqrt(var + eps)
    w_eff = (w.astype(jnp.float32) * scale[:, None, None, None]).reshape(-1)
    b_eff = (beta - mean * scale).astype(jnp.float32)
    return w_eff, b_eff


def _up_kernel(w1_ref, b1_ref, w2_ref, b2_ref, ah_ref, awt_ref,
               x1_ref, x2_ref, o_ref, xin_scr, mid_scr, *,
               C1, C2, MID, COUT, H1, W1, H2, W2, oy, ox):
    f32 = jnp.float32
    CIN = C1 + C2
    H1u, W1u = 2 * H1, 2 * W1

    # ---- Stage 1: conv1 input = zero-padded concat([x2, upsample(x1)]) in VMEM ----
    xin_scr[...] = jnp.zeros(xin_scr.shape, f32)
    for c in range(C2):
        xin_scr[c, 1:1 + H2, 1:1 + W2] = x2_ref[c].astype(f32)
    ah = ah_ref[...]        # (H1u, H1)
    awt = awt_ref[...]      # (W1, W1u)
    for c in range(C1):
        t = jnp.dot(ah, x1_ref[c].astype(f32), preferred_element_type=f32)   # (H1u, W1)
        up = jnp.dot(t, awt, preferred_element_type=f32)                     # (H1u, W1u)
        xin_scr[C2 + c, oy:oy + H1u, ox:ox + W1u] = up

    # ---- Stage 2: conv1 (3x3, BN folded) + ReLU -> zero-padded VMEM scratch ----
    mid_scr[...] = jnp.zeros(mid_scr.shape, f32)
    for co in range(MID):
        acc = jnp.zeros((H2, W2), f32) + b1_ref[co]
        for ci in range(CIN):
            for dy in range(3):
                for dx in range(3):
                    w = w1_ref[(co * CIN + ci) * 9 + dy * 3 + dx]
                    acc = acc + w * xin_scr[ci, dy:dy + H2, dx:dx + W2]
        mid_scr[co, 1:1 + H2, 1:1 + W2] = jnp.maximum(acc, 0.0)

    # ---- Stage 3: conv2 (3x3, BN folded) + ReLU -> output ----
    for co in range(COUT):
        acc = jnp.zeros((H2, W2), f32) + b2_ref[co]
        for ci in range(MID):
            for dy in range(3):
                for dx in range(3):
                    w = w2_ref[(co * MID + ci) * 9 + dy * 3 + dx]
                    acc = acc + w * mid_scr[ci, dy:dy + H2, dx:dx + W2]
        o_ref[co] = jnp.maximum(acc, 0.0).astype(o_ref.dtype)


def up_forward(x1, x2, w1, bn1, w2, bn2, eps=1e-5):
    """Forward pass of `Up(in_ch, out_ch, bilinear=True)` in NCHW."""
    B, C1, H1, W1 = x1.shape
    B2, C2, H2, W2 = x2.shape
    assert B == B2
    MID, CIN = w1.shape[0], w1.shape[1]
    COUT = w2.shape[0]
    assert CIN == C1 + C2 and w2.shape[1] == MID
    H1u, W1u = 2 * H1, 2 * W1
    diffY, diffX = H2 - H1u, W2 - W1u
    assert diffY >= 0 and diffX >= 0
    # +1 accounts for the 3x3 conv zero border; diff//2 is the F.pad offset.
    oy, ox = 1 + diffY // 2, 1 + diffX // 2

    ah = _interp_matrix(H1, H1u)          # (H1u, H1)
    awt = _interp_matrix(W1, W1u).T       # (W1, W1u)

    w1f, b1 = _fold_bn(w1, bn1, eps)
    w2f, b2 = _fold_bn(w2, bn2, eps)

    kernel = functools.partial(
        _up_kernel, C1=C1, C2=C2, MID=MID, COUT=COUT,
        H1=H1, W1=W1, H2=H2, W2=W2, oy=oy, ox=ox)

    flops = (2 * B * H2 * W2 * 9 * (CIN * MID + MID * COUT)
             + 2 * B * C1 * (H1u * W1 * H1 + H1u * W1u * W1))
    bytes_accessed = 4 * (x1.size + x2.size + B * COUT * H2 * W2)

    return pl.pallas_call(
        kernel,
        out_shape=jax.ShapeDtypeStruct((B, COUT, H2, W2), x1.dtype),
        grid_spec=pltpu.PrefetchScalarGridSpec(
            num_scalar_prefetch=0,
            grid=(B,),
            in_specs=[
                pl.BlockSpec(memory_space=pltpu.MemorySpace.SMEM),   # w1 (BN-folded, flat)
                pl.BlockSpec(memory_space=pltpu.MemorySpace.SMEM),   # b1
                pl.BlockSpec(memory_space=pltpu.MemorySpace.SMEM),   # w2 (BN-folded, flat)
                pl.BlockSpec(memory_space=pltpu.MemorySpace.SMEM),   # b2
                pl.BlockSpec((H1u, H1), lambda b: (0, 0)),           # A_h
                pl.BlockSpec((W1, W1u), lambda b: (0, 0)),           # A_w^T
                pl.BlockSpec((None, C1, H1, W1), lambda b: (b, 0, 0, 0)),   # x1
                pl.BlockSpec((None, C2, H2, W2), lambda b: (b, 0, 0, 0)),   # x2
            ],
            out_specs=pl.BlockSpec((None, COUT, H2, W2), lambda b: (b, 0, 0, 0)),
            scratch_shapes=[
                pltpu.VMEM((CIN, H2 + 2, W2 + 2), jnp.float32),   # concat, conv-padded
                pltpu.VMEM((MID, H2 + 2, W2 + 2), jnp.float32),   # conv1 output, conv-padded
            ]),
        compiler_params=pltpu.CompilerParams(
            dimension_semantics=("parallel",)),
        cost_estimate=pl.CostEstimate(
            flops=int(flops), transcendentals=0,
            bytes_accessed=int(bytes_accessed)),
    )(w1f, b1, w2f, b2, ah, awt, x1, x2)


def _reference(x1, x2, w1, bn1, w2, bn2, eps=1e-5):
    """Pure-JAX mirror of Up.forward (inference-mode BN)."""
    B, C1, H1, W1 = x1.shape
    H2, W2 = x2.shape[2], x2.shape[3]
    ah = _interp_matrix(H1, 2 * H1)
    aw = _interp_matrix(W1, 2 * W1)
    x1u = jnp.einsum('Hh,bchw,Ww->bcHW', ah, x1, aw)
    diffY, diffX = H2 - x1u.shape[2], W2 - x1u.shape[3]
    x1u = jnp.pad(x1u, ((0, 0), (0, 0),
                        (diffY // 2, diffY - diffY // 2),
                        (diffX // 2, diffX - diffX // 2)))
    x = jnp.concatenate([x2, x1u], axis=1)

    def conv_bn_relu(x, w, bn):
        g, b, m, v = bn
        y = jax.lax.conv_general_dilated(
            x, w, (1, 1), ((1, 1), (1, 1)),
            dimension_numbers=('NCHW', 'OIHW', 'NCHW'))
        s = g / jnp.sqrt(v + eps)
        y = y * s[None, :, None, None] + (b - m * s)[None, :, None, None]
        return jnp.maximum(y, 0.0)

    return conv_bn_relu(conv_bn_relu(x, w1, bn1), w2, bn2)


if __name__ == "__main__":
    key = jax.random.PRNGKey(0)
    # Up(in_channels=4, out_channels=4, bilinear=True):
    #   x1: (B, 2, 8, 8) -> upsampled to 16x16;  x2: (B, 2, 16, 16) skip connection
    #   DoubleConv(4, 4, mid_channels=2)
    B, C1, C2 = 2, 2, 2
    CIN = C1 + C2
    MID = CIN // 2
    COUT = 4
    H1 = W1 = 8
    H2 = W2 = 16

    ks = jax.random.split(key, 12)
    x1 = jax.random.normal(ks[0], (B, C1, H1, W1), jnp.float32)
    x2 = jax.random.normal(ks[1], (B, C2, H2, W2), jnp.float32)
    w1 = 0.3 * jax.random.normal(ks[2], (MID, CIN, 3, 3), jnp.float32)
    w2 = 0.3 * jax.random.normal(ks[3], (COUT, MID, 3, 3), jnp.float32)
    bn1 = (jax.random.uniform(ks[4], (MID,), jnp.float32, 0.5, 1.5),     # gamma
           0.1 * jax.random.normal(ks[5], (MID,), jnp.float32),          # beta
           0.1 * jax.random.normal(ks[6], (MID,), jnp.float32),          # running_mean
           jax.random.uniform(ks[7], (MID,), jnp.float32, 0.5, 1.5))     # running_var
    bn2 = (jax.random.uniform(ks[8], (COUT,), jnp.float32, 0.5, 1.5),
           0.1 * jax.random.normal(ks[9], (COUT,), jnp.float32),
           0.1 * jax.random.normal(ks[10], (COUT,), jnp.float32),
           jax.random.uniform(ks[11], (COUT,), jnp.float32, 0.5, 1.5))

    out = up_forward(x1, x2, w1, bn1, w2, bn2)
    out = jax.block_until_ready(out)

    ref = _reference(x1, x2, w1, bn1, w2, bn2)
    assert out.shape == (B, COUT, H2, W2)
    assert out.dtype == x1.dtype
    assert jnp.allclose(out, ref, atol=1e-4, rtol=1e-4), (
        f"mismatch vs reference, max abs err {jnp.max(jnp.abs(out - ref))}")

    print("KERNEL_OK")
</pallas_src>

<mosaic_0001>
module attributes {stable_mosaic.version = 11 : i64} {
  func.func @_up_kernel(%arg0: i32, %arg1: memref<72xf32, #tpu.memory_space<smem>>, %arg2: memref<2xf32, #tpu.memory_space<smem>>, %arg3: memref<72xf32, #tpu.memory_space<smem>>, %arg4: memref<4xf32, #tpu.memory_space<smem>>, %arg5: memref<16x8xf32, #tpu.memory_space<vmem>>, %arg6: memref<8x16xf32, #tpu.memory_space<vmem>>, %arg7: memref<1x2x8x8xf32, #tpu.memory_space<vmem>>, %arg8: memref<1x2x16x16xf32, #tpu.memory_space<vmem>>, %arg9: memref<1x4x16x16xf32, #tpu.memory_space<vmem>>, %arg10: memref<4x18x18xf32, #tpu.memory_space<vmem>>, %arg11: memref<2x18x18xf32, #tpu.memory_space<vmem>>) attributes {dimension_semantics = [#tpu.dimension_semantics<parallel>], iteration_bounds = array<i64: 2>, scalar_prefetch = 0 : i64, scratch_operands = 2 : i64, tpu.core_type = #tpu.core_type<tc>, window_params = [{transform_indices = @transform_0, window_bounds = array<i64: 72>}, {transform_indices = @transform_1, window_bounds = array<i64: 2>}, {transform_indices = @transform_2, window_bounds = array<i64: 72>}, {transform_indices = @transform_3, window_bounds = array<i64: 4>}, {pipeline_mode = #tpu.pipeline_mode<synchronous>, transform_indices = @transform_4, window_bounds = array<i64: 16, 8>}, {pipeline_mode = #tpu.pipeline_mode<synchronous>, transform_indices = @transform_5, window_bounds = array<i64: 8, 16>}, {transform_indices = @transform_6, window_bounds = array<i64: 1, 2, 8, 8>}, {transform_indices = @transform_7, window_bounds = array<i64: 1, 2, 16, 16>}, {transform_indices = @transform_8, window_bounds = array<i64: 1, 4, 16, 16>}]} {
    %cst = arith.constant 0.000000e+00 : f32
    %0 = vector.broadcast %cst : f32 to vector<4x18x18xf32>
    %c0 = arith.constant 0 : index
    %c0_0 = arith.constant 0 : index
    %c0_1 = arith.constant 0 : index
    %1 = vector.load %arg10[%c0, %c0_0, %c0_1] : memref<4x18x18xf32, #tpu.memory_space<vmem>>, vector<4x18x18xf32>
    tpu.vector_store %arg10[%c0, %c0_0, %c0_1], %0 {strides = array<i32>} : memref<4x18x18xf32, #tpu.memory_space<vmem>>, vector<4x18x18xf32>,
    %c0_2 = arith.constant 0 : index
    %c0_3 = arith.constant 0 : index
    %c0_4 = arith.constant 0 : index
    %c0_5 = arith.constant 0 : index
    %2 = vector.load %arg8[%c0_2, %c0_3, %c0_4, %c0_5] : memref<1x2x16x16xf32, #tpu.memory_space<vmem>>, vector<1x1x16x16xf32>
    %3 = vector.shape_cast %2 : vector<1x1x16x16xf32> to vector<16x16xf32>
    %c0_6 = arith.constant 0 : index
    %c1 = arith.constant 1 : index
    %c1_7 = arith.constant 1 : index
    %4 = vector.load %arg10[%c0_6, %c1, %c1_7] : memref<4x18x18xf32, #tpu.memory_space<vmem>>, vector<1x16x16xf32>
    %5 = vector.shape_cast %4 : vector<1x16x16xf32> to vector<16x16xf32>
    %6 = vector.shape_cast %3 : vector<16x16xf32> to vector<1x16x16xf32>
    tpu.vector_store %arg10[%c0_6, %c1, %c1_7], %6 {strides = array<i32>} : memref<4x18x18xf32, #tpu.memory_space<vmem>>, vector<1x16x16xf32>,
    %c0_8 = arith.constant 0 : index
    %c1_9 = arith.constant 1 : index
    %c0_10 = arith.constant 0 : index
    %c0_11 = arith.constant 0 : index
    %7 = vector.load %arg8[%c0_8, %c1_9, %c0_10, %c0_11] : memref<1x2x16x16xf32, #tpu.memory_space<vmem>>, vector<1x1x16x16xf32>
    %8 = vector.shape_cast %7 : vector<1x1x16x16xf32> to vector<16x16xf32>
    %c1_12 = arith.constant 1 : index
    %c1_13 = arith.constant 1 : index
    %c1_14 = arith.constant 1 : index
    %9 = vector.load %arg10[%c1_12, %c1_13, %c1_14] : memref<4x18x18xf32, #tpu.memory_space<vmem>>, vector<1x16x16xf32>
    %10 = vector.shape_cast %9 : vector<1x16x16xf32> to vector<16x16xf32>
    %11 = vector.shape_cast %8 : vector<16x16xf32> to vector<1x16x16xf32>
    tpu.vector_store %arg10[%c1_12, %c1_13, %c1_14], %11 {strides = array<i32>} : memref<4x18x18xf32, #tpu.memory_space<vmem>>, vector<1x16x16xf32>,
    %c0_15 = arith.constant 0 : index
    %c0_16 = arith.constant 0 : index
    %12 = vector.load %arg5[%c0_15, %c0_16] : memref<16x8xf32, #tpu.memory_space<vmem>>, vector<16x8xf32>
    %c0_17 = arith.constant 0 : index
    %c0_18 = arith.constant 0 : index
    %13 = vector.load %arg6[%c0_17, %c0_18] : memref<8x16xf32, #tpu.memory_space<vmem>>, vector<8x16xf32>
    %c0_19 = arith.constant 0 : index
    %c0_20 = arith.constant 0 : index
    %c0_21 = arith.constant 0 : index
    %c0_22 = arith.constant 0 : index
    %14 = vector.load %arg7[%c0_19, %c0_20, %c0_21, %c0_22] : memref<1x2x8x8xf32, #tpu.memory_space<vmem>>, vector<1x1x8x8xf32>
    %15 = vector.shape_cast %14 : vector<1x1x8x8xf32> to vector<8x8xf32>
    %cst_23 = arith.constant dense<0.000000e+00> : vector<16x8xf32>
    %16 = tpu.matmul %12, %15, %cst_23 {dimension_numbers = #tpu.dot_dimension_numbers<[1], [0], [0], [1], [0, 0, 1, 1], [], []>} : vector<16x8xf32>, vector<8x8xf32>, vector<16x8xf32> -> vector<16x8xf32>
    %cst_24 = arith.constant dense<0.000000e+00> : vector<16x16xf32>
    %17 = tpu.matmul %16, %13, %cst_24 {dimension_numbers = #tpu.dot_dimension_numbers<[1], [0], [0], [1], [0, 0, 1, 1], [], []>} : vector<16x8xf32>, vector<8x16xf32>, vector<16x16xf32> -> vector<16x16xf32>
    %c2 = arith.constant 2 : index
    %c1_25 = arith.constant 1 : index
    %c1_26 = arith.constant 1 : index
    %18 = vector.load %arg10[%c2, %c1_25, %c1_26] : memref<4x18x18xf32, #tpu.memory_space<vmem>>, vector<1x16x16xf32>
    %19 = vector.shape_cast %18 : vector<1x16x16xf32> to vector<16x16xf32>
    %20 = vector.shape_cast %17 : vector<16x16xf32> to vector<1x16x16xf32>
    tpu.vector_store %arg10[%c2, %c1_25, %c1_26], %20 {strides = array<i32>} : memref<4x18x18xf32, #tpu.memory_space<vmem>>, vector<1x16x16xf32>,
    %c0_27 = arith.constant 0 : index
    %c1_28 = arith.constant 1 : index
    %c0_29 = arith.constant 0 : index
    %c0_30 = arith.constant 0 : index
    %21 = vector.load %arg7[%c0_27, %c1_28, %c0_29, %c0_30] : memref<1x2x8x8xf32, #tpu.memory_space<vmem>>, vector<1x1x8x8xf32>
    %22 = vector.shape_cast %21 : vector<1x1x8x8xf32> to vector<8x8xf32>
    %cst_31 = arith.constant dense<0.000000e+00> : vector<16x8xf32>
    %23 = tpu.matmul %12, %22, %cst_31 {dimension_numbers = #tpu.dot_dimension_numbers<[1], [0], [0], [1], [0, 0, 1, 1], [], []>} : vector<16x8xf32>, vector<8x8xf32>, vector<16x8xf32> -> vector<16x8xf32>
    %cst_32 = arith.constant dense<0.000000e+00> : vector<16x16xf32>
    %24 = tpu.matmul %23, %13, %cst_32 {dimension_numbers = #tpu.dot_dimension_numbers<[1], [0], [0], [1], [0, 0, 1, 1], [], []>} : vector<16x8xf32>, vector<8x16xf32>, vector<16x16xf32> -> vector<16x16xf32>
    %c3 = arith.constant 3 : index
    %c1_33 = arith.constant 1 : index
    %c1_34 = arith.constant 1 : index
    %25 = vector.load %arg10[%c3, %c1_33, %c1_34] : memref<4x18x18xf32, #tpu.memory_space<vmem>>, vector<1x16x16xf32>
    %26 = vector.shape_cast %25 : vector<1x16x16xf32> to vector<16x16xf32>
    %27 = vector.shape_cast %24 : vector<16x16xf32> to vector<1x16x16xf32>
    tpu.vector_store %arg10[%c3, %c1_33, %c1_34], %27 {strides = array<i32>} : memref<4x18x18xf32, #tpu.memory_space<vmem>>, vector<1x16x16xf32>,
    %cst_35 = arith.constant 0.000000e+00 : f32
    %28 = vector.broadcast %cst_35 : f32 to vector<2x18x18xf32>
    %c0_36 = arith.constant 0 : index
    %c0_37 = arith.constant 0 : index
    %c0_38 = arith.constant 0 : index
    %29 = vector.load %arg11[%c0_36, %c0_37, %c0_38] : memref<2x18x18xf32, #tpu.memory_space<vmem>>, vector<2x18x18xf32>
    tpu.vector_store %arg11[%c0_36, %c0_37, %c0_38], %28 {strides = array<i32>} : memref<2x18x18xf32, #tpu.memory_space<vmem>>, vector<2x18x18xf32>,
    %cst_39 = arith.constant 0.000000e+00 : f32
    %30 = vector.broadcast %cst_39 : f32 to vector<16x16xf32>
    %c0_40 = arith.constant 0 : index
    %31 = memref.load %arg2[%c0_40] : memref<2xf32, #tpu.memory_space<smem>>
    %32 = vector.broadcast %31 : f32 to vector<16x16xf32>
    %33 = arith.addf %30, %32 : vector<16x16xf32>
    %c0_41 = arith.constant 0 : index
    %34 = memref.load %arg1[%c0_41] : memref<72xf32, #tpu.memory_space<smem>>
    %c0_42 = arith.constant 0 : index
    %c0_43 = arith.constant 0 : index
    %c0_44 = arith.constant 0 : index
    %35 = vector.load %arg10[%c0_42, %c0_43, %c0_44] : memref<4x18x18xf32, #tpu.memory_space<vmem>>, vector<1x16x16xf32>
    %36 = vector.shape_cast %35 : vector<1x16x16xf32> to vector<16x16xf32>
    %37 = vector.broadcast %34 : f32 to vector<16x16xf32>
    %38 = arith.mulf %37, %36 : vector<16x16xf32>
    %39 = arith.addf %33, %38 : vector<16x16xf32>
    %c1_45 = arith.constant 1 : index
    %40 = memref.load %arg1[%c1_45] : memref<72xf32, #tpu.memory_space<smem>>
    %c0_46 = arith.constant 0 : index
    %c0_47 = arith.constant 0 : index
    %c1_48 = arith.constant 1 : index
    %41 = vector.load %arg10[%c0_46, %c0_47, %c1_48] : memref<4x18x18xf32, #tpu.memory_space<vmem>>, vector<1x16x16xf32>
    %42 = vector.shape_cast %41 : vector<1x16x16xf32> to vector<16x16xf32>
    %43 = vector.broadcast %40 : f32 to vector<16x16xf32>
    %44 = arith.mulf %43, %42 : vector<16x16xf32>
    %45 = arith.addf %39, %44 : vector<16x16xf32>
    %c2_49 = arith.constant 2 : index
    %46 = memref.load %arg1[%c2_49] : memref<72xf32, #tpu.memory_space<smem>>
    %c0_50 = arith.constant 0 : index
    %c0_51 = arith.constant 0 : index
    %c2_52 = arith.constant 2 : index
    %47 = vector.load %arg10[%c0_50, %c0_51, %c2_52] : memref<4x18x18xf32, #tpu.memory_space<vmem>>, vector<1x16x16xf32>
    %48 = vector.shape_cast %47 : vector<1x16x16xf32> to vector<16x16xf32>
    %49 = vector.broadcast %46 : f32 to vector<16x16xf32>
    %50 = arith.mulf %49, %48 : vector<16x16xf32>
    %51 = arith.addf %45, %50 : vector<16x16xf32>
    %c3_53 = arith.constant 3 : index
    %52 = memref.load %arg1[%c3_53] : memref<72xf32, #tpu.memory_space<smem>>
    %c0_54 = arith.constant 0 : index
    %c1_55 = arith.constant 1 : index
    %c0_56 = arith.constant 0 : index
    %53 = vector.load %arg10[%c0_54, %c1_55, %c0_56] : memref<4x18x18xf32, #tpu.memory_space<vmem>>, vector<1x16x16xf32>
    %54 = vector.shape_cast %53 : vector<1x16x16xf32> to vector<16x16xf32>
    %55 = vector.broadcast %52 : f32 to vector<16x16xf32>
    %56 = arith.mulf %55, %54 : vector<16x16xf32>
    %57 = arith.addf %51, %56 : vector<16x16xf32>
    %c4 = arith.constant 4 : index
    %58 = memref.load %arg1[%c4] : memref<72xf32, #tpu.memory_space<smem>>
    %c0_57 = arith.constant 0 : index
    %c1_58 = arith.constant 1 : index
    %c1_59 = arith.constant 1 : index
    %59 = vector.load %arg10[%c0_57, %c1_58, %c1_59] : memref<4x18x18xf32, #tpu.memory_space<vmem>>, vector<1x16x16xf32>
    %60 = vector.shape_cast %59 : vector<1x16x16xf32> to vector<16x16xf32>
    %61 = vector.broadcast %58 : f32 to vector<16x16xf32>
    %62 = arith.mulf %61, %60 : vector<16x16xf32>
    %63 = arith.addf %57, %62 : vector<16x16xf32>
    %c5 = arith.constant 5 : index
    %64 = memref.load %arg1[%c5] : memref<72xf32, #tpu.memory_space<smem>>
    %c0_60 = arith.constant 0 : index
    %c1_61 = arith.constant 1 : index
    %c2_62 = arith.constant 2 : index
    %65 = vector.load %arg10[%c0_60, %c1_61, %c2_62] : memref<4x18x18xf32, #tpu.memory_space<vmem>>, vector<1x16x16xf32>
    %66 = vector.shape_cast %65 : vector<1x16x16xf32> to vector<16x16xf32>
    %67 = vector.broadcast %64 : f32 to vector<16x16xf32>
    %68 = arith.mulf %67, %66 : vector<16x16xf32>
    %69 = arith.addf %63, %68 : vector<16x16xf32>
    %c6 = arith.constant 6 : index
    %70 = memref.load %arg1[%c6] : memref<72xf32, #tpu.memory_space<smem>>
    %c0_63 = arith.constant 0 : index
    %c2_64 = arith.constant 2 : index
    %c0_65 = arith.constant 0 : index
    %71 = vector.load %arg10[%c0_63, %c2_64, %c0_65] : memref<4x18x18xf32, #tpu.memory_space<vmem>>, vector<1x16x16xf32>
    %72 = vector.shape_cast %71 : vector<1x16x16xf32> to vector<16x16xf32>
    %73 = vector.broadcast %70 : f32 to vector<16x16xf32>
    %74 = arith.mulf %73, %72 : vector<16x16xf32>
    %75 = arith.addf %69, %74 : vector<16x16xf32>
    %c7 = arith.constant 7 : index
    %76 = memref.load %arg1[%c7] : memref<72xf32, #tpu.memory_space<smem>>
    %c0_66 = arith.constant 0 : index
    %c2_67 = arith.constant 2 : index
    %c1_68 = arith.constant 1 : index
    %77 = vector.load %arg10[%c0_66, %c2_67, %c1_68] : memref<4x18x18xf32, #tpu.memory_space<vmem>>, vector<1x16x16xf32>
    %78 = vector.shape_cast %77 : vector<1x16x16xf32> to vector<16x16xf32>
    %79 = vector.broadcast %76 : f32 to vector<16x16xf32>
    %80 = arith.mulf %79, %78 : vector<16x16xf32>
    %81 = arith.addf %75, %80 : vector<16x16xf32>
    %c8 = arith.constant 8 : index
    %82 = memref.load %arg1[%c8] : memref<72xf32, #tpu.memory_space<smem>>
    %c0_69 = arith.constant 0 : index
    %c2_70 = arith.constant 2 : index
    %c2_71 = arith.constant 2 : index
    %83 = vector.load %arg10[%c0_69, %c2_70, %c2_71] : memref<4x18x18xf32, #tpu.memory_space<vmem>>, vector<1x16x16xf32>
    %84 = vector.shape_cast %83 : vector<1x16x16xf32> to vector<16x16xf32>
    %85 = vector.broadcast %82 : f32 to vector<16x16xf32>
    %86 = arith.mulf %85, %84 : vector<16x16xf32>
    %87 = arith.addf %81, %86 : vector<16x16xf32>
    %c9 = arith.constant 9 : index
    %88 = memref.load %arg1[%c9] : memref<72xf32, #tpu.memory_space<smem>>
    %c1_72 = arith.constant 1 : index
    %c0_73 = arith.constant 0 : index
    %c0_74 = arith.constant 0 : index
    %89 = vector.load %arg10[%c1_72, %c0_73, %c0_74] : memref<4x18x18xf32, #tpu.memory_space<vmem>>, vector<1x16x16xf32>
    %90 = vector.shape_cast %89 : vector<1x16x16xf32> to vector<16x16xf32>
    %91 = vector.broadcast %88 : f32 to vector<16x16xf32>
    %92 = arith.mulf %91, %90 : vector<16x16xf32>
    %93 = arith.addf %87, %92 : vector<16x16xf32>
    %c10 = arith.constant 10 : index
    %94 = memref.load %arg1[%c10] : memref<72xf32, #tpu.memory_space<smem>>
    %c1_75 = arith.constant 1 : index
    %c0_76 = arith.constant 0 : index
    %c1_77 = arith.constant 1 : index
    %95 = vector.load %arg10[%c1_75, %c0_76, %c1_77] : memref<4x18x18xf32, #tpu.memory_space<vmem>>, vector<1x16x16xf32>
    %96 = vector.shape_cast %95 : vector<1x16x16xf32> to vector<16x16xf32>
    %97 = vector.broadcast %94 : f32 to vector<16x16xf32>
    %98 = arith.mulf %97, %96 : vector<16x16xf32>
    %99 = arith.addf %93, %98 : vector<16x16xf32>
    %c11 = arith.constant 11 : index
    %100 = memref.load %arg1[%c11] : memref<72xf32, #tpu.memory_space<smem>>
    %c1_78 = arith.constant 1 : index
    %c0_79 = arith.constant 0 : index
    %c2_80 = arith.constant 2 : index
    %101 = vector.load %arg10[%c1_78, %c0_79, %c2_80] : memref<4x18x18xf32, #tpu.memory_space<vmem>>, vector<1x16x16xf32>
    %102 = vector.shape_cast %101 : vector<1x16x16xf32> to vector<16x16xf32>
    %103 = vector.broadcast %100 : f32 to vector<16x16xf32>
    %104 = arith.mulf %103, %102 : vector<16x16xf32>
    %105 = arith.addf %99, %104 : vector<16x16xf32>
    %c12 = arith.constant 12 : index
    %106 = memref.load %arg1[%c12] : memref<72xf32, #tpu.memory_space<smem>>
    %c1_81 = arith.constant 1 : index
    %c1_82 = arith.constant 1 : index
    %c0_83 = arith.constant 0 : index
    %107 = vector.load %arg10[%c1_81, %c1_82, %c0_83] : memref<4x18x18xf32, #tpu.memory_space<vmem>>, vector<1x16x16xf32>
    %108 = vector.shape_cast %107 : vector<1x16x16xf32> to vector<16x16xf32>
    %109 = vector.broadcast %106 : f32 to vector<16x16xf32>
    %110 = arith.mulf %109, %108 : vector<16x16xf32>
    %111 = arith.addf %105, %110 : vector<16x16xf32>
    %c13 = arith.constant 13 : index
    %112 = memref.load %arg1[%c13] : memref<72xf32, #tpu.memory_space<smem>>
    %c1_84 = arith.constant 1 : index
    %c1_85 = arith.constant 1 : index
    %c1_86 = arith.constant 1 : index
    %113 = vector.load %arg10[%c1_84, %c1_85, %c1_86] : memref<4x18x18xf32, #tpu.memory_space<vmem>>, vector<1x16x16xf32>
    %114 = vector.shape_cast %113 : vector<1x16x16xf32> to vector<16x16xf32>
    %115 = vector.broadcast %112 : f32 to vector<16x16xf32>
    %116 = arith.mulf %115, %114 : vector<16x16xf32>
    %117 = arith.addf %111, %116 : vector<16x16xf32>
    %c14 = arith.constant 14 : index
    %118 = memref.load %arg1[%c14] : memref<72xf32, #tpu.memory_space<smem>>
    %c1_87 = arith.constant 1 : index
    %c1_88 = arith.constant 1 : index
    %c2_89 = arith.constant 2 : index
    %119 = vector.load %arg10[%c1_87, %c1_88, %c2_89] : memref<4x18x18xf32, #tpu.memory_space<vmem>>, vector<1x16x16xf32>
    %120 = vector.shape_cast %119 : vector<1x16x16xf32> to vector<16x16xf32>
    %121 = vector.broadcast %118 : f32 to vector<16x16xf32>
    %122 = arith.mulf %121, %120 : vector<16x16xf32>
    %123 = arith.addf %117, %122 : vector<16x16xf32>
    %c15 = arith.constant 15 : index
    %124 = memref.load %arg1[%c15] : memref<72xf32, #tpu.memory_space<smem>>
    %c1_90 = arith.constant 1 : index
    %c2_91 = arith.constant 2 : index
    %c0_92 = arith.constant 0 : index
    %125 = vector.load %arg10[%c1_90, %c2_91, %c0_92] : memref<4x18x18xf32, #tpu.memory_space<vmem>>, vector<1x16x16xf32>
    %126 = vector.shape_cast %125 : vector<1x16x16xf32> to vector<16x16xf32>
    %127 = vector.broadcast %124 : f32 to vector<16x16xf32>
    %128 = arith.mulf %127, %126 : vector<16x16xf32>
    %129 = arith.addf %123, %128 : vector<16x16xf32>
    %c16 = arith.constant 16 : index
    %130 = memref.load %arg1[%c16] : memref<72xf32, #tpu.memory_space<smem>>
    %c1_93 = arith.constant 1 : index
    %c2_94 = arith.constant 2 : index
    %c1_95 = arith.constant 1 : index
    %131 = vector.load %arg10[%c1_93, %c2_94, %c1_95] : memref<4x18x18xf32, #tpu.memory_space<vmem>>, vector<1x16x16xf32>
    %132 = vector.shape_cast %131 : vector<1x16x16xf32> to vector<16x16xf32>
    %133 = vector.broadcast %130 : f32 to vector<16x16xf32>
    %134 = arith.mulf %133, %132 : vector<16x16xf32>
    %135 = arith.addf %129, %134 : vector<16x16xf32>
    %c17 = arith.constant 17 : index
    %136 = memref.load %arg1[%c17] : memref<72xf32, #tpu.memory_space<smem>>
    %c1_96 = arith.constant 1 : index
    %c2_97 = arith.constant 2 : index
    %c2_98 = arith.constant 2 : index
    %137 = vector.load %arg10[%c1_96, %c2_97, %c2_98] : memref<4x18x18xf32, #tpu.memory_space<vmem>>, vector<1x16x16xf32>
    %138 = vector.shape_cast %137 : vector<1x16x16xf32> to vector<16x16xf32>
    %139 = vector.broadcast %136 : f32 to vector<16x16xf32>
    %140 = arith.mulf %139, %138 : vector<16x16xf32>
    %141 = arith.addf %135, %140 : vector<16x16xf32>
    %c18 = arith.constant 18 : index
    %142 = memref.load %arg1[%c18] : memref<72xf32, #tpu.memory_space<smem>>
    %c2_99 = arith.constant 2 : index
    %c0_100 = arith.constant 0 : index
    %c0_101 = arith.constant 0 : index
    %143 = vector.load %arg10[%c2_99, %c0_100, %c0_101] : memref<4x18x18xf32, #tpu.memory_space<vmem>>, vector<1x16x16xf32>
    %144 = vector.shape_cast %143 : vector<1x16x16xf32> to vector<16x16xf32>
    %145 = vector.broadcast %142 : f32 to vector<16x16xf32>
    %146 = arith.mulf %145, %144 : vector<16x16xf32>
    %147 = arith.addf %141, %146 : vector<16x16xf32>
    %c19 = arith.constant 19 : index
    %148 = memref.load %arg1[%c19] : memref<72xf32, #tpu.memory_space<smem>>
    %c2_102 = arith.constant 2 : index
    %c0_103 = arith.constant 0 : index
    %c1_104 = arith.constant 1 : index
    %149 = vector.load %arg10[%c2_102, %c0_103, %c1_104] : memref<4x18x18xf32, #tpu.memory_space<vmem>>, vector<1x16x16xf32>
    %150 = vector.shape_cast %149 : vector<1x16x16xf32> to vector<16x16xf32>
    %151 = vector.broadcast %148 : f32 to vector<16x16xf32>
    %152 = arith.mulf %151, %150 : vector<16x16xf32>
    %153 = arith.addf %147, %152 : vector<16x16xf32>
    %c20 = arith.constant 20 : index
    %154 = memref.load %arg1[%c20] : memref<72xf32, #tpu.memory_space<smem>>
    %c2_105 = arith.constant 2 : index
    %c0_106 = arith.constant 0 : index
    %c2_107 = arith.constant 2 : index
    %155 = vector.load %arg10[%c2_105, %c0_106, %c2_107] : memref<4x18x18xf32, #tpu.memory_space<vmem>>, vector<1x16x16xf32>
    %156 = vector.shape_cast %155 : vector<1x16x16xf32> to vector<16x16xf32>
    %157 = vector.broadcast %154 : f32 to vector<16x16xf32>
    %158 = arith.mulf %157, %156 : vector<16x16xf32>
    %159 = arith.addf %153, %158 : vector<16x16xf32>
    %c21 = arith.constant 21 : index
    %160 = memref.load %arg1[%c21] : memref<72xf32, #tpu.memory_space<smem>>
    %c2_108 = arith.constant 2 : index
    %c1_109 = arith.constant 1 : index
    %c0_110 = arith.constant 0 : index
    %161 = vector.load %arg10[%c2_108, %c1_109, %c0_110] : memref<4x18x18xf32, #tpu.memory_space<vmem>>, vector<1x16x16xf32>
    %162 = vector.shape_cast %161 : vector<1x16x16xf32> to vector<16x16xf32>
    %163 = vector.broadcast %160 : f32 to vector<16x16xf32>
    %164 = arith.mulf %163, %162 : vector<16x16xf32>
    %165 = arith.addf %159, %164 : vector<16x16xf32>
    %c22 = arith.constant 22 : index
    %166 = memref.load %arg1[%c22] : memref<72xf32, #tpu.memory_space<smem>>
    %c2_111 = arith.constant 2 : index
    %c1_112 = arith.constant 1 : index
    %c1_113 = arith.constant 1 : index
    %167 = vector.load %arg10[%c2_111, %c1_112, %c1_113] : memref<4x18x18xf32, #tpu.memory_space<vmem>>, vector<1x16x16xf32>
    %168 = vector.shape_cast %167 : vector<1x16x16xf32> to vector<16x16xf32>
    %169 = vector.broadcast %166 : f32 to vector<16x16xf32>
    %170 = arith.mulf %169, %168 : vector<16x16xf32>
    %171 = arith.addf %165, %170 : vector<16x16xf32>
    %c23 = arith.constant 23 : index
    %172 = memref.load %arg1[%c23] : memref<72xf32, #tpu.memory_space<smem>>
    %c2_114 = arith.constant 2 : index
    %c1_115 = arith.constant 1 : index
    %c2_116 = arith.constant 2 : index
    %173 = vector.load %arg10[%c2_114, %c1_115, %c2_116] : memref<4x18x18xf32, #tpu.memory_space<vmem>>, vector<1x16x16xf32>
    %174 = vector.shape_cast %173 : vector<1x16x16xf32> to vector<16x16xf32>
    %175 = vector.broadcast %172 : f32 to vector<16x16xf32>
    %176 = arith.mulf %175, %174 : vector<16x16xf32>
    %177 = arith.addf %171, %176 : vector<16x16xf32>
    %c24 = arith.constant 24 : index
    %178 = memref.load %arg1[%c24] : memref<72xf32, #tpu.memory_space<smem>>
    %c2_117 = arith.constant 2 : index
    %c2_118 = arith.constant 2 : index
    %c0_119 = arith.constant 0 : index
    %179 = vector.load %arg10[%c2_117, %c2_118, %c0_119] : memref<4x18x18xf32, #tpu.memory_space<vmem>>, vector<1x16x16xf32>
    %180 = vector.shape_cast %179 : vector<1x16x16xf32> to vector<16x16xf32>
    %181 = vector.broadcast %178 : f32 to vector<16x16xf32>
    %182 = arith.mulf %181, %180 : vector<16x16xf32>
    %183 = arith.addf %177, %182 : vector<16x16xf32>
    %c25 = arith.constant 25 : index
    %184 = memref.load %arg1[%c25] : memref<72xf32, #tpu.memory_space<smem>>
    %c2_120 = arith.constant 2 : index
    %c2_121 = arith.constant 2 : index
    %c1_122 = arith.constant 1 : index
    %185 = vector.load %arg10[%c2_120, %c2_121, %c1_122] : memref<4x18x18xf32, #tpu.memory_space<vmem>>, vector<1x16x16xf32>
    %186 = vector.shape_cast %185 : vector<1x16x16xf32> to vector<16x16xf32>
    %187 = vector.broadcast %184 : f32 to vector<16x16xf32>
    %188 = arith.mulf %187, %186 : vector<16x16xf32>
    %189 = arith.addf %183, %188 : vector<16x16xf32>
    %c26 = arith.constant 26 : index
    %190 = memref.load %arg1[%c26] : memref<72xf32, #tpu.memory_space<smem>>
    %c2_123 = arith.constant 2 : index
    %c2_124 = arith.constant 2 : index
    %c2_125 = arith.constant 2 : index
    %191 = vector.load %arg10[%c2_123, %c2_124, %c2_125] : memref<4x18x18xf32, #tpu.memory_space<vmem>>, vector<1x16x16xf32>
    %192 = vector.shape_cast %191 : vector<1x16x16xf32> to vector<16x16xf32>
    %193 = vector.broadcast %190 : f32 to vector<16x16xf32>
    %194 = arith.mulf %193, %192 : vector<16x16xf32>
    %195 = arith.addf %189, %194 : vector<16x16xf32>
    %c27 = arith.constant 27 : index
    %196 = memref.load %arg1[%c27] : memref<72xf32, #tpu.memory_space<smem>>
    %c3_126 = arith.constant 3 : index
    %c0_127 = arith.constant 0 : index
    %c0_128 = arith.constant 0 : index
    %197 = vector.load %arg10[%c3_126, %c0_127, %c0_128] : memref<4x18x18xf32, #tpu.memory_space<vmem>>, vector<1x16x16xf32>
    %198 = vector.shape_cast %197 : vector<1x16x16xf32> to vector<16x16xf32>
    %199 = vector.broadcast %196 : f32 to vector<16x16xf32>
    %200 = arith.mulf %199, %198 : vector<16x16xf32>
    %201 = arith.addf %195, %200 : vector<16x16xf32>
    %c28 = arith.constant 28 : index
    %202 = memref.load %arg1[%c28] : memref<72xf32, #tpu.memory_space<smem>>
    %c3_129 = arith.constant 3 : index
    %c0_130 = arith.constant 0 : index
    %c1_131 = arith.constant 1 : index
    %203 = vector.load %arg10[%c3_129, %c0_130, %c1_131] : memref<4x18x18xf32, #tpu.memory_space<vmem>>, vector<1x16x16xf32>
    %204 = vector.shape_cast %203 : vector<1x16x16xf32> to vector<16x16xf32>
    %205 = vector.broadcast %202 : f32 to vector<16x16xf32>
    %206 = arith.mulf %205, %204 : vector<16x16xf32>
    %207 = arith.addf %201, %206 : vector<16x16xf32>
    %c29 = arith.constant 29 : index
    %208 = memref.load %arg1[%c29] : memref<72xf32, #tpu.memory_space<smem>>
    %c3_132 = arith.constant 3 : index
    %c0_133 = arith.constant 0 : index
    %c2_134 = arith.constant 2 : index
    %209 = vector.load %arg10[%c3_132, %c0_133, %c2_134] : memref<4x18x18xf32, #tpu.memory_space<vmem>>, vector<1x16x16xf32>
    %210 = vector.shape_cast %209 : vector<1x16x16xf32> to vector<16x16xf32>
    %211 = vector.broadcast %208 : f32 to vector<16x16xf32>
    %212 = arith.mulf %211, %210 : vector<16x16xf32>
    %213 = arith.addf %207, %212 : vector<16x16xf32>
    %c30 = arith.constant 30 : index
    %214 = memref.load %arg1[%c30] : memref<72xf32, #tpu.memory_space<smem>>
    %c3_135 = arith.constant 3 : index
    %c1_136 = arith.constant 1 : index
    %c0_137 = arith.constant 0 : index
    %215 = vector.load %arg10[%c3_135, %c1_136, %c0_137] : memref<4x18x18xf32, #tpu.memory_space<vmem>>, vector<1x16x16xf32>
    %216 = vector.shape_cast %215 : vector<1x16x16xf32> to vector<16x16xf32>
    %217 = vector.broadcast %214 : f32 to vector<16x16xf32>
    %218 = arith.mulf %217, %216 : vector<16x16xf32>
    %219 = arith.addf %213, %218 : vector<16x16xf32>
    %c31 = arith.constant 31 : index
    %220 = memref.load %arg1[%c31] : memref<72xf32, #tpu.memory_space<smem>>
    %c3_138 = arith.constant 3 : index
    %c1_139 = arith.constant 1 : index
    %c1_140 = arith.constant 1 : index
    %221 = vector.load %arg10[%c3_138, %c1_139, %c1_140] : memref<4x18x18xf32, #tpu.memory_space<vmem>>, vector<1x16x16xf32>
    %222 = vector.shape_cast %221 : vector<1x16x16xf32> to vector<16x16xf32>
    %223 = vector.broadcast %220 : f32 to vector<16x16xf32>
    %224 = arith.mulf %223, %222 : vector<16x16xf32>
    %225 = arith.addf %219, %224 : vector<16x16xf32>
    %c32 = arith.constant 32 : index
    %226 = memref.load %arg1[%c32] : memref<72xf32, #tpu.memory_space<smem>>
    %c3_141 = arith.constant 3 : index
    %c1_142 = arith.constant 1 : index
    %c2_143 = arith.constant 2 : index
    %227 = vector.load %arg10[%c3_141, %c1_142, %c2_143] : memref<4x18x18xf32, #tpu.memory_space<vmem>>, vector<1x16x16xf32>
    %228 = vector.shape_cast %227 : vector<1x16x16xf32> to vector<16x16xf32>
    %229 = vector.broadcast %226 : f32 to vector<16x16xf32>
    %230 = arith.mulf %229, %228 : vector<16x16xf32>
    %231 = arith.addf %225, %230 : vector<16x16xf32>
    %c33 = arith.constant 33 : index
    %232 = memref.load %arg1[%c33] : memref<72xf32, #tpu.memory_space<smem>>
    %c3_144 = arith.constant 3 : index
    %c2_145 = arith.constant 2 : index
    %c0_146 = arith.constant 0 : index
    %233 = vector.load %arg10[%c3_144, %c2_145, %c0_146] : memref<4x18x18xf32, #tpu.memory_space<vmem>>, vector<1x16x16xf32>
    %234 = vector.shape_cast %233 : vector<1x16x16xf32> to vector<16x16xf32>
    %235 = vector.broadcast %232 : f32 to vector<16x16xf32>
    %236 = arith.mulf %235, %234 : vector<16x16xf32>
    %237 = arith.addf %231, %236 : vector<16x16xf32>
    %c34 = arith.constant 34 : index
    %238 = memref.load %arg1[%c34] : memref<72xf32, #tpu.memory_space<smem>>
    %c3_147 = arith.constant 3 : index
    %c2_148 = arith.constant 2 : index
    %c1_149 = arith.constant 1 : index
    %239 = vector.load %arg10[%c3_147, %c2_148, %c1_149] : memref<4x18x18xf32, #tpu.memory_space<vmem>>, vector<1x16x16xf32>
    %240 = vector.shape_cast %239 : vector<1x16x16xf32> to vector<16x16xf32>
    %241 = vector.broadcast %238 : f32 to vector<16x16xf32>
    %242 = arith.mulf %241, %240 : vector<16x16xf32>
    %243 = arith.addf %237, %242 : vector<16x16xf32>
    %c35 = arith.constant 35 : index
    %244 = memref.load %arg1[%c35] : memref<72xf32, #tpu.memory_space<smem>>
    %c3_150 = arith.constant 3 : index
    %c2_151 = arith.constant 2 : index
    %c2_152 = arith.constant 2 : index
    %245 = vector.load %arg10[%c3_150, %c2_151, %c2_152] : memref<4x18x18xf32, #tpu.memory_space<vmem>>, vector<1x16x16xf32>
    %246 = vector.shape_cast %245 : vector<1x16x16xf32> to vector<16x16xf32>
    %247 = vector.broadcast %244 : f32 to vector<16x16xf32>
    %248 = arith.mulf %247, %246 : vector<16x16xf32>
    %249 = arith.addf %243, %248 : vector<16x16xf32>
    %cst_153 = arith.constant 0.000000e+00 : f32
    %250 = vector.broadcast %cst_153 : f32 to vector<16x16xf32>
    %251 = arith.maximumf %249, %250 : vector<16x16xf32>
    %c0_154 = arith.constant 0 : index
    %c1_155 = arith.constant 1 : index
    %c1_156 = arith.constant 1 : index
    %252 = vector.load %arg11[%c0_154, %c1_155, %c1_156] : memref<2x18x18xf32, #tpu.memory_space<vmem>>, vector<1x16x16xf32>
    %253 = vector.shape_cast %252 : vector<1x16x16xf32> to vector<16x16xf32>
    %254 = vector.shape_cast %251 : vector<16x16xf32> to vector<1x16x16xf32>
    tpu.vector_store %arg11[%c0_154, %c1_155, %c1_156], %254 {strides = array<i32>} : memref<2x18x18xf32, #tpu.memory_space<vmem>>, vector<1x16x16xf32>,
    %cst_157 = arith.constant 0.000000e+00 : f32
    %255 = vector.broadcast %cst_157 : f32 to vector<16x16xf32>
    %c1_158 = arith.constant 1 : index
    %256 = memref.load %arg2[%c1_158] : memref<2xf32, #tpu.memory_space<smem>>
    %257 = vector.broadcast %256 : f32 to vector<16x16xf32>
    %258 = arith.addf %255, %257 : vector<16x16xf32>
    %c36 = arith.constant 36 : index
    %259 = memref.load %arg1[%c36] : memref<72xf32, #tpu.memory_space<smem>>
    %c0_159 = arith.constant 0 : index
    %c0_160 = arith.constant 0 : index
    %c0_161 = arith.constant 0 : index
    %260 = vector.load %arg10[%c0_159, %c0_160, %c0_161] : memref<4x18x18xf32, #tpu.memory_space<vmem>>, vector<1x16x16xf32>
    %261 = vector.shape_cast %260 : vector<1x16x16xf32> to vector<16x16xf32>
    %262 = vector.broadcast %259 : f32 to vector<16x16xf32>
    %263 = arith.mulf %262, %261 : vector<16x16xf32>
    %264 = arith.addf %258, %263 : vector<16x16xf32>
    %c37 = arith.constant 37 : index
    %265 = memref.load %arg1[%c37] : memref<72xf32, #tpu.memory_space<smem>>
    %c0_162 = arith.constant 0 : index
    %c0_163 = arith.constant 0 : index
    %c1_164 = arith.constant 1 : index
    %266 = vector.load %arg10[%c0_162, %c0_163, %c1_164] : memref<4x18x18xf32, #tpu.memory_space<vmem>>, vector<1x16x16xf32>
    %267 = vector.shape_cast %266 : vector<1x16x16xf32> to vector<16x16xf32>
    %268 = vector.broadcast %265 : f32 to vector<16x16xf32>
    %269 = arith.mulf %268, %267 : vector<16x16xf32>
    %270 = arith.addf %264, %269 : vector<16x16xf32>
    %c38 = arith.constant 38 : index
    %271 = memref.load %arg1[%c38] : memref<72xf32, #tpu.memory_space<smem>>
    %c0_165 = arith.constant 0 : index
    %c0_166 = arith.constant 0 : index
    %c2_167 = arith.constant 2 : index
    %272 = vector.load %arg10[%c0_165, %c0_166, %c2_167] : memref<4x18x18xf32, #tpu.memory_space<vmem>>, vector<1x16x16xf32>
    %273 = vector.shape_cast %272 : vector<1x16x16xf32> to vector<16x16xf32>
    %274 = vector.broadcast %271 : f32 to vector<16x16xf32>
    %275 = arith.mulf %274, %273 : vector<16x16xf32>
    %276 = arith.addf %270, %275 : vector<16x16xf32>
    %c39 = arith.constant 39 : index
    %277 = memref.load %arg1[%c39] : memref<72xf32, #tpu.memory_space<smem>>
    %c0_168 = arith.constant 0 : index
    %c1_169 = arith.constant 1 : index
    %c0_170 = arith.constant 0 : index
    %278 = vector.load %arg10[%c0_168, %c1_169, %c0_170] : memref<4x18x18xf32, #tpu.memory_space<vmem>>, vector<1x16x16xf32>
    %279 = vector.shape_cast %278 : vector<1x16x16xf32> to vector<16x16xf32>
    %280 = vector.broadcast %277 : f32 to vector<16x16xf32>
    %281 = arith.mulf %280, %279 : vector<16x16xf32>
    %282 = arith.addf %276, %281 : vector<16x16xf32>
    %c40 = arith.constant 40 : index
    %283 = memref.load %arg1[%c40] : memref<72xf32, #tpu.memory_space<smem>>
    %c0_171 = arith.constant 0 : index
    %c1_172 = arith.constant 1 : index
    %c1_173 = arith.constant 1 : index
    %284 = vector.load %arg10[%c0_171, %c1_172, %c1_173] : memref<4x18x18xf32, #tpu.memory_space<vmem>>, vector<1x16x16xf32>
    %285 = vector.shape_cast %284 : vector<1x16x16xf32> to vector<16x16xf32>
    %286 = vector.broadcast %283 : f32 to vector<16x16xf32>
    %287 = arith.mulf %286, %285 : vector<16x16xf32>
    %288 = arith.addf %282, %287 : vector<16x16xf32>
    %c41 = arith.constant 41 : index
    %289 = memref.load %arg1[%c41] : memref<72xf32, #tpu.memory_space<smem>>
    %c0_174 = arith.constant 0 : index
    %c1_175 = arith.constant 1 : index
    %c2_176 = arith.constant 2 : index
    %290 = vector.load %arg10[%c0_174, %c1_175, %c2_176] : memref<4x18x18xf32, #tpu.memory_space<vmem>>, vector<1x16x16xf32>
    %291 = vector.shape_cast %290 : vector<1x16x16xf32> to vector<16x16xf32>
    %292 = vector.broadcast %289 : f32 to vector<16x16xf32>
    %293 = arith.mulf %292, %291 : vector<16x16xf32>
    %294 = arith.addf %288, %293 : vector<16x16xf32>
    %c42 = arith.constant 42 : index
    %295 = memref.load %arg1[%c42] : memref<72xf32, #tpu.memory_space<smem>>
    %c0_177 = arith.constant 0 : index
    %c2_178 = arith.constant 2 : index
    %c0_179 = arith.constant 0 : index
    %296 = vector.load %arg10[%c0_177, %c2_178, %c0_179] : memref<4x18x18xf32, #tpu.memory_space<vmem>>, vector<1x16x16xf32>
    %297 = vector.shape_cast %296 : vector<1x16x16xf32> to vector<16x16xf32>
    %298 = vector.broadcast %295 : f32 to vector<16x16xf32>
    %299 = arith.mulf %298, %297 : vector<16x16xf32>
    %300 = arith.addf %294, %299 : vector<16x16xf32>
    %c43 = arith.constant 43 : index
    %301 = memref.load %arg1[%c43] : memref<72xf32, #tpu.memory_space<smem>>
    %c0_180 = arith.constant 0 : index
    %c2_181 = arith.constant 2 : index
    %c1_182 = arith.constant 1 : index
    %302 = vector.load %arg10[%c0_180, %c2_181, %c1_182] : memref<4x18x18xf32, #tpu.memory_space<vmem>>, vector<1x16x16xf32>
    %303 = vector.shape_cast %302 : vector<1x16x16xf32> to vector<16x16xf32>
    %304 = vector.broadcast %301 : f32 to vector<16x16xf32>
    %305 = arith.mulf %304, %303 : vector<16x16xf32>
    %306 = arith.addf %300, %305 : vector<16x16xf32>
    %c44 = arith.constant 44 : index
    %307 = memref.load %arg1[%c44] : memref<72xf32, #tpu.memory_space<smem>>
    %c0_183 = arith.constant 0 : index
    %c2_184 = arith.constant 2 : index
    %c2_185 = arith.constant 2 : index
    %308 = vector.load %arg10[%c0_183, %c2_184, %c2_185] : memref<4x18x18xf32, #tpu.memory_space<vmem>>, vector<1x16x16xf32>
    %309 = vector.shape_cast %308 : vector<1x16x16xf32> to vector<16x16xf32>
    %310 = vector.broadcast %307 : f32 to vector<16x16xf32>
    %311 = arith.mulf %310, %309 : vector<16x16xf32>
    %312 = arith.addf %306, %311 : vector<16x16xf32>
    %c45 = arith.constant 45 : index
    %313 = memref.load %arg1[%c45] : memref<72xf32, #tpu.memory_space<smem>>
    %c1_186 = arith.constant 1 : index
    %c0_187 = arith.constant 0 : index
    %c0_188 = arith.constant 0 : index
    %314 = vector.load %arg10[%c1_186, %c0_187, %c0_188] : memref<4x18x18xf32, #tpu.memory_space<vmem>>, vector<1x16x16xf32>
    %315 = vector.shape_cast %314 : vector<1x16x16xf32> to vector<16x16xf32>
    %316 = vector.broadcast %313 : f32 to vector<16x16xf32>
    %317 = arith.mulf %316, %315 : vector<16x16xf32>
    %318 = arith.addf %312, %317 : vector<16x16xf32>
    %c46 = arith.constant 46 : index
    %319 = memref.load %arg1[%c46] : memref<72xf32, #tpu.memory_space<smem>>
    %c1_189 = arith.constant 1 : index
    %c0_190 = arith.constant 0 : index
    %c1_191 = arith.constant 1 : index
    %320 = vector.load %arg10[%c1_189, %c0_190, %c1_191] : memref<4x18x18xf32, #tpu.memory_space<vmem>>, vector<1x16x16xf32>
    %321 = vector.shape_cast %320 : vector<1x16x16xf32> to vector<16x16xf32>
    %322 = vector.broadcast %319 : f32 to vector<16x16xf32>
    %323 = arith.mulf %322, %321 : vector<16x16xf32>
    %324 = arith.addf %318, %323 : vector<16x16xf32>
    %c47 = arith.constant 47 : index
    %325 = memref.load %arg1[%c47] : memref<72xf32, #tpu.memory_space<smem>>
    %c1_192 = arith.constant 1 : index
    %c0_193 = arith.constant 0 : index
    %c2_194 = arith.constant 2 : index
    %326 = vector.load %arg10[%c1_192, %c0_193, %c2_194] : memref<4x18x18xf32, #tpu.memory_space<vmem>>, vector<1x16x16xf32>
    %327 = vector.shape_cast %326 : vector<1x16x16xf32> to vector<16x16xf32>
    %328 = vector.broadcast %325 : f32 to vector<16x16xf32>
    %329 = arith.mulf %328, %327 : vector<16x16xf32>
    %330 = arith.addf %324, %329 : vector<16x16xf32>
    %c48 = arith.constant 48 : index
    %331 = memref.load %arg1[%c48] : memref<72xf32, #tpu.memory_space<smem>>
    %c1_195 = arith.constant 1 : index
    %c1_196 = arith.constant 1 : index
    %c0_197 = arith.constant 0 : index
    %332 = vector.load %arg10[%c1_195, %c1_196, %c0_197] : memref<4x18x18xf32, #tpu.memory_space<vmem>>, vector<1x16x16xf32>
    %333 = vector.shape_cast %332 : vector<1x16x16xf32> to vector<16x16xf32>
    %334 = vector.broadcast %331 : f32 to vector<16x16xf32>
    %335 = arith.mulf %334, %333 : vector<16x16xf32>
    %336 = arith.addf %330, %335 : vector<16x16xf32>
    %c49 = arith.constant 49 : index
    %337 = memref.load %arg1[%c49] : memref<72xf32, #tpu.memory_space<smem>>
    %c1_198 = arith.constant 1 : index
    %c1_199 = arith.constant 1 : index
    %c1_200 = arith.constant 1 : index
    %338 = vector.load %arg10[%c1_198, %c1_199, %c1_200] : memref<4x18x18xf32, #tpu.memory_space<vmem>>, vector<1x16x16xf32>
    %339 = vector.shape_cast %338 : vector<1x16x16xf32> to vector<16x16xf32>
    %340 = vector.broadcast %337 : f32 to vector<16x16xf32>
    %341 = arith.mulf %340, %339 : vector<16x16xf32>
    %342 = arith.addf %336, %341 : vector<16x16xf32>
    %c50 = arith.constant 50 : index
    %343 = memref.load %arg1[%c50] : memref<72xf32, #tpu.memory_space<smem>>
    %c1_201 = arith.constant 1 : index
    %c1_202 = arith.constant 1 : index
    %c2_203 = arith.constant 2 : index
    %344 = vector.load %arg10[%c1_201, %c1_202, %c2_203] : memref<4x18x18xf32, #tpu.memory_space<vmem>>, vector<1x16x16xf32>
    %345 = vector.shape_cast %344 : vector<1x16x16xf32> to vector<16x16xf32>
    %346 = vector.broadcast %343 : f32 to vector<16x16xf32>
    %347 = arith.mulf %346, %345 : vector<16x16xf32>
    %348 = arith.addf %342, %347 : vector<16x16xf32>
    %c51 = arith.constant 51 : index
    %349 = memref.load %arg1[%c51] : memref<72xf32, #tpu.memory_space<smem>>
    %c1_204 = arith.constant 1 : index
    %c2_205 = arith.constant 2 : index
    %c0_206 = arith.constant 0 : index
    %350 = vector.load %arg10[%c1_204, %c2_205, %c0_206] : memref<4x18x18xf32, #tpu.memory_space<vmem>>, vector<1x16x16xf32>
    %351 = vector.shape_cast %350 : vector<1x16x16xf32> to vector<16x16xf32>
    %352 = vector.broadcast %349 : f32 to vector<16x16xf32>
    %353 = arith.mulf %352, %351 : vector<16x16xf32>
    %354 = arith.addf %348, %353 : vector<16x16xf32>
    %c52 = arith.constant 52 : index
    %355 = memref.load %arg1[%c52] : memref<72xf32, #tpu.memory_space<smem>>
    %c1_207 = arith.constant 1 : index
    %c2_208 = arith.constant 2 : index
    %c1_209 = arith.constant 1 : index
    %356 = vector.load %arg10[%c1_207, %c2_208, %c1_209] : memref<4x18x18xf32, #tpu.memory_space<vmem>>, vector<1x16x16xf32>
    %357 = vector.shape_cast %356 : vector<1x16x16xf32> to vector<16x16xf32>
    %358 = vector.broadcast %355 : f32 to vector<16x16xf32>
    %359 = arith.mulf %358, %357 : vector<16x16xf32>
    %360 = arith.addf %354, %359 : vector<16x16xf32>
    %c53 = arith.constant 53 : index
    %361 = memref.load %arg1[%c53] : memref<72xf32, #tpu.memory_space<smem>>
    %c1_210 = arith.constant 1 : index
    %c2_211 = arith.constant 2 : index
    %c2_212 = arith.constant 2 : index
    %362 = vector.load %arg10[%c1_210, %c2_211, %c2_212] : memref<4x18x18xf32, #tpu.memory_space<vmem>>, vector<1x16x16xf32>
    %363 = vector.shape_cast %362 : vector<1x16x16xf32> to vector<16x16xf32>
    %364 = vector.broadcast %361 : f32 to vector<16x16xf32>
    %365 = arith.mulf %364, %363 : vector<16x16xf32>
    %366 = arith.addf %360, %365 : vector<16x16xf32>
    %c54 = arith.constant 54 : index
    %367 = memref.load %arg1[%c54] : memref<72xf32, #tpu.memory_space<smem>>
    %c2_213 = arith.constant 2 : index
    %c0_214 = arith.constant 0 : index
    %c0_215 = arith.constant 0 : index
    %368 = vector.load %arg10[%c2_213, %c0_214, %c0_215] : memref<4x18x18xf32, #tpu.memory_space<vmem>>, vector<1x16x16xf32>
    %369 = vector.shape_cast %368 : vector<1x16x16xf32> to vector<16x16xf32>
    %370 = vector.broadcast %367 : f32 to vector<16x16xf32>
    %371 = arith.mulf %370, %369 : vector<16x16xf32>
    %372 = arith.addf %366, %371 : vector<16x16xf32>
    %c55 = arith.constant 55 : index
    %373 = memref.load %arg1[%c55] : memref<72xf32, #tpu.memory_space<smem>>
    %c2_216 = arith.constant 2 : index
    %c0_217 = arith.constant 0 : index
    %c1_218 = arith.constant 1 : index
    %374 = vector.load %arg10[%c2_216, %c0_217, %c1_218] : memref<4x18x18xf32, #tpu.memory_space<vmem>>, vector<1x16x16xf32>
    %375 = vector.shape_cast %374 : vector<1x16x16xf32> to vector<16x16xf32>
    %376 = vector.broadcast %373 : f32 to vector<16x16xf32>
    %377 = arith.mulf %376, %375 : vector<16x16xf32>
    %378 = arith.addf %372, %377 : vector<16x16xf32>
    %c56 = arith.constant 56 : index
    %379 = memref.load %arg1[%c56] : memref<72xf32, #tpu.memory_space<smem>>
    %c2_219 = arith.constant 2 : index
    %c0_220 = arith.constant 0 : index
    %c2_221 = arith.constant 2 : index
    %380 = vector.load %arg10[%c2_219, %c0_220, %c2_221] : memref<4x18x18xf32, #tpu.memory_space<vmem>>, vector<1x16x16xf32>
    %381 = vector.shape_cast %380 : vector<1x16x16xf32> to vector<16x16xf32>
    %382 = vector.broadcast %379 : f32 to vector<16x16xf32>
    %383 = arith.mulf %382, %381 : vector<16x16xf32>
    %384 = arith.addf %378, %383 : vector<16x16xf32>
    %c57 = arith.constant 57 : index
    %385 = memref.load %arg1[%c57] : memref<72xf32, #tpu.memory_space<smem>>
    %c2_222 = arith.constant 2 : index
    %c1_223 = arith.constant 1 : index
    %c0_224 = arith.constant 0 : index
    %386 = vector.load %arg10[%c2_222, %c1_223, %c0_224] : memref<4x18x18xf32, #tpu.memory_space<vmem>>, vector<1x16x16xf32>
    %387 = vector.shape_cast %386 : vector<1x16x16xf32> to vector<16x16xf32>
    %388 = vector.broadcast %385 : f32 to vector<16x16xf32>
    %389 = arith.mulf %388, %387 : vector<16x16xf32>
    %390 = arith.addf %384, %389 : vector<16x16xf32>
    %c58 = arith.constant 58 : index
    %391 = memref.load %arg1[%c58] : memref<72xf32, #tpu.memory_space<smem>>
    %c2_225 = arith.constant 2 : index
    %c1_226 = arith.constant 1 : index
    %c1_227 = arith.constant 1 : index
    %392 = vector.load %arg10[%c2_225, %c1_226, %c1_227] : memref<4x18x18xf32, #tpu.memory_space<vmem>>, vector<1x16x16xf32>
    %393 = vector.shape_cast %392 : vector<1x16x16xf32> to vector<16x16xf32>
    %394 = vector.broadcast %391 : f32 to vector<16x16xf32>
    %395 = arith.mulf %394, %393 : vector<16x16xf32>
    %396 = arith.addf %390, %395 : vector<16x16xf32>
    %c59 = arith.constant 59 : index
    %397 = memref.load %arg1[%c59] : memref<72xf32, #tpu.memory_space<smem>>
    %c2_228 = arith.constant 2 : index
    %c1_229 = arith.constant 1 : index
    %c2_230 = arith.constant 2 : index
    %398 = vector.load %arg10[%c2_228, %c1_229, %c2_230] : memref<4x18x18xf32, #tpu.memory_space<vmem>>, vector<1x16x16xf32>
    %399 = vector.shape_cast %398 : vector<1x16x16xf32> to vector<16x16xf32>
    %400 = vector.broadcast %397 : f32 to vector<16x16xf32>
    %401 = arith.mulf %400, %399 : vector<16x16xf32>
    %402 = arith.addf %396, %401 : vector<16x16xf32>
    %c60 = arith.constant 60 : index
    %403 = memref.load %arg1[%c60] : memref<72xf32, #tpu.memory_space<smem>>
    %c2_231 = arith.constant 2 : index
    %c2_232 = arith.constant 2 : index
    %c0_233 = arith.constant 0 : index
    %404 = vector.load %arg10[%c2_231, %c2_232, %c0_233] : memref<4x18x18xf32, #tpu.memory_space<vmem>>, vector<1x16x16xf32>
    %405 = vector.shape_cast %404 : vector<1x16x16xf32> to vector<16x16xf32>
    %406 = vector.broadcast %403 : f32 to vector<16x16xf32>
    %407 = arith.mulf %406, %405 : vector<16x16xf32>
    %408 = arith.addf %402, %407 : vector<16x16xf32>
    %c61 = arith.constant 61 : index
    %409 = memref.load %arg1[%c61] : memref<72xf32, #tpu.memory_space<smem>>
    %c2_234 = arith.constant 2 : index
    %c2_235 = arith.constant 2 : index
    %c1_236 = arith.constant 1 : index
    %410 = vector.load %arg10[%c2_234, %c2_235, %c1_236] : memref<4x18x18xf32, #tpu.memory_space<vmem>>, vector<1x16x16xf32>
    %411 = vector.shape_cast %410 : vector<1x16x16xf32> to vector<16x16xf32>
    %412 = vector.broadcast %409 : f32 to vector<16x16xf32>
    %413 = arith.mulf %412, %411 : vector<16x16xf32>
    %414 = arith.addf %408, %413 : vector<16x16xf32>
    %c62 = arith.constant 62 : index
    %415 = memref.load %arg1[%c62] : memref<72xf32, #tpu.memory_space<smem>>
    %c2_237 = arith.constant 2 : index
    %c2_238 = arith.constant 2 : index
    %c2_239 = arith.constant 2 : index
    %416 = vector.load %arg10[%c2_237, %c2_238, %c2_239] : memref<4x18x18xf32, #tpu.memory_space<vmem>>, vector<1x16x16xf32>
    %417 = vector.shape_cast %416 : vector<1x16x16xf32> to vector<16x16xf32>
    %418 = vector.broadcast %415 : f32 to vector<16x16xf32>
    %419 = arith.mulf %418, %417 : vector<16x16xf32>
    %420 = arith.addf %414, %419 : vector<16x16xf32>
    %c63 = arith.constant 63 : index
    %421 = memref.load %arg1[%c63] : memref<72xf32, #tpu.memory_space<smem>>
    %c3_240 = arith.constant 3 : index
    %c0_241 = arith.constant 0 : index
    %c0_242 = arith.constant 0 : index
    %422 = vector.load %arg10[%c3_240, %c0_241, %c0_242] : memref<4x18x18xf32, #tpu.memory_space<vmem>>, vector<1x16x16xf32>
    %423 = vector.shape_cast %422 : vector<1x16x16xf32> to vector<16x16xf32>
    %424 = vector.broadcast %421 : f32 to vector<16x16xf32>
    %425 = arith.mulf %424, %423 : vector<16x16xf32>
    %426 = arith.addf %420, %425 : vector<16x16xf32>
    %c64 = arith.constant 64 : index
    %427 = memref.load %arg1[%c64] : memref<72xf32, #tpu.memory_space<smem>>
    %c3_243 = arith.constant 3 : index
    %c0_244 = arith.constant 0 : index
    %c1_245 = arith.constant 1 : index
    %428 = vector.load %arg10[%c3_243, %c0_244, %c1_245] : memref<4x18x18xf32, #tpu.memory_space<vmem>>, vector<1x16x16xf32>
    %429 = vector.shape_cast %428 : vector<1x16x16xf32> to vector<16x16xf32>
    %430 = vector.broadcast %427 : f32 to vector<16x16xf32>
    %431 = arith.mulf %430, %429 : vector<16x16xf32>
    %432 = arith.addf %426, %431 : vector<16x16xf32>
    %c65 = arith.constant 65 : index
    %433 = memref.load %arg1[%c65] : memref<72xf32, #tpu.memory_space<smem>>
    %c3_246 = arith.constant 3 : index
    %c0_247 = arith.constant 0 : index
    %c2_248 = arith.constant 2 : index
    %434 = vector.load %arg10[%c3_246, %c0_247, %c2_248] : memref<4x18x18xf32, #tpu.memory_space<vmem>>, vector<1x16x16xf32>
    %435 = vector.shape_cast %434 : vector<1x16x16xf32> to vector<16x16xf32>
    %436 = vector.broadcast %433 : f32 to vector<16x16xf32>
    %437 = arith.mulf %436, %435 : vector<16x16xf32>
    %438 = arith.addf %432, %437 : vector<16x16xf32>
    %c66 = arith.constant 66 : index
    %439 = memref.load %arg1[%c66] : memref<72xf32, #tpu.memory_space<smem>>
    %c3_249 = arith.constant 3 : index
    %c1_250 = arith.constant 1 : index
    %c0_251 = arith.constant 0 : index
    %440 = vector.load %arg10[%c3_249, %c1_250, %c0_251] : memref<4x18x18xf32, #tpu.memory_space<vmem>>, vector<1x16x16xf32>
    %441 = vector.shape_cast %440 : vector<1x16x16xf32> to vector<16x16xf32>
    %442 = vector.broadcast %439 : f32 to vector<16x16xf32>
    %443 = arith.mulf %442, %441 : vector<16x16xf32>
    %444 = arith.addf %438, %443 : vector<16x16xf32>
    %c67 = arith.constant 67 : index
    %445 = memref.load %arg1[%c67] : memref<72xf32, #tpu.memory_space<smem>>
    %c3_252 = arith.constant 3 : index
    %c1_253 = arith.constant 1 : index
    %c1_254 = arith.constant 1 : index
    %446 = vector.load %arg10[%c3_252, %c1_253, %c1_254] : memref<4x18x18xf32, #tpu.memory_space<vmem>>, vector<1x16x16xf32>
    %447 = vector.shape_cast %446 : vector<1x16x16xf32> to vector<16x16xf32>
    %448 = vector.broadcast %445 : f32 to vector<16x16xf32>
    %449 = arith.mulf %448, %447 : vector<16x16xf32>
    %450 = arith.addf %444, %449 : vector<16x16xf32>
    %c68 = arith.constant 68 : index
    %451 = memref.load %arg1[%c68] : memref<72xf32, #tpu.memory_space<smem>>
    %c3_255 = arith.constant 3 : index
    %c1_256 = arith.constant 1 : index
    %c2_257 = arith.constant 2 : index
    %452 = vector.load %arg10[%c3_255, %c1_256, %c2_257] : memref<4x18x18xf32, #tpu.memory_space<vmem>>, vector<1x16x16xf32>
    %453 = vector.shape_cast %452 : vector<1x16x16xf32> to vector<16x16xf32>
    %454 = vector.broadcast %451 : f32 to vector<16x16xf32>
    %455 = arith.mulf %454, %453 : vector<16x16xf32>
    %456 = arith.addf %450, %455 : vector<16x16xf32>
    %c69 = arith.constant 69 : index
    %457 = memref.load %arg1[%c69] : memref<72xf32, #tpu.memory_space<smem>>
    %c3_258 = arith.constant 3 : index
    %c2_259 = arith.constant 2 : index
    %c0_260 = arith.constant 0 : index
    %458 = vector.load %arg10[%c3_258, %c2_259, %c0_260] : memref<4x18x18xf32, #tpu.memory_space<vmem>>, vector<1x16x16xf32>
    %459 = vector.shape_cast %458 : vector<1x16x16xf32> to vector<16x16xf32>
    %460 = vector.broadcast %457 : f32 to vector<16x16xf32>
    %461 = arith.mulf %460, %459 : vector<16x16xf32>
    %462 = arith.addf %456, %461 : vector<16x16xf32>
    %c70 = arith.constant 70 : index
    %463 = memref.load %arg1[%c70] : memref<72xf32, #tpu.memory_space<smem>>
    %c3_261 = arith.constant 3 : index
    %c2_262 = arith.constant 2 : index
    %c1_263 = arith.constant 1 : index
    %464 = vector.load %arg10[%c3_261, %c2_262, %c1_263] : memref<4x18x18xf32, #tpu.memory_space<vmem>>, vector<1x16x16xf32>
    %465 = vector.shape_cast %464 : vector<1x16x16xf32> to vector<16x16xf32>
    %466 = vector.broadcast %463 : f32 to vector<16x16xf32>
    %467 = arith.mulf %466, %465 : vector<16x16xf32>
    %468 = arith.addf %462, %467 : vector<16x16xf32>
    %c71 = arith.constant 71 : index
    %469 = memref.load %arg1[%c71] : memref<72xf32, #tpu.memory_space<smem>>
    %c3_264 = arith.constant 3 : index
    %c2_265 = arith.constant 2 : index
    %c2_266 = arith.constant 2 : index
    %470 = vector.load %arg10[%c3_264, %c2_265, %c2_266] : memref<4x18x18xf32, #tpu.memory_space<vmem>>, vector<1x16x16xf32>
    %471 = vector.shape_cast %470 : vector<1x16x16xf32> to vector<16x16xf32>
    %472 = vector.broadcast %469 : f32 to vector<16x16xf32>
    %473 = arith.mulf %472, %471 : vector<16x16xf32>
    %474 = arith.addf %468, %473 : vector<16x16xf32>
    %cst_267 = arith.constant 0.000000e+00 : f32
    %475 = vector.broadcast %cst_267 : f32 to vector<16x16xf32>
    %476 = arith.maximumf %474, %475 : vector<16x16xf32>
    %c1_268 = arith.constant 1 : index
    %c1_269 = arith.constant 1 : index
    %c1_270 = arith.constant 1 : index
    %477 = vector.load %arg11[%c1_268, %c1_269, %c1_270] : memref<2x18x18xf32, #tpu.memory_space<vmem>>, vector<1x16x16xf32>
    %478 = vector.shape_cast %477 : vector<1x16x16xf32> to vector<16x16xf32>
    %479 = vector.shape_cast %476 : vector<16x16xf32> to vector<1x16x16xf32>
    tpu.vector_store %arg11[%c1_268, %c1_269, %c1_270], %479 {strides = array<i32>} : memref<2x18x18xf32, #tpu.memory_space<vmem>>, vector<1x16x16xf32>,
    %cst_271 = arith.constant 0.000000e+00 : f32
    %480 = vector.broadcast %cst_271 : f32 to vector<16x16xf32>
    %c0_272 = arith.constant 0 : index
    %481 = memref.load %arg4[%c0_272] : memref<4xf32, #tpu.memory_space<smem>>
    %482 = vector.broadcast %481 : f32 to vector<16x16xf32>
    %483 = arith.addf %480, %482 : vector<16x16xf32>
    %c0_273 = arith.constant 0 : index
    %484 = memref.load %arg3[%c0_273] : memref<72xf32, #tpu.memory_space<smem>>
    %c0_274 = arith.constant 0 : index
    %c0_275 = arith.constant 0 : index
    %c0_276 = arith.constant 0 : index
    %485 = vector.load %arg11[%c0_274, %c0_275, %c0_276] : memref<2x18x18xf32, #tpu.memory_space<vmem>>, vector<1x16x16xf32>
    %486 = vector.shape_cast %485 : vector<1x16x16xf32> to vector<16x16xf32>
    %487 = vector.broadcast %484 : f32 to vector<16x16xf32>
    %488 = arith.mulf %487, %486 : vector<16x16xf32>
    %489 = arith.addf %483, %488 : vector<16x16xf32>
    %c1_277 = arith.constant 1 : index
    %490 = memref.load %arg3[%c1_277] : memref<72xf32, #tpu.memory_space<smem>>
    %c0_278 = arith.constant 0 : index
    %c0_279 = arith.constant 0 : index
    %c1_280 = arith.constant 1 : index
    %491 = vector.load %arg11[%c0_278, %c0_279, %c1_280] : memref<2x18x18xf32, #tpu.memory_space<vmem>>, vector<1x16x16xf32>
    %492 = vector.shape_cast %491 : vector<1x16x16xf32> to vector<16x16xf32>
    %493 = vector.broadcast %490 : f32 to vector<16x16xf32>
    %494 = arith.mulf %493, %492 : vector<16x16xf32>
    %495 = arith.addf %489, %494 : vector<16x16xf32>
    %c2_281 = arith.constant 2 : index
    %496 = memref.load %arg3[%c2_281] : memref<72xf32, #tpu.memory_space<smem>>
    %c0_282 = arith.constant 0 : index
    %c0_283 = arith.constant 0 : index
    %c2_284 = arith.constant 2 : index
    %497 = vector.load %arg11[%c0_282, %c0_283, %c2_284] : memref<2x18x18xf32, #tpu.memory_space<vmem>>, vector<1x16x16xf32>
    %498 = vector.shape_cast %497 : vector<1x16x16xf32> to vector<16x16xf32>
    %499 = vector.broadcast %496 : f32 to vector<16x16xf32>
    %500 = arith.mulf %499, %498 : vector<16x16xf32>
    %501 = arith.addf %495, %500 : vector<16x16xf32>
    %c3_285 = arith.constant 3 : index
    %502 = memref.load %arg3[%c3_285] : memref<72xf32, #tpu.memory_space<smem>>
    %c0_286 = arith.constant 0 : index
    %c1_287 = arith.constant 1 : index
    %c0_288 = arith.constant 0 : index
    %503 = vector.load %arg11[%c0_286, %c1_287, %c0_288] : memref<2x18x18xf32, #tpu.memory_space<vmem>>, vector<1x16x16xf32>
    %504 = vector.shape_cast %503 : vector<1x16x16xf32> to vector<16x16xf32>
    %505 = vector.broadcast %502 : f32 to vector<16x16xf32>
    %506 = arith.mulf %505, %504 : vector<16x16xf32>
    %507 = arith.addf %501, %506 : vector<16x16xf32>
    %c4_289 = arith.constant 4 : index
    %508 = memref.load %arg3[%c4_289] : memref<72xf32, #tpu.memory_space<smem>>
    %c0_290 = arith.constant 0 : index
    %c1_291 = arith.constant 1 : index
    %c1_292 = arith.constant 1 : index
    %509 = vector.load %arg11[%c0_290, %c1_291, %c1_292] : memref<2x18x18xf32, #tpu.memory_space<vmem>>, vector<1x16x16xf32>
    %510 = vector.shape_cast %509 : vector<1x16x16xf32> to vector<16x16xf32>
    %511 = vector.broadcast %508 : f32 to vector<16x16xf32>
    %512 = arith.mulf %511, %510 : vector<16x16xf32>
    %513 = arith.addf %507, %512 : vector<16x16xf32>
    %c5_293 = arith.constant 5 : index
    %514 = memref.load %arg3[%c5_293] : memref<72xf32, #tpu.memory_space<smem>>
    %c0_294 = arith.constant 0 : index
    %c1_295 = arith.constant 1 : index
    %c2_296 = arith.constant 2 : index
    %515 = vector.load %arg11[%c0_294, %c1_295, %c2_296] : memref<2x18x18xf32, #tpu.memory_space<vmem>>, vector<1x16x16xf32>
    %516 = vector.shape_cast %515 : vector<1x16x16xf32> to vector<16x16xf32>
    %517 = vector.broadcast %514 : f32 to vector<16x16xf32>
    %518 = arith.mulf %517, %516 : vector<16x16xf32>
    %519 = arith.addf %513, %518 : vector<16x16xf32>
    %c6_297 = arith.constant 6 : index
    %520 = memref.load %arg3[%c6_297] : memref<72xf32, #tpu.memory_space<smem>>
    %c0_298 = arith.constant 0 : index
    %c2_299 = arith.constant 2 : index
    %c0_300 = arith.constant 0 : index
    %521 = vector.load %arg11[%c0_298, %c2_299, %c0_300] : memref<2x18x18xf32, #tpu.memory_space<vmem>>, vector<1x16x16xf32>
    %522 = vector.shape_cast %521 : vector<1x16x16xf32> to vector<16x16xf32>
    %523 = vector.broadcast %520 : f32 to vector<16x16xf32>
    %524 = arith.mulf %523, %522 : vector<16x16xf32>
    %525 = arith.addf %519, %524 : vector<16x16xf32>
    %c7_301 = arith.constant 7 : index
    %526 = memref.load %arg3[%c7_301] : memref<72xf32, #tpu.memory_space<smem>>
    %c0_302 = arith.constant 0 : index
    %c2_303 = arith.constant 2 : index
    %c1_304 = arith.constant 1 : index
    %527 = vector.load %arg11[%c0_302, %c2_303, %c1_304] : memref<2x18x18xf32, #tpu.memory_space<vmem>>, vector<1x16x16xf32>
    %528 = vector.shape_cast %527 : vector<1x16x16xf32> to vector<16x16xf32>
    %529 = vector.broadcast %526 : f32 to vector<16x16xf32>
    %530 = arith.mulf %529, %528 : vector<16x16xf32>
    %531 = arith.addf %525, %530 : vector<16x16xf32>
    %c8_305 = arith.constant 8 : index
    %532 = memref.load %arg3[%c8_305] : memref<72xf32, #tpu.memory_space<smem>>
    %c0_306 = arith.constant 0 : index
    %c2_307 = arith.constant 2 : index
    %c2_308 = arith.constant 2 : index
    %533 = vector.load %arg11[%c0_306, %c2_307, %c2_308] : memref<2x18x18xf32, #tpu.memory_space<vmem>>, vector<1x16x16xf32>
    %534 = vector.shape_cast %533 : vector<1x16x16xf32> to vector<16x16xf32>
    %535 = vector.broadcast %532 : f32 to vector<16x16xf32>
    %536 = arith.mulf %535, %534 : vector<16x16xf32>
    %537 = arith.addf %531, %536 : vector<16x16xf32>
    %c9_309 = arith.constant 9 : index
    %538 = memref.load %arg3[%c9_309] : memref<72xf32, #tpu.memory_space<smem>>
    %c1_310 = arith.constant 1 : index
    %c0_311 = arith.constant 0 : index
    %c0_312 = arith.constant 0 : index
    %539 = vector.load %arg11[%c1_310, %c0_311, %c0_312] : memref<2x18x18xf32, #tpu.memory_space<vmem>>, vector<1x16x16xf32>
    %540 = vector.shape_cast %539 : vector<1x16x16xf32> to vector<16x16xf32>
    %541 = vector.broadcast %538 : f32 to vector<16x16xf32>
    %542 = arith.mulf %541, %540 : vector<16x16xf32>
    %543 = arith.addf %537, %542 : vector<16x16xf32>
    %c10_313 = arith.constant 10 : index
    %544 = memref.load %arg3[%c10_313] : memref<72xf32, #tpu.memory_space<smem>>
    %c1_314 = arith.constant 1 : index
    %c0_315 = arith.constant 0 : index
    %c1_316 = arith.constant 1 : index
    %545 = vector.load %arg11[%c1_314, %c0_315, %c1_316] : memref<2x18x18xf32, #tpu.memory_space<vmem>>, vector<1x16x16xf32>
    %546 = vector.shape_cast %545 : vector<1x16x16xf32> to vector<16x16xf32>
    %547 = vector.broadcast %544 : f32 to vector<16x16xf32>
    %548 = arith.mulf %547, %546 : vector<16x16xf32>
    %549 = arith.addf %543, %548 : vector<16x16xf32>
    %c11_317 = arith.constant 11 : index
    %550 = memref.load %arg3[%c11_317] : memref<72xf32, #tpu.memory_space<smem>>
    %c1_318 = arith.constant 1 : index
    %c0_319 = arith.constant 0 : index
    %c2_320 = arith.constant 2 : index
    %551 = vector.load %arg11[%c1_318, %c0_319, %c2_320] : memref<2x18x18xf32, #tpu.memory_space<vmem>>, vector<1x16x16xf32>
    %552 = vector.shape_cast %551 : vector<1x16x16xf32> to vector<16x16xf32>
    %553 = vector.broadcast %550 : f32 to vector<16x16xf32>
    %554 = arith.mulf %553, %552 : vector<16x16xf32>
    %555 = arith.addf %549, %554 : vector<16x16xf32>
    %c12_321 = arith.constant 12 : index
    %556 = memref.load %arg3[%c12_321] : memref<72xf32, #tpu.memory_space<smem>>
    %c1_322 = arith.constant 1 : index
    %c1_323 = arith.constant 1 : index
    %c0_324 = arith.constant 0 : index
    %557 = vector.load %arg11[%c1_322, %c1_323, %c0_324] : memref<2x18x18xf32, #tpu.memory_space<vmem>>, vector<1x16x16xf32>
    %558 = vector.shape_cast %557 : vector<1x16x16xf32> to vector<16x16xf32>
    %559 = vector.broadcast %556 : f32 to vector<16x16xf32>
    %560 = arith.mulf %559, %558 : vector<16x16xf32>
    %561 = arith.addf %555, %560 : vector<16x16xf32>
    %c13_325 = arith.constant 13 : index
    %562 = memref.load %arg3[%c13_325] : memref<72xf32, #tpu.memory_space<smem>>
    %c1_326 = arith.constant 1 : index
    %c1_327 = arith.constant 1 : index
    %c1_328 = arith.constant 1 : index
    %563 = vector.load %arg11[%c1_326, %c1_327, %c1_328] : memref<2x18x18xf32, #tpu.memory_space<vmem>>, vector<1x16x16xf32>
    %564 = vector.shape_cast %563 : vector<1x16x16xf32> to vector<16x16xf32>
    %565 = vector.broadcast %562 : f32 to vector<16x16xf32>
    %566 = arith.mulf %565, %564 : vector<16x16xf32>
    %567 = arith.addf %561, %566 : vector<16x16xf32>
    %c14_329 = arith.constant 14 : index
    %568 = memref.load %arg3[%c14_329] : memref<72xf32, #tpu.memory_space<smem>>
    %c1_330 = arith.constant 1 : index
    %c1_331 = arith.constant 1 : index
    %c2_332 = arith.constant 2 : index
    %569 = vector.load %arg11[%c1_330, %c1_331, %c2_332] : memref<2x18x18xf32, #tpu.memory_space<vmem>>, vector<1x16x16xf32>
    %570 = vector.shape_cast %569 : vector<1x16x16xf32> to vector<16x16xf32>
    %571 = vector.broadcast %568 : f32 to vector<16x16xf32>
    %572 = arith.mulf %571, %570 : vector<16x16xf32>
    %573 = arith.addf %567, %572 : vector<16x16xf32>
    %c15_333 = arith.constant 15 : index
    %574 = memref.load %arg3[%c15_333] : memref<72xf32, #tpu.memory_space<smem>>
    %c1_334 = arith.constant 1 : index
    %c2_335 = arith.constant 2 : index
    %c0_336 = arith.constant 0 : index
    %575 = vector.load %arg11[%c1_334, %c2_335, %c0_336] : memref<2x18x18xf32, #tpu.memory_space<vmem>>, vector<1x16x16xf32>
    %576 = vector.shape_cast %575 : vector<1x16x16xf32> to vector<16x16xf32>
    %577 = vector.broadcast %574 : f32 to vector<16x16xf32>
    %578 = arith.mulf %577, %576 : vector<16x16xf32>
    %579 = arith.addf %573, %578 : vector<16x16xf32>
    %c16_337 = arith.constant 16 : index
    %580 = memref.load %arg3[%c16_337] : memref<72xf32, #tpu.memory_space<smem>>
    %c1_338 = arith.constant 1 : index
    %c2_339 = arith.constant 2 : index
    %c1_340 = arith.constant 1 : index
    %581 = vector.load %arg11[%c1_338, %c2_339, %c1_340] : memref<2x18x18xf32, #tpu.memory_space<vmem>>, vector<1x16x16xf32>
    %582 = vector.shape_cast %581 : vector<1x16x16xf32> to vector<16x16xf32>
    %583 = vector.broadcast %580 : f32 to vector<16x16xf32>
    %584 = arith.mulf %583, %582 : vector<16x16xf32>
    %585 = arith.addf %579, %584 : vector<16x16xf32>
    %c17_341 = arith.constant 17 : index
    %586 = memref.load %arg3[%c17_341] : memref<72xf32, #tpu.memory_space<smem>>
    %c1_342 = arith.constant 1 : index
    %c2_343 = arith.constant 2 : index
    %c2_344 = arith.constant 2 : index
    %587 = vector.load %arg11[%c1_342, %c2_343, %c2_344] : memref<2x18x18xf32, #tpu.memory_space<vmem>>, vector<1x16x16xf32>
    %588 = vector.shape_cast %587 : vector<1x16x16xf32> to vector<16x16xf32>
    %589 = vector.broadcast %586 : f32 to vector<16x16xf32>
    %590 = arith.mulf %589, %588 : vector<16x16xf32>
    %591 = arith.addf %585, %590 : vector<16x16xf32>
    %cst_345 = arith.constant 0.000000e+00 : f32
    %592 = vector.broadcast %cst_345 : f32 to vector<16x16xf32>
    %593 = arith.maximumf %591, %592 : vector<16x16xf32>
    %c0_346 = arith.constant 0 : index
    %c0_347 = arith.constant 0 : index
    %c0_348 = arith.constant 0 : index
    %c0_349 = arith.constant 0 : index
    %594 = vector.load %arg9[%c0_346, %c0_347, %c0_348, %c0_349] : memref<1x4x16x16xf32, #tpu.memory_space<vmem>>, vector<1x1x16x16xf32>
    %595 = vector.shape_cast %594 : vector<1x1x16x16xf32> to vector<16x16xf32>
    %596 = vector.shape_cast %593 : vector<16x16xf32> to vector<1x1x16x16xf32>
    tpu.vector_store %arg9[%c0_346, %c0_347, %c0_348, %c0_349], %596 {strides = array<i32>} : memref<1x4x16x16xf32, #tpu.memory_space<vmem>>, vector<1x1x16x16xf32>,
    %cst_350 = arith.constant 0.000000e+00 : f32
    %597 = vector.broadcast %cst_350 : f32 to vector<16x16xf32>
    %c1_351 = arith.constant 1 : index
    %598 = memref.load %arg4[%c1_351] : memref<4xf32, #tpu.memory_space<smem>>
    %599 = vector.broadcast %598 : f32 to vector<16x16xf32>
    %600 = arith.addf %597, %599 : vector<16x16xf32>
    %c18_352 = arith.constant 18 : index
    %601 = memref.load %arg3[%c18_352] : memref<72xf32, #tpu.memory_space<smem>>
    %c0_353 = arith.constant 0 : index
    %c0_354 = arith.constant 0 : index
    %c0_355 = arith.constant 0 : index
    %602 = vector.load %arg11[%c0_353, %c0_354, %c0_355] : memref<2x18x18xf32, #tpu.memory_space<vmem>>, vector<1x16x16xf32>
    %603 = vector.shape_cast %602 : vector<1x16x16xf32> to vector<16x16xf32>
    %604 = vector.broadcast %601 : f32 to vector<16x16xf32>
    %605 = arith.mulf %604, %603 : vector<16x16xf32>
    %606 = arith.addf %600, %605 : vector<16x16xf32>
    %c19_356 = arith.constant 19 : index
    %607 = memref.load %arg3[%c19_356] : memref<72xf32, #tpu.memory_space<smem>>
    %c0_357 = arith.constant 0 : index
    %c0_358 = arith.constant 0 : index
    %c1_359 = arith.constant 1 : index
    %608 = vector.load %arg11[%c0_357, %c0_358, %c1_359] : memref<2x18x18xf32, #tpu.memory_space<vmem>>, vector<1x16x16xf32>
    %609 = vector.shape_cast %608 : vector<1x16x16xf32> to vector<16x16xf32>
    %610 = vector.broadcast %607 : f32 to vector<16x16xf32>
    %611 = arith.mulf %610, %609 : vector<16x16xf32>
    %612 = arith.addf %606, %611 : vector<16x16xf32>
    %c20_360 = arith.constant 20 : index
    %613 = memref.load %arg3[%c20_360] : memref<72xf32, #tpu.memory_space<smem>>
    %c0_361 = arith.constant 0 : index
    %c0_362 = arith.constant 0 : index
    %c2_363 = arith.constant 2 : index
    %614 = vector.load %arg11[%c0_361, %c0_362, %c2_363] : memref<2x18x18xf32, #tpu.memory_space<vmem>>, vector<1x16x16xf32>
    %615 = vector.shape_cast %614 : vector<1x16x16xf32> to vector<16x16xf32>
    %616 = vector.broadcast %613 : f32 to vector<16x16xf32>
    %617 = arith.mulf %616, %615 : vector<16x16xf32>
    %618 = arith.addf %612, %617 : vector<16x16xf32>
    %c21_364 = arith.constant 21 : index
    %619 = memref.load %arg3[%c21_364] : memref<72xf32, #tpu.memory_space<smem>>
    %c0_365 = arith.constant 0 : index
    %c1_366 = arith.constant 1 : index
    %c0_367 = arith.constant 0 : index
    %620 = vector.load %arg11[%c0_365, %c1_366, %c0_367] : memref<2x18x18xf32, #tpu.memory_space<vmem>>, vector<1x16x16xf32>
    %621 = vector.shape_cast %620 : vector<1x16x16xf32> to vector<16x16xf32>
    %622 = vector.broadcast %619 : f32 to vector<16x16xf32>
    %623 = arith.mulf %622, %621 : vector<16x16xf32>
    %624 = arith.addf %618, %623 : vector<16x16xf32>
    %c22_368 = arith.constant 22 : index
    %625 = memref.load %arg3[%c22_368] : memref<72xf32, #tpu.memory_space<smem>>
    %c0_369 = arith.constant 0 : index
    %c1_370 = arith.constant 1 : index
    %c1_371 = arith.constant 1 : index
    %626 = vector.load %arg11[%c0_369, %c1_370, %c1_371] : memref<2x18x18xf32, #tpu.memory_space<vmem>>, vector<1x16x16xf32>
    %627 = vector.shape_cast %626 : vector<1x16x16xf32> to vector<16x16xf32>
    %628 = vector.broadcast %625 : f32 to vector<16x16xf32>
    %629 = arith.mulf %628, %627 : vector<16x16xf32>
    %630 = arith.addf %624, %629 : vector<16x16xf32>
    %c23_372 = arith.constant 23 : index
    %631 = memref.load %arg3[%c23_372] : memref<72xf32, #tpu.memory_space<smem>>
    %c0_373 = arith.constant 0 : index
    %c1_374 = arith.constant 1 : index
    %c2_375 = arith.constant 2 : index
    %632 = vector.load %arg11[%c0_373, %c1_374, %c2_375] : memref<2x18x18xf32, #tpu.memory_space<vmem>>, vector<1x16x16xf32>
    %633 = vector.shape_cast %632 : vector<1x16x16xf32> to vector<16x16xf32>
    %634 = vector.broadcast %631 : f32 to vector<16x16xf32>
    %635 = arith.mulf %634, %633 : vector<16x16xf32>
    %636 = arith.addf %630, %635 : vector<16x16xf32>
    %c24_376 = arith.constant 24 : index
    %637 = memref.load %arg3[%c24_376] : memref<72xf32, #tpu.memory_space<smem>>
    %c0_377 = arith.constant 0 : index
    %c2_378 = arith.constant 2 : index
    %c0_379 = arith.constant 0 : index
    %638 = vector.load %arg11[%c0_377, %c2_378, %c0_379] : memref<2x18x18xf32, #tpu.memory_space<vmem>>, vector<1x16x16xf32>
    %639 = vector.shape_cast %638 : vector<1x16x16xf32> to vector<16x16xf32>
    %640 = vector.broadcast %637 : f32 to vector<16x16xf32>
    %641 = arith.mulf %640, %639 : vector<16x16xf32>
    %642 = arith.addf %636, %641 : vector<16x16xf32>
    %c25_380 = arith.constant 25 : index
    %643 = memref.load %arg3[%c25_380] : memref<72xf32, #tpu.memory_space<smem>>
    %c0_381 = arith.constant 0 : index
    %c2_382 = arith.constant 2 : index
    %c1_383 = arith.constant 1 : index
    %644 = vector.load %arg11[%c0_381, %c2_382, %c1_383] : memref<2x18x18xf32, #tpu.memory_space<vmem>>, vector<1x16x16xf32>
    %645 = vector.shape_cast %644 : vector<1x16x16xf32> to vector<16x16xf32>
    %646 = vector.broadcast %643 : f32 to vector<16x16xf32>
    %647 = arith.mulf %646, %645 : vector<16x16xf32>
    %648 = arith.addf %642, %647 : vector<16x16xf32>
    %c26_384 = arith.constant 26 : index
    %649 = memref.load %arg3[%c26_384] : memref<72xf32, #tpu.memory_space<smem>>
    %c0_385 = arith.constant 0 : index
    %c2_386 = arith.constant 2 : index
    %c2_387 = arith.constant 2 : index
    %650 = vector.load %arg11[%c0_385, %c2_386, %c2_387] : memref<2x18x18xf32, #tpu.memory_space<vmem>>, vector<1x16x16xf32>
    %651 = vector.shape_cast %650 : vector<1x16x16xf32> to vector<16x16xf32>
    %652 = vector.broadcast %649 : f32 to vector<16x16xf32>
    %653 = arith.mulf %652, %651 : vector<16x16xf32>
    %654 = arith.addf %648, %653 : vector<16x16xf32>
    %c27_388 = arith.constant 27 : index
    %655 = memref.load %arg3[%c27_388] : memref<72xf32, #tpu.memory_space<smem>>
    %c1_389 = arith.constant 1 : index
    %c0_390 = arith.constant 0 : index
    %c0_391 = arith.constant 0 : index
    %656 = vector.load %arg11[%c1_389, %c0_390, %c0_391] : memref<2x18x18xf32, #tpu.memory_space<vmem>>, vector<1x16x16xf32>
    %657 = vector.shape_cast %656 : vector<1x16x16xf32> to vector<16x16xf32>
    %658 = vector.broadcast %655 : f32 to vector<16x16xf32>
    %659 = arith.mulf %658, %657 : vector<16x16xf32>
    %660 = arith.addf %654, %659 : vector<16x16xf32>
    %c28_392 = arith.constant 28 : index
    %661 = memref.load %arg3[%c28_392] : memref<72xf32, #tpu.memory_space<smem>>
    %c1_393 = arith.constant 1 : index
    %c0_394 = arith.constant 0 : index
    %c1_395 = arith.constant 1 : index
    %662 = vector.load %arg11[%c1_393, %c0_394, %c1_395] : memref<2x18x18xf32, #tpu.memory_space<vmem>>, vector<1x16x16xf32>
    %663 = vector.shape_cast %662 : vector<1x16x16xf32> to vector<16x16xf32>
    %664 = vector.broadcast %661 : f32 to vector<16x16xf32>
    %665 = arith.mulf %664, %663 : vector<16x16xf32>
    %666 = arith.addf %660, %665 : vector<16x16xf32>
    %c29_396 = arith.constant 29 : index
    %667 = memref.load %arg3[%c29_396] : memref<72xf32, #tpu.memory_space<smem>>
    %c1_397 = arith.constant 1 : index
    %c0_398 = arith.constant 0 : index
    %c2_399 = arith.constant 2 : index
    %668 = vector.load %arg11[%c1_397, %c0_398, %c2_399] : memref<2x18x18xf32, #tpu.memory_space<vmem>>, vector<1x16x16xf32>
    %669 = vector.shape_cast %668 : vector<1x16x16xf32> to vector<16x16xf32>
    %670 = vector.broadcast %667 : f32 to vector<16x16xf32>
    %671 = arith.mulf %670, %669 : vector<16x16xf32>
    %672 = arith.addf %666, %671 : vector<16x16xf32>
    %c30_400 = arith.constant 30 : index
    %673 = memref.load %arg3[%c30_400] : memref<72xf32, #tpu.memory_space<smem>>
    %c1_401 = arith.constant 1 : index
    %c1_402 = arith.constant 1 : index
    %c0_403 = arith.constant 0 : index
    %674 = vector.load %arg11[%c1_401, %c1_402, %c0_403] : memref<2x18x18xf32, #tpu.memory_space<vmem>>, vector<1x16x16xf32>
    %675 = vector.shape_cast %674 : vector<1x16x16xf32> to vector<16x16xf32>
    %676 = vector.broadcast %673 : f32 to vector<16x16xf32>
    %677 = arith.mulf %676, %675 : vector<16x16xf32>
    %678 = arith.addf %672, %677 : vector<16x16xf32>
    %c31_404 = arith.constant 31 : index
    %679 = memref.load %arg3[%c31_404] : memref<72xf32, #tpu.memory_space<smem>>
    %c1_405 = arith.constant 1 : index
    %c1_406 = arith.constant 1 : index
    %c1_407 = arith.constant 1 : index
    %680 = vector.load %arg11[%c1_405, %c1_406, %c1_407] : memref<2x18x18xf32, #tpu.memory_space<vmem>>, vector<1x16x16xf32>
    %681 = vector.shape_cast %680 : vector<1x16x16xf32> to vector<16x16xf32>
    %682 = vector.broadcast %679 : f32 to vector<16x16xf32>
    %683 = arith.mulf %682, %681 : vector<16x16xf32>
    %684 = arith.addf %678, %683 : vector<16x16xf32>
    %c32_408 = arith.constant 32 : index
    %685 = memref.load %arg3[%c32_408] : memref<72xf32, #tpu.memory_space<smem>>
    %c1_409 = arith.constant 1 : index
    %c1_410 = arith.constant 1 : index
    %c2_411 = arith.constant 2 : index
    %686 = vector.load %arg11[%c1_409, %c1_410, %c2_411] : memref<2x18x18xf32, #tpu.memory_space<vmem>>, vector<1x16x16xf32>
    %687 = vector.shape_cast %686 : vector<1x16x16xf32> to vector<16x16xf32>
    %688 = vector.broadcast %685 : f32 to vector<16x16xf32>
    %689 = arith.mulf %688, %687 : vector<16x16xf32>
    %690 = arith.addf %684, %689 : vector<16x16xf32>
    %c33_412 = arith.constant 33 : index
    %691 = memref.load %arg3[%c33_412] : memref<72xf32, #tpu.memory_space<smem>>
    %c1_413 = arith.constant 1 : index
    %c2_414 = arith.constant 2 : index
    %c0_415 = arith.constant 0 : index
    %692 = vector.load %arg11[%c1_413, %c2_414, %c0_415] : memref<2x18x18xf32, #tpu.memory_space<vmem>>, vector<1x16x16xf32>
    %693 = vector.shape_cast %692 : vector<1x16x16xf32> to vector<16x16xf32>
    %694 = vector.broadcast %691 : f32 to vector<16x16xf32>
    %695 = arith.mulf %694, %693 : vector<16x16xf32>
    %696 = arith.addf %690, %695 : vector<16x16xf32>
    %c34_416 = arith.constant 34 : index
    %697 = memref.load %arg3[%c34_416] : memref<72xf32, #tpu.memory_space<smem>>
    %c1_417 = arith.constant 1 : index
    %c2_418 = arith.constant 2 : index
    %c1_419 = arith.constant 1 : index
    %698 = vector.load %arg11[%c1_417, %c2_418, %c1_419] : memref<2x18x18xf32, #tpu.memory_space<vmem>>, vector<1x16x16xf32>
    %699 = vector.shape_cast %698 : vector<1x16x16xf32> to vector<16x16xf32>
    %700 = vector.broadcast %697 : f32 to vector<16x16xf32>
    %701 = arith.mulf %700, %699 : vector<16x16xf32>
    %702 = arith.addf %696, %701 : vector<16x16xf32>
    %c35_420 = arith.constant 35 : index
    %703 = memref.load %arg3[%c35_420] : memref<72xf32, #tpu.memory_space<smem>>
    %c1_421 = arith.constant 1 : index
    %c2_422 = arith.constant 2 : index
    %c2_423 = arith.constant 2 : index
    %704 = vector.load %arg11[%c1_421, %c2_422, %c2_423] : memref<2x18x18xf32, #tpu.memory_space<vmem>>, vector<1x16x16xf32>
    %705 = vector.shape_cast %704 : vector<1x16x16xf32> to vector<16x16xf32>
    %706 = vector.broadcast %703 : f32 to vector<16x16xf32>
    %707 = arith.mulf %706, %705 : vector<16x16xf32>
    %708 = arith.addf %702, %707 : vector<16x16xf32>
    %cst_424 = arith.constant 0.000000e+00 : f32
    %709 = vector.broadcast %cst_424 : f32 to vector<16x16xf32>
    %710 = arith.maximumf %708, %709 : vector<16x16xf32>
    %c0_425 = arith.constant 0 : index
    %c1_426 = arith.constant 1 : index
    %c0_427 = arith.constant 0 : index
    %c0_428 = arith.constant 0 : index
    %711 = vector.load %arg9[%c0_425, %c1_426, %c0_427, %c0_428] : memref<1x4x16x16xf32, #tpu.memory_space<vmem>>, vector<1x1x16x16xf32>
    %712 = vector.shape_cast %711 : vector<1x1x16x16xf32> to vector<16x16xf32>
    %713 = vector.shape_cast %710 : vector<16x16xf32> to vector<1x1x16x16xf32>
    tpu.vector_store %arg9[%c0_425, %c1_426, %c0_427, %c0_428], %713 {strides = array<i32>} : memref<1x4x16x16xf32, #tpu.memory_space<vmem>>, vector<1x1x16x16xf32>,
    %cst_429 = arith.constant 0.000000e+00 : f32
    %714 = vector.broadcast %cst_429 : f32 to vector<16x16xf32>
    %c2_430 = arith.constant 2 : index
    %715 = memref.load %arg4[%c2_430] : memref<4xf32, #tpu.memory_space<smem>>
    %716 = vector.broadcast %715 : f32 to vector<16x16xf32>
    %717 = arith.addf %714, %716 : vector<16x16xf32>
    %c36_431 = arith.constant 36 : index
    %718 = memref.load %arg3[%c36_431] : memref<72xf32, #tpu.memory_space<smem>>
    %c0_432 = arith.constant 0 : index
    %c0_433 = arith.constant 0 : index
    %c0_434 = arith.constant 0 : index
    %719 = vector.load %arg11[%c0_432, %c0_433, %c0_434] : memref<2x18x18xf32, #tpu.memory_space<vmem>>, vector<1x16x16xf32>
    %720 = vector.shape_cast %719 : vector<1x16x16xf32> to vector<16x16xf32>
    %721 = vector.broadcast %718 : f32 to vector<16x16xf32>
    %722 = arith.mulf %721, %720 : vector<16x16xf32>
    %723 = arith.addf %717, %722 : vector<16x16xf32>
    %c37_435 = arith.constant 37 : index
    %724 = memref.load %arg3[%c37_435] : memref<72xf32, #tpu.memory_space<smem>>
    %c0_436 = arith.constant 0 : index
    %c0_437 = arith.constant 0 : index
    %c1_438 = arith.constant 1 : index
    %725 = vector.load %arg11[%c0_436, %c0_437, %c1_438] : memref<2x18x18xf32, #tpu.memory_space<vmem>>, vector<1x16x16xf32>
    %726 = vector.shape_cast %725 : vector<1x16x16xf32> to vector<16x16xf32>
    %727 = vector.broadcast %724 : f32 to vector<16x16xf32>
    %728 = arith.mulf %727, %726 : vector<16x16xf32>
    %729 = arith.addf %723, %728 : vector<16x16xf32>
    %c38_439 = arith.constant 38 : index
    %730 = memref.load %arg3[%c38_439] : memref<72xf32, #tpu.memory_space<smem>>
    %c0_440 = arith.constant 0 : index
    %c0_441 = arith.constant 0 : index
    %c2_442 = arith.constant 2 : index
    %731 = vector.load %arg11[%c0_440, %c0_441, %c2_442] : memref<2x18x18xf32, #tpu.memory_space<vmem>>, vector<1x16x16xf32>
    %732 = vector.shape_cast %731 : vector<1x16x16xf32> to vector<16x16xf32>
    %733 = vector.broadcast %730 : f32 to vector<16x16xf32>
    %734 = arith.mulf %733, %732 : vector<16x16xf32>
    %735 = arith.addf %729, %734 : vector<16x16xf32>
    %c39_443 = arith.constant 39 : index
    %736 = memref.load %arg3[%c39_443] : memref<72xf32, #tpu.memory_space<smem>>
    %c0_444 = arith.constant 0 : index
    %c1_445 = arith.constant 1 : index
    %c0_446 = arith.constant 0 : index
    %737 = vector.load %arg11[%c0_444, %c1_445, %c0_446] : memref<2x18x18xf32, #tpu.memory_space<vmem>>, vector<1x16x16xf32>
    %738 = vector.shape_cast %737 : vector<1x16x16xf32> to vector<16x16xf32>
    %739 = vector.broadcast %736 : f32 to vector<16x16xf32>
    %740 = arith.mulf %739, %738 : vector<16x16xf32>
    %741 = arith.addf %735, %740 : vector<16x16xf32>
    %c40_447 = arith.constant 40 : index
    %742 = memref.load %arg3[%c40_447] : memref<72xf32, #tpu.memory_space<smem>>
    %c0_448 = arith.constant 0 : index
    %c1_449 = arith.constant 1 : index
    %c1_450 = arith.constant 1 : index
    %743 = vector.load %arg11[%c0_448, %c1_449, %c1_450] : memref<2x18x18xf32, #tpu.memory_space<vmem>>, vector<1x16x16xf32>
    %744 = vector.shape_cast %743 : vector<1x16x16xf32> to vector<16x16xf32>
    %745 = vector.broadcast %742 : f32 to vector<16x16xf32>
    %746 = arith.mulf %745, %744 : vector<16x16xf32>
    %747 = arith.addf %741, %746 : vector<16x16xf32>
    %c41_451 = arith.constant 41 : index
    %748 = memref.load %arg3[%c41_451] : memref<72xf32, #tpu.memory_space<smem>>
    %c0_452 = arith.constant 0 : index
    %c1_453 = arith.constant 1 : index
    %c2_454 = arith.constant 2 : index
    %749 = vector.load %arg11[%c0_452, %c1_453, %c2_454] : memref<2x18x18xf32, #tpu.memory_space<vmem>>, vector<1x16x16xf32>
    %750 = vector.shape_cast %749 : vector<1x16x16xf32> to vector<16x16xf32>
    %751 = vector.broadcast %748 : f32 to vector<16x16xf32>
    %752 = arith.mulf %751, %750 : vector<16x16xf32>
    %753 = arith.addf %747, %752 : vector<16x16xf32>
    %c42_455 = arith.constant 42 : index
    %754 = memref.load %arg3[%c42_455] : memref<72xf32, #tpu.memory_space<smem>>
    %c0_456 = arith.constant 0 : index
    %c2_457 = arith.constant 2 : index
    %c0_458 = arith.constant 0 : index
    %755 = vector.load %arg11[%c0_456, %c2_457, %c0_458] : memref<2x18x18xf32, #tpu.memory_space<vmem>>, vector<1x16x16xf32>
    %756 = vector.shape_cast %755 : vector<1x16x16xf32> to vector<16x16xf32>
    %757 = vector.broadcast %754 : f32 to vector<16x16xf32>
    %758 = arith.mulf %757, %756 : vector<16x16xf32>
    %759 = arith.addf %753, %758 : vector<16x16xf32>
    %c43_459 = arith.constant 43 : index
    %760 = memref.load %arg3[%c43_459] : memref<72xf32, #tpu.memory_space<smem>>
    %c0_460 = arith.constant 0 : index
    %c2_461 = arith.constant 2 : index
    %c1_462 = arith.constant 1 : index
    %761 = vector.load %arg11[%c0_460, %c2_461, %c1_462] : memref<2x18x18xf32, #tpu.memory_space<vmem>>, vector<1x16x16xf32>
    %762 = vector.shape_cast %761 : vector<1x16x16xf32> to vector<16x16xf32>
    %763 = vector.broadcast %760 : f32 to vector<16x16xf32>
    %764 = arith.mulf %763, %762 : vector<16x16xf32>
    %765 = arith.addf %759, %764 : vector<16x16xf32>
    %c44_463 = arith.constant 44 : index
    %766 = memref.load %arg3[%c44_463] : memref<72xf32, #tpu.memory_space<smem>>
    %c0_464 = arith.constant 0 : index
    %c2_465 = arith.constant 2 : index
    %c2_466 = arith.constant 2 : index
    %767 = vector.load %arg11[%c0_464, %c2_465, %c2_466] : memref<2x18x18xf32, #tpu.memory_space<vmem>>, vector<1x16x16xf32>
    %768 = vector.shape_cast %767 : vector<1x16x16xf32> to vector<16x16xf32>
    %769 = vector.broadcast %766 : f32 to vector<16x16xf32>
    %770 = arith.mulf %769, %768 : vector<16x16xf32>
    %771 = arith.addf %765, %770 : vector<16x16xf32>
    %c45_467 = arith.constant 45 : index
    %772 = memref.load %arg3[%c45_467] : memref<72xf32, #tpu.memory_space<smem>>
    %c1_468 = arith.constant 1 : index
    %c0_469 = arith.constant 0 : index
    %c0_470 = arith.constant 0 : index
    %773 = vector.load %arg11[%c1_468, %c0_469, %c0_470] : memref<2x18x18xf32, #tpu.memory_space<vmem>>, vector<1x16x16xf32>
    %774 = vector.shape_cast %773 : vector<1x16x16xf32> to vector<16x16xf32>
    %775 = vector.broadcast %772 : f32 to vector<16x16xf32>
    %776 = arith.mulf %775, %774 : vector<16x16xf32>
    %777 = arith.addf %771, %776 : vector<16x16xf32>
    %c46_471 = arith.constant 46 : index
    %778 = memref.load %arg3[%c46_471] : memref<72xf32, #tpu.memory_space<smem>>
    %c1_472 = arith.constant 1 : index
    %c0_473 = arith.constant 0 : index
    %c1_474 = arith.constant 1 : index
    %779 = vector.load %arg11[%c1_472, %c0_473, %c1_474] : memref<2x18x18xf32, #tpu.memory_space<vmem>>, vector<1x16x16xf32>
    %780 = vector.shape_cast %779 : vector<1x16x16xf32> to vector<16x16xf32>
    %781 = vector.broadcast %778 : f32 to vector<16x16xf32>
    %782 = arith.mulf %781, %780 : vector<16x16xf32>
    %783 = arith.addf %777, %782 : vector<16x16xf32>
    %c47_475 = arith.constant 47 : index
    %784 = memref.load %arg3[%c47_475] : memref<72xf32, #tpu.memory_space<smem>>
    %c1_476 = arith.constant 1 : index
    %c0_477 = arith.constant 0 : index
    %c2_478 = arith.constant 2 : index
    %785 = vector.load %arg11[%c1_476, %c0_477, %c2_478] : memref<2x18x18xf32, #tpu.memory_space<vmem>>, vector<1x16x16xf32>
    %786 = vector.shape_cast %785 : vector<1x16x16xf32> to vector<16x16xf32>
    %787 = vector.broadcast %784 : f32 to vector<16x16xf32>
    %788 = arith.mulf %787, %786 : vector<16x16xf32>
    %789 = arith.addf %783, %788 : vector<16x16xf32>
    %c48_479 = arith.constant 48 : index
    %790 = memref.load %arg3[%c48_479] : memref<72xf32, #tpu.memory_space<smem>>
    %c1_480 = arith.constant 1 : index
    %c1_481 = arith.constant 1 : index
    %c0_482 = arith.constant 0 : index
    %791 = vector.load %arg11[%c1_480, %c1_481, %c0_482] : memref<2x18x18xf32, #tpu.memory_space<vmem>>, vector<1x16x16xf32>
    %792 = vector.shape_cast %791 : vector<1x16x16xf32> to vector<16x16xf32>
    %793 = vector.broadcast %790 : f32 to vector<16x16xf32>
    %794 = arith.mulf %793, %792 : vector<16x16xf32>
    %795 = arith.addf %789, %794 : vector<16x16xf32>
    %c49_483 = arith.constant 49 : index
    %796 = memref.load %arg3[%c49_483] : memref<72xf32, #tpu.memory_space<smem>>
    %c1_484 = arith.constant 1 : index
    %c1_485 = arith.constant 1 : index
    %c1_486 = arith.constant 1 : index
    %797 = vector.load %arg11[%c1_484, %c1_485, %c1_486] : memref<2x18x18xf32, #tpu.memory_space<vmem>>, vector<1x16x16xf32>
    %798 = vector.shape_cast %797 : vector<1x16x16xf32> to vector<16x16xf32>
    %799 = vector.broadcast %796 : f32 to vector<16x16xf32>
    %800 = arith.mulf %799, %798 : vector<16x16xf32>
    %801 = arith.addf %795, %800 : vector<16x16xf32>
    %c50_487 = arith.constant 50 : index
    %802 = memref.load %arg3[%c50_487] : memref<72xf32, #tpu.memory_space<smem>>
    %c1_488 = arith.constant 1 : index
    %c1_489 = arith.constant 1 : index
    %c2_490 = arith.constant 2 : index
    %803 = vector.load %arg11[%c1_488, %c1_489, %c2_490] : memref<2x18x18xf32, #tpu.memory_space<vmem>>, vector<1x16x16xf32>
    %804 = vector.shape_cast %803 : vector<1x16x16xf32> to vector<16x16xf32>
    %805 = vector.broadcast %802 : f32 to vector<16x16xf32>
    %806 = arith.mulf %805, %804 : vector<16x16xf32>
    %807 = arith.addf %801, %806 : vector<16x16xf32>
    %c51_491 = arith.constant 51 : index
    %808 = memref.load %arg3[%c51_491] : memref<72xf32, #tpu.memory_space<smem>>
    %c1_492 = arith.constant 1 : index
    %c2_493 = arith.constant 2 : index
    %c0_494 = arith.constant 0 : index
    %809 = vector.load %arg11[%c1_492, %c2_493, %c0_494] : memref<2x18x18xf32, #tpu.memory_space<vmem>>, vector<1x16x16xf32>
    %810 = vector.shape_cast %809 : vector<1x16x16xf32> to vector<16x16xf32>
    %811 = vector.broadcast %808 : f32 to vector<16x16xf32>
    %812 = arith.mulf %811, %810 : vector<16x16xf32>
    %813 = arith.addf %807, %812 : vector<16x16xf32>
    %c52_495 = arith.constant 52 : index
    %814 = memref.load %arg3[%c52_495] : memref<72xf32, #tpu.memory_space<smem>>
    %c1_496 = arith.constant 1 : index
    %c2_497 = arith.constant 2 : index
    %c1_498 = arith.constant 1 : index
    %815 = vector.load %arg11[%c1_496, %c2_497, %c1_498] : memref<2x18x18xf32, #tpu.memory_space<vmem>>, vector<1x16x16xf32>
    %816 = vector.shape_cast %815 : vector<1x16x16xf32> to vector<16x16xf32>
    %817 = vector.broadcast %814 : f32 to vector<16x16xf32>
    %818 = arith.mulf %817, %816 : vector<16x16xf32>
    %819 = arith.addf %813, %818 : vector<16x16xf32>
    %c53_499 = arith.constant 53 : index
    %820 = memref.load %arg3[%c53_499] : memref<72xf32, #tpu.memory_space<smem>>
    %c1_500 = arith.constant 1 : index
    %c2_501 = arith.constant 2 : index
    %c2_502 = arith.constant 2 : index
    %821 = vector.load %arg11[%c1_500, %c2_501, %c2_502] : memref<2x18x18xf32, #tpu.memory_space<vmem>>, vector<1x16x16xf32>
    %822 = vector.shape_cast %821 : vector<1x16x16xf32> to vector<16x16xf32>
    %823 = vector.broadcast %820 : f32 to vector<16x16xf32>
    %824 = arith.mulf %823, %822 : vector<16x16xf32>
    %825 = arith.addf %819, %824 : vector<16x16xf32>
    %cst_503 = arith.constant 0.000000e+00 : f32
    %826 = vector.broadcast %cst_503 : f32 to vector<16x16xf32>
    %827 = arith.maximumf %825, %826 : vector<16x16xf32>
    %c0_504 = arith.constant 0 : index
    %c2_505 = arith.constant 2 : index
    %c0_506 = arith.constant 0 : index
    %c0_507 = arith.constant 0 : index
    %828 = vector.load %arg9[%c0_504, %c2_505, %c0_506, %c0_507] : memref<1x4x16x16xf32, #tpu.memory_space<vmem>>, vector<1x1x16x16xf32>
    %829 = vector.shape_cast %828 : vector<1x1x16x16xf32> to vector<16x16xf32>
    %830 = vector.shape_cast %827 : vector<16x16xf32> to vector<1x1x16x16xf32>
    tpu.vector_store %arg9[%c0_504, %c2_505, %c0_506, %c0_507], %830 {strides = array<i32>} : memref<1x4x16x16xf32, #tpu.memory_space<vmem>>, vector<1x1x16x16xf32>,
    %cst_508 = arith.constant 0.000000e+00 : f32
    %831 = vector.broadcast %cst_508 : f32 to vector<16x16xf32>
    %c3_509 = arith.constant 3 : index
    %832 = memref.load %arg4[%c3_509] : memref<4xf32, #tpu.memory_space<smem>>
    %833 = vector.broadcast %832 : f32 to vector<16x16xf32>
    %834 = arith.addf %831, %833 : vector<16x16xf32>
    %c54_510 = arith.constant 54 : index
    %835 = memref.load %arg3[%c54_510] : memref<72xf32, #tpu.memory_space<smem>>
    %c0_511 = arith.constant 0 : index
    %c0_512 = arith.constant 0 : index
    %c0_513 = arith.constant 0 : index
    %836 = vector.load %arg11[%c0_511, %c0_512, %c0_513] : memref<2x18x18xf32, #tpu.memory_space<vmem>>, vector<1x16x16xf32>
    %837 = vector.shape_cast %836 : vector<1x16x16xf32> to vector<16x16xf32>
    %838 = vector.broadcast %835 : f32 to vector<16x16xf32>
    %839 = arith.mulf %838, %837 : vector<16x16xf32>
    %840 = arith.addf %834, %839 : vector<16x16xf32>
    %c55_514 = arith.constant 55 : index
    %841 = memref.load %arg3[%c55_514] : memref<72xf32, #tpu.memory_space<smem>>
    %c0_515 = arith.constant 0 : index
    %c0_516 = arith.constant 0 : index
    %c1_517 = arith.constant 1 : index
    %842 = vector.load %arg11[%c0_515, %c0_516, %c1_517] : memref<2x18x18xf32, #tpu.memory_space<vmem>>, vector<1x16x16xf32>
    %843 = vector.shape_cast %842 : vector<1x16x16xf32> to vector<16x16xf32>
    %844 = vector.broadcast %841 : f32 to vector<16x16xf32>
    %845 = arith.mulf %844, %843 : vector<16x16xf32>
    %846 = arith.addf %840, %845 : vector<16x16xf32>
    %c56_518 = arith.constant 56 : index
    %847 = memref.load %arg3[%c56_518] : memref<72xf32, #tpu.memory_space<smem>>
    %c0_519 = arith.constant 0 : index
    %c0_520 = arith.constant 0 : index
    %c2_521 = arith.constant 2 : index
    %848 = vector.load %arg11[%c0_519, %c0_520, %c2_521] : memref<2x18x18xf32, #tpu.memory_space<vmem>>, vector<1x16x16xf32>
    %849 = vector.shape_cast %848 : vector<1x16x16xf32> to vector<16x16xf32>
    %850 = vector.broadcast %847 : f32 to vector<16x16xf32>
    %851 = arith.mulf %850, %849 : vector<16x16xf32>
    %852 = arith.addf %846, %851 : vector<16x16xf32>
    %c57_522 = arith.constant 57 : index
    %853 = memref.load %arg3[%c57_522] : memref<72xf32, #tpu.memory_space<smem>>
    %c0_523 = arith.constant 0 : index
    %c1_524 = arith.constant 1 : index
    %c0_525 = arith.constant 0 : index
    %854 = vector.load %arg11[%c0_523, %c1_524, %c0_525] : memref<2x18x18xf32, #tpu.memory_space<vmem>>, vector<1x16x16xf32>
    %855 = vector.shape_cast %854 : vector<1x16x16xf32> to vector<16x16xf32>
    %856 = vector.broadcast %853 : f32 to vector<16x16xf32>
    %857 = arith.mulf %856, %855 : vector<16x16xf32>
    %858 = arith.addf %852, %857 : vector<16x16xf32>
    %c58_526 = arith.constant 58 : index
    %859 = memref.load %arg3[%c58_526] : memref<72xf32, #tpu.memory_space<smem>>
    %c0_527 = arith.constant 0 : index
    %c1_528 = arith.constant 1 : index
    %c1_529 = arith.constant 1 : index
    %860 = vector.load %arg11[%c0_527, %c1_528, %c1_529] : memref<2x18x18xf32, #tpu.memory_space<vmem>>, vector<1x16x16xf32>
    %861 = vector.shape_cast %860 : vector<1x16x16xf32> to vector<16x16xf32>
    %862 = vector.broadcast %859 : f32 to vector<16x16xf32>
    %863 = arith.mulf %862, %861 : vector<16x16xf32>
    %864 = arith.addf %858, %863 : vector<16x16xf32>
    %c59_530 = arith.constant 59 : index
    %865 = memref.load %arg3[%c59_530] : memref<72xf32, #tpu.memory_space<smem>>
    %c0_531 = arith.constant 0 : index
    %c1_532 = arith.constant 1 : index
    %c2_533 = arith.constant 2 : index
    %866 = vector.load %arg11[%c0_531, %c1_532, %c2_533] : memref<2x18x18xf32, #tpu.memory_space<vmem>>, vector<1x16x16xf32>
    %867 = vector.shape_cast %866 : vector<1x16x16xf32> to vector<16x16xf32>
    %868 = vector.broadcast %865 : f32 to vector<16x16xf32>
    %869 = arith.mulf %868, %867 : vector<16x16xf32>
    %870 = arith.addf %864, %869 : vector<16x16xf32>
    %c60_534 = arith.constant 60 : index
    %871 = memref.load %arg3[%c60_534] : memref<72xf32, #tpu.memory_space<smem>>
    %c0_535 = arith.constant 0 : index
    %c2_536 = arith.constant 2 : index
    %c0_537 = arith.constant 0 : index
    %872 = vector.load %arg11[%c0_535, %c2_536, %c0_537] : memref<2x18x18xf32, #tpu.memory_space<vmem>>, vector<1x16x16xf32>
    %873 = vector.shape_cast %872 : vector<1x16x16xf32> to vector<16x16xf32>
    %874 = vector.broadcast %871 : f32 to vector<16x16xf32>
    %875 = arith.mulf %874, %873 : vector<16x16xf32>
    %876 = arith.addf %870, %875 : vector<16x16xf32>
    %c61_538 = arith.constant 61 : index
    %877 = memref.load %arg3[%c61_538] : memref<72xf32, #tpu.memory_space<smem>>
    %c0_539 = arith.constant 0 : index
    %c2_540 = arith.constant 2 : index
    %c1_541 = arith.constant 1 : index
    %878 = vector.load %arg11[%c0_539, %c2_540, %c1_541] : memref<2x18x18xf32, #tpu.memory_space<vmem>>, vector<1x16x16xf32>
    %879 = vector.shape_cast %878 : vector<1x16x16xf32> to vector<16x16xf32>
    %880 = vector.broadcast %877 : f32 to vector<16x16xf32>
    %881 = arith.mulf %880, %879 : vector<16x16xf32>
    %882 = arith.addf %876, %881 : vector<16x16xf32>
    %c62_542 = arith.constant 62 : index
    %883 = memref.load %arg3[%c62_542] : memref<72xf32, #tpu.memory_space<smem>>
    %c0_543 = arith.constant 0 : index
    %c2_544 = arith.constant 2 : index
    %c2_545 = arith.constant 2 : index
    %884 = vector.load %arg11[%c0_543, %c2_544, %c2_545] : memref<2x18x18xf32, #tpu.memory_space<vmem>>, vector<1x16x16xf32>
    %885 = vector.shape_cast %884 : vector<1x16x16xf32> to vector<16x16xf32>
    %886 = vector.broadcast %883 : f32 to vector<16x16xf32>
    %887 = arith.mulf %886, %885 : vector<16x16xf32>
    %888 = arith.addf %882, %887 : vector<16x16xf32>
    %c63_546 = arith.constant 63 : index
    %889 = memref.load %arg3[%c63_546] : memref<72xf32, #tpu.memory_space<smem>>
    %c1_547 = arith.constant 1 : index
    %c0_548 = arith.constant 0 : index
    %c0_549 = arith.constant 0 : index
    %890 = vector.load %arg11[%c1_547, %c0_548, %c0_549] : memref<2x18x18xf32, #tpu.memory_space<vmem>>, vector<1x16x16xf32>
    %891 = vector.shape_cast %890 : vector<1x16x16xf32> to vector<16x16xf32>
    %892 = vector.broadcast %889 : f32 to vector<16x16xf32>
    %893 = arith.mulf %892, %891 : vector<16x16xf32>
    %894 = arith.addf %888, %893 : vector<16x16xf32>
    %c64_550 = arith.constant 64 : index
    %895 = memref.load %arg3[%c64_550] : memref<72xf32, #tpu.memory_space<smem>>
    %c1_551 = arith.constant 1 : index
    %c0_552 = arith.constant 0 : index
    %c1_553 = arith.constant 1 : index
    %896 = vector.load %arg11[%c1_551, %c0_552, %c1_553] : memref<2x18x18xf32, #tpu.memory_space<vmem>>, vector<1x16x16xf32>
    %897 = vector.shape_cast %896 : vector<1x16x16xf32> to vector<16x16xf32>
    %898 = vector.broadcast %895 : f32 to vector<16x16xf32>
    %899 = arith.mulf %898, %897 : vector<16x16xf32>
    %900 = arith.addf %894, %899 : vector<16x16xf32>
    %c65_554 = arith.constant 65 : index
    %901 = memref.load %arg3[%c65_554] : memref<72xf32, #tpu.memory_space<smem>>
    %c1_555 = arith.constant 1 : index
    %c0_556 = arith.constant 0 : index
    %c2_557 = arith.constant 2 : index
    %902 = vector.load %arg11[%c1_555, %c0_556, %c2_557] : memref<2x18x18xf32, #tpu.memory_space<vmem>>, vector<1x16x16xf32>
    %903 = vector.shape_cast %902 : vector<1x16x16xf32> to vector<16x16xf32>
    %904 = vector.broadcast %901 : f32 to vector<16x16xf32>
    %905 = arith.mulf %904, %903 : vector<16x16xf32>
    %906 = arith.addf %900, %905 : vector<16x16xf32>
    %c66_558 = arith.constant 66 : index
    %907 = memref.load %arg3[%c66_558] : memref<72xf32, #tpu.memory_space<smem>>
    %c1_559 = arith.constant 1 : index
    %c1_560 = arith.constant 1 : index
    %c0_561 = arith.constant 0 : index
    %908 = vector.load %arg11[%c1_559, %c1_560, %c0_561] : memref<2x18x18xf32, #tpu.memory_space<vmem>>, vector<1x16x16xf32>
    %909 = vector.shape_cast %908 : vector<1x16x16xf32> to vector<16x16xf32>
    %910 = vector.broadcast %907 : f32 to vector<16x16xf32>
    %911 = arith.mulf %910, %909 : vector<16x16xf32>
    %912 = arith.addf %906, %911 : vector<16x16xf32>
    %c67_562 = arith.constant 67 : index
    %913 = memref.load %arg3[%c67_562] : memref<72xf32, #tpu.memory_space<smem>>
    %c1_563 = arith.constant 1 : index
    %c1_564 = arith.constant 1 : index
    %c1_565 = arith.constant 1 : index
    %914 = vector.load %arg11[%c1_563, %c1_564, %c1_565] : memref<2x18x18xf32, #tpu.memory_space<vmem>>, vector<1x16x16xf32>
    %915 = vector.shape_cast %914 : vector<1x16x16xf32> to vector<16x16xf32>
    %916 = vector.broadcast %913 : f32 to vector<16x16xf32>
    %917 = arith.mulf %916, %915 : vector<16x16xf32>
    %918 = arith.addf %912, %917 : vector<16x16xf32>
    %c68_566 = arith.constant 68 : index
    %919 = memref.load %arg3[%c68_566] : memref<72xf32, #tpu.memory_space<smem>>
    %c1_567 = arith.constant 1 : index
    %c1_568 = arith.constant 1 : index
    %c2_569 = arith.constant 2 : index
    %920 = vector.load %arg11[%c1_567, %c1_568, %c2_569] : memref<2x18x18xf32, #tpu.memory_space<vmem>>, vector<1x16x16xf32>
    %921 = vector.shape_cast %920 : vector<1x16x16xf32> to vector<16x16xf32>
    %922 = vector.broadcast %919 : f32 to vector<16x16xf32>
    %923 = arith.mulf %922, %921 : vector<16x16xf32>
    %924 = arith.addf %918, %923 : vector<16x16xf32>
    %c69_570 = arith.constant 69 : index
    %925 = memref.load %arg3[%c69_570] : memref<72xf32, #tpu.memory_space<smem>>
    %c1_571 = arith.constant 1 : index
    %c2_572 = arith.constant 2 : index
    %c0_573 = arith.constant 0 : index
    %926 = vector.load %arg11[%c1_571, %c2_572, %c0_573] : memref<2x18x18xf32, #tpu.memory_space<vmem>>, vector<1x16x16xf32>
    %927 = vector.shape_cast %926 : vector<1x16x16xf32> to vector<16x16xf32>
    %928 = vector.broadcast %925 : f32 to vector<16x16xf32>
    %929 = arith.mulf %928, %927 : vector<16x16xf32>
    %930 = arith.addf %924, %929 : vector<16x16xf32>
    %c70_574 = arith.constant 70 : index
    %931 = memref.load %arg3[%c70_574] : memref<72xf32, #tpu.memory_space<smem>>
    %c1_575 = arith.constant 1 : index
    %c2_576 = arith.constant 2 : index
    %c1_577 = arith.constant 1 : index
    %932 = vector.load %arg11[%c1_575, %c2_576, %c1_577] : memref<2x18x18xf32, #tpu.memory_space<vmem>>, vector<1x16x16xf32>
    %933 = vector.shape_cast %932 : vector<1x16x16xf32> to vector<16x16xf32>
    %934 = vector.broadcast %931 : f32 to vector<16x16xf32>
    %935 = arith.mulf %934, %933 : vector<16x16xf32>
    %936 = arith.addf %930, %935 : vector<16x16xf32>
    %c71_578 = arith.constant 71 : index
    %937 = memref.load %arg3[%c71_578] : memref<72xf32, #tpu.memory_space<smem>>
    %c1_579 = arith.constant 1 : index
    %c2_580 = arith.constant 2 : index
    %c2_581 = arith.constant 2 : index
    %938 = vector.load %arg11[%c1_579, %c2_580, %c2_581] : memref<2x18x18xf32, #tpu.memory_space<vmem>>, vector<1x16x16xf32>
    %939 = vector.shape_cast %938 : vector<1x16x16xf32> to vector<16x16xf32>
    %940 = vector.broadcast %937 : f32 to vector<16x16xf32>
    %941 = arith.mulf %940, %939 : vector<16x16xf32>
    %942 = arith.addf %936, %941 : vector<16x16xf32>
    %cst_582 = arith.constant 0.000000e+00 : f32
    %943 = vector.broadcast %cst_582 : f32 to vector<16x16xf32>
    %944 = arith.maximumf %942, %943 : vector<16x16xf32>
    %c0_583 = arith.constant 0 : index
    %c3_584 = arith.constant 3 : index
    %c0_585 = arith.constant 0 : index
    %c0_586 = arith.constant 0 : index
    %945 = vector.load %arg9[%c0_583, %c3_584, %c0_585, %c0_586] : memref<1x4x16x16xf32, #tpu.memory_space<vmem>>, vector<1x1x16x16xf32>
    %946 = vector.shape_cast %945 : vector<1x1x16x16xf32> to vector<16x16xf32>
    %947 = vector.shape_cast %944 : vector<16x16xf32> to vector<1x1x16x16xf32>
    tpu.vector_store %arg9[%c0_583, %c3_584, %c0_585, %c0_586], %947 {strides = array<i32>} : memref<1x4x16x16xf32, #tpu.memory_space<vmem>>, vector<1x1x16x16xf32>,
    return
  }
  func.func @transform_0(%arg0: i32) -> i32 {
    %c0_i32 = arith.constant 0 : i32
    %c0_i32_0 = arith.constant 0 : i32
    return %c0_i32 : i32
  }
  func.func @transform_1(%arg0: i32) -> i32 {
    %c0_i32 = arith.constant 0 : i32
    %c0_i32_0 = arith.constant 0 : i32
    return %c0_i32 : i32
  }
  func.func @transform_2(%arg0: i32) -> i32 {
    %c0_i32 = arith.constant 0 : i32
    %c0_i32_0 = arith.constant 0 : i32
    return %c0_i32 : i32
  }
  func.func @transform_3(%arg0: i32) -> i32 {
    %c0_i32 = arith.constant 0 : i32
    %c0_i32_0 = arith.constant 0 : i32
    return %c0_i32 : i32
  }
  func.func @transform_4(%arg0: i32) -> (i32, i32) {
    %c0_i32 = arith.constant 0 : i32
    %c0_i32_0 = arith.constant 0 : i32
    %c0_i32_1 = arith.constant 0 : i32
    return %c0_i32, %c0_i32_0 : i32, i32
  }
  func.func @transform_5(%arg0: i32) -> (i32, i32) {
    %c0_i32 = arith.constant 0 : i32
    %c0_i32_0 = arith.constant 0 : i32
    %c0_i32_1 = arith.constant 0 : i32
    return %c0_i32, %c0_i32_0 : i32, i32
  }
  func.func @transform_6(%arg0: i32) -> (i32, i32, i32, i32) {
    %c0_i32 = arith.constant 0 : i32
    %c0_i32_0 = arith.constant 0 : i32
    %c0_i32_1 = arith.constant 0 : i32
    %c0_i32_2 = arith.constant 0 : i32
    return %arg0, %c0_i32, %c0_i32_0, %c0_i32_1 : i32, i32, i32, i32
  }
  func.func @transform_7(%arg0: i32) -> (i32, i32, i32, i32) {
    %c0_i32 = arith.constant 0 : i32
    %c0_i32_0 = arith.constant 0 : i32
    %c0_i32_1 = arith.constant 0 : i32
    %c0_i32_2 = arith.constant 0 : i32
    return %arg0, %c0_i32, %c0_i32_0, %c0_i32_1 : i32, i32, i32, i32
  }
  func.func @transform_8(%arg0: i32) -> (i32, i32, i32, i32) {
    %c0_i32 = arith.constant 0 : i32
    %c0_i32_0 = arith.constant 0 : i32
    %c0_i32_1 = arith.constant 0 : i32
    %c0_i32_2 = arith.constant 0 : i32
    return %arg0, %c0_i32, %c0_i32_0, %c0_i32_1 : i32, i32, i32, i32
  }
}

</mosaic_0001>

<llo_original>
// kernel: tpu_custom_call.1
$region0: #{tpu_custom_call.1}
  #allocation0 [shape = 'u32[]', space=smem, size = 0x4, offset = 0x4, fixed_abs, tag = 'smem constant byte address 0x4 - core index']
  #allocation1 [shape = 'u32[144,128]{1,0:T(1,128)}', space=vmem, size = 0x12000, scoped, tag = 'internal scratch']
  #allocation2 [shape = 'f32[4,18,18]{2,1,0:T(8,128)}', space=vmem, size = 0xc000, scoped, tag = 'scratch operand']
  #allocation3 [shape = 'f32[2,18,18]{2,1,0:T(8,128)}', space=vmem, size = 0x6000, scoped, tag = 'scratch operand']
  %s0 = inlined_call_operand.vmem [shape: f32[72], index: 0, kind: input, shape index: {}]
  %s1 = inlined_call_operand.vmem [shape: f32[2], index: 1, kind: input, shape index: {}]
  %s2 = inlined_call_operand.hbm [shape: f32[72], index: 2, kind: input, shape index: {}]
  %s3 = inlined_call_operand.hbm [shape: f32[4], index: 3, kind: input, shape index: {}]
  %s4 = inlined_call_operand.vmem [shape: f32[16,8], index: 4, kind: input, shape index: {}]
  %s5 = inlined_call_operand.hbm [shape: f32[8,16], index: 5, kind: input, shape index: {}]
  %s6 = inlined_call_operand.vmem [shape: f32[2,2,8,8], index: 6, kind: input, shape index: {}]
  %s7 = inlined_call_operand.hbm [shape: f32[2,2,16,16], index: 7, kind: input, shape index: {}]
  %s8 = inlined_call_operand.hbm [shape: f32[2,4,16,16], index: 8, kind: output, shape index: {}]
  %s9 = sld [smem:[#allocation0]]
  $region89: #{tpu_custom_call.1} parent=0
    _
  %s11 = ssub.s32 1, %s9
  %s12 = scalar_select 0, %s11, %s9
  $region1: #{tpu_custom_call.1} parent=0
    #allocation4 [shape = 'u8[512]{0}', space=smem, size = 0x200, scoped, tag = 'input window, operand 0, single buffered']
    #allocation5 [shape = 's32[2]{0}', space=sflag, size = 0x8, scoped, tag = 'scoped memory for tpu_custom_call.1']
    #allocation6 [shape = 's32[2]{0}', space=sflag, size = 0x8, scoped, tag = 'scoped memory for tpu_custom_call.1']
    #allocation7 [shape = 's32[2]{0}', space=sflag, size = 0x8, scoped, tag = 'scoped memory for tpu_custom_call.1']
    #allocation8 [shape = 's32[2]{0}', space=sflag, size = 0x8, scoped, tag = 'scoped memory for tpu_custom_call.1']
    #allocation9 [shape = 'u8[512]{0}', space=smem, size = 0x200, scoped, tag = 'input window, operand 1, single buffered']
    #allocation10 [shape = 's32[1]{0}', space=sflag, size = 0x4, scoped, tag = 'scoped memory for tpu_custom_call.1']
    #allocation11 [shape = 'u8[512]{0}', space=smem, size = 0x200, scoped, tag = 'input window, operand 2, single buffered']
    #allocation12 [shape = 'u8[512]{0}', space=smem, size = 0x200, scoped, tag = 'input window, operand 3, single buffered']
    #allocation13 [shape = 's32[1]{0}', space=sflag, size = 0x4, scoped, tag = 'scoped memory for tpu_custom_call.1']
    #allocation14 [shape = 'u8[4096]{0}', space=vmem, size = 0x1000, scoped, tag = 'input window, operand 5, single buffered']
    #allocation15 [shape = 'u8[32768]{0}', space=vmem, size = 0x8000, scoped, tag = 'input window, operand 7']
    #allocation16 [shape = 's32[2]{0}', space=sflag, size = 0x8, scoped, tag = 'scoped memory for tpu_custom_call.1']
    #allocation17 [shape = 'u8[65536]{0}', space=vmem, size = 0x10000, scoped, tag = 'output window, operand 0']
    %13 = vsyncpa [#allocation8], 0
    %14 = vsyncpa [#allocation10], 0
    %15 = vsyncpa [#allocation7], 0
    %16 = vsyncpa [#allocation13], 0
    %17 = vsyncpa [#allocation5], 0
    %18 = vsyncpa [#allocation16], 0
    %s19 = scalar_lea.sflag [#allocation16], 1
    %20 = vsyncpa %s19, 0
    %21 = vsyncpa [#allocation6], 0
    %s22 = scalar_lea.sflag [#allocation6], 1
    %23 = vsyncpa %s22, 0
    loop: start=0, step=1, limit=4
    $region2: #{tpu_custom_call.1} parent=1 // loop_pre_header
      _
    $region3: #{tpu_custom_call.1} parent=1 // loop_header
      %s25 = sphi 0, %s29
      %p26 = scmp.ge.s32.totalorder %s25, 4
      %s33 = sphi 0, %s33
      %s35 = sphi 0, %s33
      %s36 = sphi 0, %s35
      %s50 = sphi 0, %s36
      %s54 = sphi 0, %s54
      %s56 = sphi 0, %s54
      %s57 = sphi 0, %s56
      %s71 = sphi 0, %s57
      %s75 = sphi 0, %s75
      %s77 = sphi 0, %s75
      %s78 = sphi 0, %s77
      %s92 = sphi 0, %s78
      %s96 = sphi 0, %s96
      %s98 = sphi 0, %s96
      %s99 = sphi 0, %s98
      %s113 = sphi 0, %s99
      %s117 = sphi 0, %s117
      %s119 = sphi 0, %s117
      %s120 = sphi 0, %s119
      %s134 = sphi 0, %s120
      %s138 = sphi 0, %s138
      %s140 = sphi 0, %s138
      %s141 = sphi 0, %s140
      %s155 = sphi 0, %s141
      %s161 = sphi 0, %s163
      %s164 = sphi 0, %s161
      %s165 = sphi 0, %s164
      %s181 = sphi 0, %s165
      %s187 = sphi 0, %s189
      %s190 = sphi 0, %s187
      %s191 = sphi 0, %s190
      %s207 = sphi 0, %s191
      %s213 = sphi 0, %s215
      %s216 = sphi 0, %s213
      %s217 = sphi 0, %s216
      %s233 = sphi 0, %s217
    $region4: #{tpu_custom_call.1} parent=1 // loop_header_branch
      %28 = sbr.rel (%p26) target = $region8
    $region5: #{tpu_custom_call.1} parent=1 // loop_body
      %s30 = ssub.s32 %s25, 1
      %s31 = ssub.s32 %s25, 2
      %s32 = sadd.s32 %s25, 1
      %s34 = sadd.s32 %s33, 1
      %p37 = scmp.eq.s32.totalorder %s25, 1
      %p38 = scmp.ne.s32.totalorder %s33, %s35
      %p39 = scmp.eq.s32.totalorder %s25, 0
      %p40 = por %p38, %p39
      %p41 = scmp.ne.s32.totalorder %s33, %s35
      %p42 = scmp.eq.s32.totalorder %s30, 1
      %p43 = por %p41, %p42
      %p44 = scmp.ne.s32.totalorder %s35, %s36
      %p45 = scmp.eq.s32.totalorder %s30, 0
      %p46 = por %p44, %p45
      %p47 = scmp.ne.s32.totalorder %s35, %s36
      %p48 = scmp.eq.s32.totalorder %s31, 1
      %p49 = por %p47, %p48
      %p51 = scmp.ne.s32.totalorder %s36, %s50
      %p52 = scmp.eq.s32.totalorder %s31, 0
      %p53 = por %p51, %p52
      %s55 = sadd.s32 %s54, 1
      %p58 = scmp.eq.s32.totalorder %s25, 1
      %p59 = scmp.ne.s32.totalorder %s54, %s56
      %p60 = scmp.eq.s32.totalorder %s25, 0
      %p61 = por %p59, %p60
      %p62 = scmp.ne.s32.totalorder %s54, %s56
      %p63 = scmp.eq.s32.totalorder %s30, 1
      %p64 = por %p62, %p63
      %p65 = scmp.ne.s32.totalorder %s56, %s57
      %p66 = scmp.eq.s32.totalorder %s30, 0
      %p67 = por %p65, %p66
      %p68 = scmp.ne.s32.totalorder %s56, %s57
      %p69 = scmp.eq.s32.totalorder %s31, 1
      %p70 = por %p68, %p69
      %p72 = scmp.ne.s32.totalorder %s57, %s71
      %p73 = scmp.eq.s32.totalorder %s31, 0
      %p74 = por %p72, %p73
      %s76 = sadd.s32 %s75, 1
      %p79 = scmp.eq.s32.totalorder %s25, 1
      %p80 = scmp.ne.s32.totalorder %s75, %s77
      %p81 = scmp.eq.s32.totalorder %s25, 0
      %p82 = por %p80, %p81
      %p83 = scmp.ne.s32.totalorder %s75, %s77
      %p84 = scmp.eq.s32.totalorder %s30, 1
      %p85 = por %p83, %p84
      %p86 = scmp.ne.s32.totalorder %s77, %s78
      %p87 = scmp.eq.s32.totalorder %s30, 0
      %p88 = por %p86, %p87
      %p89 = scmp.ne.s32.totalorder %s77, %s78
      %p90 = scmp.eq.s32.totalorder %s31, 1
      %p91 = por %p89, %p90
      %p93 = scmp.ne.s32.totalorder %s78, %s92
      %p94 = scmp.eq.s32.totalorder %s31, 0
      %p95 = por %p93, %p94
      %s97 = sadd.s32 %s96, 1
      %p100 = scmp.eq.s32.totalorder %s25, 1
      %p101 = scmp.ne.s32.totalorder %s96, %s98
      %p102 = scmp.eq.s32.totalorder %s25, 0
      %p103 = por %p101, %p102
      %p104 = scmp.ne.s32.totalorder %s96, %s98
      %p105 = scmp.eq.s32.totalorder %s30, 1
      %p106 = por %p104, %p105
      %p107 = scmp.ne.s32.totalorder %s98, %s99
      %p108 = scmp.eq.s32.totalorder %s30, 0
      %p109 = por %p107, %p108
      %p110 = scmp.ne.s32.totalorder %s98, %s99
      %p111 = scmp.eq.s32.totalorder %s31, 1
      %p112 = por %p110, %p111
      %p114 = scmp.ne.s32.totalorder %s99, %s113
      %p115 = scmp.eq.s32.totalorder %s31, 0
      %p116 = por %p114, %p115
      %s118 = sadd.s32 %s117, 1
      %p121 = scmp.eq.s32.totalorder %s25, 1
      %p122 = scmp.ne.s32.totalorder %s117, %s119
      %p123 = scmp.eq.s32.totalorder %s25, 0
      %p124 = por %p122, %p123
      %p125 = scmp.ne.s32.totalorder %s117, %s119
      %p126 = scmp.eq.s32.totalorder %s30, 1
      %p127 = por %p125, %p126
      %p128 = scmp.ne.s32.totalorder %s119, %s120
      %p129 = scmp.eq.s32.totalorder %s30, 0
      %p130 = por %p128, %p129
      %p131 = scmp.ne.s32.totalorder %s119, %s120
      %p132 = scmp.eq.s32.totalorder %s31, 1
      %p133 = por %p131, %p132
      %p135 = scmp.ne.s32.totalorder %s120, %s134
      %p136 = scmp.eq.s32.totalorder %s31, 0
      %p137 = por %p135, %p136
      %s139 = sadd.s32 %s138, 1
      %p142 = scmp.eq.s32.totalorder %s25, 1
      %p143 = scmp.ne.s32.totalorder %s138, %s140
      %p144 = scmp.eq.s32.totalorder %s25, 0
      %p145 = por %p143, %p144
      %p146 = scmp.ne.s32.totalorder %s138, %s140
      %p147 = scmp.eq.s32.totalorder %s30, 1
      %p148 = por %p146, %p147
      %p149 = scmp.ne.s32.totalorder %s140, %s141
      %p150 = scmp.eq.s32.totalorder %s30, 0
      %p151 = por %p149, %p150
      %p152 = scmp.ne.s32.totalorder %s140, %s141
      %p153 = scmp.eq.s32.totalorder %s31, 1
      %p154 = por %p152, %p153
      %p156 = scmp.ne.s32.totalorder %s141, %s155
      %p157 = scmp.eq.s32.totalorder %s31, 0
      %p158 = por %p156, %p157
      %s159 = ssub.s32 %s25, %s32
      %p160 = scmp.eq.s32.totalorder %s159, 0
      %s162 = sadd.s32 %s161, 1
      %s163 = scalar_select %p160, %s161, %s162
      %p166 = pneg %p160
      %p167 = scmp.eq.s32.totalorder %s25, 1
      %p168 = por %p166, %p167
      %p169 = scmp.ne.s32.totalorder %s161, %s164
      %p170 = scmp.eq.s32.totalorder %s25, 0
      %p171 = por %p169, %p170
      %p172 = scmp.ne.s32.totalorder %s161, %s164
      %p173 = scmp.eq.s32.totalorder %s30, 1
      %p174 = por %p172, %p173
      %p175 = scmp.ne.s32.totalorder %s164, %s165
      %p176 = scmp.eq.s32.totalorder %s30, 0
      %p177 = por %p175, %p176
      %p178 = scmp.ne.s32.totalorder %s164, %s165
      %p179 = scmp.eq.s32.totalorder %s31, 1
      %p180 = por %p178, %p179
      %p182 = scmp.ne.s32.totalorder %s165, %s181
      %p183 = scmp.eq.s32.totalorder %s31, 0
      %p184 = por %p182, %p183
      %s185 = ssub.s32 %s25, %s32
      %p186 = scmp.eq.s32.totalorder %s185, 0
      %s188 = sadd.s32 %s187, 1
      %s189 = scalar_select %p186, %s187, %s188
      %p192 = pneg %p186
      %p193 = scmp.eq.s32.totalorder %s25, 1
      %p194 = por %p192, %p193
      %p195 = scmp.ne.s32.totalorder %s187, %s190
      %p196 = scmp.eq.s32.totalorder %s25, 0
      %p197 = por %p195, %p196
      %p198 = scmp.ne.s32.totalorder %s187, %s190
      %p199 = scmp.eq.s32.totalorder %s30, 1
      %p200 = por %p198, %p199
      %p201 = scmp.ne.s32.totalorder %s190, %s191
      %p202 = scmp.eq.s32.totalorder %s30, 0
      %p203 = por %p201, %p202
      %p204 = scmp.ne.s32.totalorder %s190, %s191
      %p205 = scmp.eq.s32.totalorder %s31, 1
      %p206 = por %p204, %p205
      %p208 = scmp.ne.s32.totalorder %s191, %s207
      %p209 = scmp.eq.s32.totalorder %s31, 0
      %p210 = por %p208, %p209
      %s211 = ssub.s32 %s25, %s32
      %p212 = scmp.eq.s32.totalorder %s211, 0
      %s214 = sadd.s32 %s213, 1
      %s215 = scalar_select %p212, %s213, %s214
      %p218 = pneg %p212
      %p219 = scmp.eq.s32.totalorder %s25, 1
      %p220 = por %p218, %p219
      %p221 = scmp.ne.s32.totalorder %s213, %s216
      %p222 = scmp.eq.s32.totalorder %s25, 0
      %p223 = por %p221, %p222
      %p224 = scmp.ne.s32.totalorder %s213, %s216
      %p225 = scmp.eq.s32.totalorder %s30, 1
      %p226 = por %p224, %p225
      %p227 = scmp.ne.s32.totalorder %s216, %s217
      %p228 = scmp.eq.s32.totalorder %s30, 0
      %p229 = por %p227, %p228
      %p230 = scmp.ne.s32.totalorder %s216, %s217
      %p231 = scmp.eq.s32.totalorder %s31, 1
      %p232 = por %p230, %p231
      %p234 = scmp.ne.s32.totalorder %s217, %s233
      %p235 = scmp.eq.s32.totalorder %s31, 0
      %p236 = por %p234, %p235
      %p237 = scmp.le.s32.totalorder 1, %s25
      %p238 = scmp.lt.s32.totalorder %s25, 3
      %p239 = pnand %p237, %p238
      %p240 = pneg %p239
      // Predicated region
      $region9: #{tpu_custom_call.1} parent=5 // pred_check
        _
      $region10: #{tpu_custom_call.1} parent=5 // pred_check_branch
        %242 = sbr.rel (%p239) target = $region12
      $region11: #{tpu_custom_call.1} parent=5 // pred_region
        %s243 = ssub.s32 %s25, 1
        // Predicated region
        $region13: #{tpu_custom_call.1} parent=11 // pred_check
          %p244 = pneg %p46
        $region14: #{tpu_custom_call.1} parent=11 // pred_check_branch
          %246 = sbr.rel (%p244) target = $region16
        $region15: #{tpu_custom_call.1} parent=11 // pred_region
          %s248 = ssub.s32 16, 16
          %249 = vsyncadd [#allocation8], %s248
          %s251 = sshll.u32 %s0, 4
          %s252 = int_to_ptr.vmem [resolvable:$true] %s251
          %254 = dma.vmem_to_smem %s252, 16, [#allocation4], [#allocation8]
        $region16: #{tpu_custom_call.1} parent=11 // pred_fallthru
          _
        // Predicated region
        $region17: #{tpu_custom_call.1} parent=11 // pred_check
          %p255 = pneg %p67
        $region18: #{tpu_custom_call.1} parent=11 // pred_check_branch
          %257 = sbr.rel (%p255) target = $region20
        $region19: #{tpu_custom_call.1} parent=11 // pred_region
          %s259 = ssub.s32 16, 16
          %260 = vsyncadd [#allocation10], %s259
          %s262 = sshll.u32 %s1, 4
          %s263 = int_to_ptr.vmem [resolvable:$true] %s262
          %265 = dma.vmem_to_smem %s263, 16, [#allocation9], [#allocation10]
        $region20: #{tpu_custom_call.1} parent=11 // pred_fallthru
          _
        // Predicated region
        $region21: #{tpu_custom_call.1} parent=11 // pred_check
          %p266 = pneg %p88
        $region22: #{tpu_custom_call.1} parent=11 // pred_check_branch
          %268 = sbr.rel (%p266) target = $region24
        $region23: #{tpu_custom_call.1} parent=11 // pred_region
          %s270 = ssub.s32 16, 16
          %271 = vsyncadd [#allocation7], %s270
          %274 = dma.hbm_to_smem %s2, 16, [#allocation11], [#allocation7]
        $region24: #{tpu_custom_call.1} parent=11 // pred_fallthru
          _
        // Predicated region
        $region25: #{tpu_custom_call.1} parent=11 // pred_check
          %p275 = pneg %p109
        $region26: #{tpu_custom_call.1} parent=11 // pred_check_branch
          %277 = sbr.rel (%p275) target = $region28
        $region27: #{tpu_custom_call.1} parent=11 // pred_region
          %s279 = ssub.s32 16, 16
          %280 = vsyncadd [#allocation13], %s279
          %283 = dma.hbm_to_smem %s3, 16, [#allocation12], [#allocation13]
        $region28: #{tpu_custom_call.1} parent=11 // pred_fallthru
          _
        // Predicated region
        $region29: #{tpu_custom_call.1} parent=11 // pred_check
          %p284 = pneg %p130
        $region30: #{tpu_custom_call.1} parent=11 // pred_check_branch
          %286 = sbr.rel (%p284) target = $region32
        $region31: #{tpu_custom_call.1} parent=11 // pred_region
          _
        $region32: #{tpu_custom_call.1} parent=11 // pred_fallthru
          _
        // Predicated region
        $region33: #{tpu_custom_call.1} parent=11 // pred_check
          %p287 = pneg %p151
        $region34: #{tpu_custom_call.1} parent=11 // pred_check_branch
          %289 = sbr.rel (%p287) target = $region36
        $region35: #{tpu_custom_call.1} parent=11 // pred_region
          %s291 = ssub.s32 128, 128
          %292 = vsyncadd [#allocation5], %s291
          %s294 = sshll.u32 [#allocation14], 4
          %s295 = int_to_ptr.vmem [resolvable:$true] %s294
          %297 = dma.hbm_to_vmem [thread:$0]  %s5, 128, %s295, [#allocation5]
        $region36: #{tpu_custom_call.1} parent=11 // pred_fallthru
          _
      $region12: #{tpu_custom_call.1} parent=5 // pred_fallthru
        _
      %p298 = scmp.lt.s32.totalorder %s25, 2
      // Predicated region
      $region37: #{tpu_custom_call.1} parent=5 // pred_check
        %p299 = pneg %p298
      $region38: #{tpu_custom_call.1} parent=5 // pred_check_branch
        %301 = sbr.rel (%p299) target = $region40
      $region39: #{tpu_custom_call.1} parent=5 // pred_region
        // Predicated region
        $region41: #{tpu_custom_call.1} parent=39 // pred_check
          %p302 = pneg %p171
        $region42: #{tpu_custom_call.1} parent=39 // pred_check_branch
          %304 = sbr.rel (%p302) target = $region44
        $region43: #{tpu_custom_call.1} parent=39 // pred_region
          %p305 = scmp.lt.s32.totalorder %s25, 1
          %s306 = scalar_select %p305, %s25, 1
          %s307 = smul.addr %s306, 2
          %s308 = smul.addr %s307, 8
          %s309 = scalar_lea.vmem %s6, %s308
        $region44: #{tpu_custom_call.1} parent=39 // pred_fallthru
          _
        // Predicated region
        $region45: #{tpu_custom_call.1} parent=39 // pred_check
          %p310 = pneg %p197
        $region46: #{tpu_custom_call.1} parent=39 // pred_check_branch
          %312 = sbr.rel (%p310) target = $region48
        $region47: #{tpu_custom_call.1} parent=39 // pred_region
          %s313 = sand.u32 %s187, 1
          %s314 = scalar_lea.sflag [#allocation16], %s313
          %s315 = sand.u32 %s187, 1
          %s316 = smul.addr %s315, 32
          %s317 = scalar_lea.vmem [#allocation15], %s316
          %s319 = ssub.s32 512, 512
          %320 = vsyncadd %s314, %s319
          %s321 = smul.addr %s25, 4
          %s322 = smul.addr %s321, 128
          %s323 = scalar_lea.hbm %s7, %s322
          %s324 = sshll.u32 %s317, 4
          %s325 = int_to_ptr.vmem [resolvable:$true] %s324
          %330 = dma.hbm_to_vmem [thread:$0]  %s323, 512, %s325, %s314, 128, 128, 8
        $region48: #{tpu_custom_call.1} parent=39 // pred_fallthru
          _
      $region40: #{tpu_custom_call.1} parent=5 // pred_fallthru
        _
      %p331 = scmp.le.s32.totalorder 1, %s25
      %p332 = scmp.lt.s32.totalorder %s25, 3
      %p333 = pnand %p331, %p332
      %p334 = pneg %p333
      // Predicated region
      $region49: #{tpu_custom_call.1} parent=5 // pred_check
        _
      $region50: #{tpu_custom_call.1} parent=5 // pred_check_branch
        %336 = sbr.rel (%p333) target = $region52
      $region51: #{tpu_custom_call.1} parent=5 // pred_region
        %s337 = ssub.s32 %s25, 1
        // Predicated region
        $region53: #{tpu_custom_call.1} parent=51 // pred_check
          %p338 = pneg %p46
        $region54: #{tpu_custom_call.1} parent=51 // pred_check_branch
          %340 = sbr.rel (%p338) target = $region56
        $region55: #{tpu_custom_call.1} parent=51 // pred_region
          %341 = dma.done [#allocation8], 16
        $region56: #{tpu_custom_call.1} parent=51 // pred_fallthru
          _
        // Predicated region
        $region57: #{tpu_custom_call.1} parent=51 // pred_check
          %p342 = pneg %p67
        $region58: #{tpu_custom_call.1} parent=51 // pred_check_branch
          %344 = sbr.rel (%p342) target = $region60
        $region59: #{tpu_custom_call.1} parent=51 // pred_region
          %345 = dma.done [#allocation10], 16
        $region60: #{tpu_custom_call.1} parent=51 // pred_fallthru
          _
        // Predicated region
        $region61: #{tpu_custom_call.1} parent=51 // pred_check
          %p346 = pneg %p88
        $region62: #{tpu_custom_call.1} parent=51 // pred_check_branch
          %348 = sbr.rel (%p346) target = $region64
        $region63: #{tpu_custom_call.1} parent=51 // pred_region
          %349 = dma.done [#allocation7], 16
        $region64: #{tpu_custom_call.1} parent=51 // pred_fallthru
          _
        // Predicated region
        $region65: #{tpu_custom_call.1} parent=51 // pred_check
          %p350 = pneg %p109
        $region66: #{tpu_custom_call.1} parent=51 // pred_check_branch
          %352 = sbr.rel (%p350) target = $region68
        $region67: #{tpu_custom_call.1} parent=51 // pred_region
          %353 = dma.done [#allocation13], 16
        $region68: #{tpu_custom_call.1} parent=51 // pred_fallthru
          _
        // Predicated region
        $region69: #{tpu_custom_call.1} parent=51 // pred_check
          %p354 = pneg %p151
        $region70: #{tpu_custom_call.1} parent=51 // pred_check_branch
          %356 = sbr.rel (%p354) target = $region72
        $region71: #{tpu_custom_call.1} parent=51 // pred_region
          %357 = dma.done [#allocation5], 128
        $region72: #{tpu_custom_call.1} parent=51 // pred_fallthru
          _
        %s358 = sand.u32 %s190, 1
        %s359 = scalar_lea.sflag [#allocation16], %s358
        %s360 = sand.u32 %s190, 1
        %s361 = smul.addr %s360, 32
        %s362 = scalar_lea.vmem [#allocation15], %s361
        // Predicated region
        $region73: #{tpu_custom_call.1} parent=51 // pred_check
          %p363 = pneg %p203
        $region74: #{tpu_custom_call.1} parent=51 // pred_check_branch
          %365 = sbr.rel (%p363) target = $region76
        $region75: #{tpu_custom_call.1} parent=51 // pred_region
          %366 = dma.done %s359, 512
        $region76: #{tpu_custom_call.1} parent=51 // pred_fallthru
          _
        %367 = sfence
        %p368 = pneg %p46
        %p369 = pneg %p43
        %p370 = pneg %p67
        %p371 = pneg %p64
        %p372 = pneg %p88
        %p373 = pneg %p85
        %p374 = pneg %p109
        %p375 = pneg %p106
        %p376 = pneg %p130
        %p377 = pneg %p127
        %p378 = pneg %p151
        %p379 = pneg %p148
        %p380 = scmp.lt.s32.totalorder %s30, 1
        %s381 = scalar_select %p380, %s30, 1
        %s382 = smul.addr %s381, 2
        %s383 = smul.addr %s382, 8
        %s384 = scalar_lea.vmem %s6, %s383
        %p385 = pneg %p177
        %p386 = pneg %p174
        %s387 = sand.u32 %s190, 1
        %s388 = scalar_lea.sflag [#allocation16], %s387
        %s389 = sand.u32 %s190, 1
        %s390 = smul.addr %s389, 32
        %s391 = scalar_lea.vmem [#allocation15], %s390
        %p392 = pneg %p203
        %p393 = pneg %p200
        %p394 = pneg %p229
        %p395 = pneg %p226
        %s396 = sand.u32 %s216, 1
        %s397 = scalar_lea.sflag [#allocation6], %s396
        %s398 = sand.u32 %s216, 1
        %s399 = smul.addr %s398, 64
        %s400 = scalar_lea.vmem [#allocation17], %s399
        %p401 = scmp.lt.s32.totalorder %s30, 1
        %s402 = scalar_select %p401, %s30, 1
        %s403 = smul.addr %s402, 2
        %s404 = smul.addr %s403, 8
        %s405 = scalar_lea.vmem %s6, %s404
        %vm406 = vcmask 146432
        %407 = vst.msk [vmem:[#allocation2] sm:$0xff] %vm406, 0.0
        %408 = vst.msk [vmem:[#allocation2 + $0x8] sm:$0xff] %vm406, 0.0
        %vm409 = vcmask 140288
        %410 = vst.msk [vmem:[#allocation2 + $0x10] sm:$0x3] %vm409, 0.0
        %411 = vst.msk [vmem:[#allocation2 + $0x18] sm:$0xff] %vm406, 0.0
        %412 = vst.msk [vmem:[#allocation2 + $0x20] sm:$0xff] %vm406, 0.0
        %413 = vst.msk [vmem:[#allocation2 + $0x28] sm:$0x3] %vm409, 0.0
        %414 = vst.msk [vmem:[#allocation2 + $0x30] sm:$0xff] %vm406, 0.0
        %415 = vst.msk [vmem:[#allocation2 + $0x38] sm:$0xff] %vm406, 0.0
        %416 = vst.msk [vmem:[#allocation2 + $0x40] sm:$0x3] %vm409, 0.0
        %417 = vst.msk [vmem:[#allocation2 + $0x48] sm:$0xff] %vm406, 0.0
        %418 = vst.msk [vmem:[#allocation2 + $0x50] sm:$0xff] %vm406, 0.0
        %419 = vst.msk [vmem:[#allocation2 + $0x58] sm:$0x3] %vm409, 0.0
        %v420 = vld [vmem:[%s362] sm:$0xff]
        %v421 = vld [vmem:[%s362 + $0x8] sm:$0xff]
        %424 = vrot.lane.b32.xlu0 %v420, 1
        %v425 = vpop.permute.xlu0 %424
        %426 = vrot.lane.b32.xlu0 %v421, 1
        %v427 = vpop.permute.xlu0 %426
        %vm430 = vcmask 138248
        %431 = vst.msk [vmem:[#allocation2 + $0x1] sm:$0xff] %vm430, %v425
        %432 = vst.msk [vmem:[#allocation2 + $0x9] sm:$0xff] %vm430, %v427
        %s433 = scalar_lea.vmem %s362, 16 [#allocation15]
        %v434 = vld [vmem:[%s433] sm:$0xff]
        %v435 = vld [vmem:[%s433 + $0x8] sm:$0xff]
        %438 = vrot.lane.b32.xlu0 %v434, 1
        %v439 = vpop.permute.xlu0 %438
        %440 = vrot.lane.b32.xlu0 %v435, 1
        %v441 = vpop.permute.xlu0 %440
        %s444 = scalar_lea.vmem [#allocation2], 24
        %445 = vst.msk [vmem:[%s444 + $0x1] sm:$0xff] %vm430, %v439
        %446 = vst.msk [vmem:[%s444 + $0x9] sm:$0xff] %vm430, %v441
        %v447 = vld [vmem:[%s4] sm:$0xff]
        %v448 = vld [vmem:[%s4 + $0x8] sm:$0xff]
        %v449 = vld [vmem:[#allocation14] sm:$0xff]
        %v450 = vld [vmem:[%s405] sm:$0xff]
        %vm451 = vcmask 64512
        %v453 = vsel %vm451, %v447, 0
        %v456 = vsel %vm451, %v448, 0
        %458 = vmatprep.subr.mxu0 0.0
        %459 = vmatpush1.msra.mxu0 0.0
        %460 = vmatprep.subr.mxu0 0.0
        %461 = vmatpush1.msra.mxu0 0.0
        %462 = vmatprep.subr.mxu0 0.0
        %463 = vmatpush1.msra.mxu0 0.0
        %464 = vmatprep.subr.mxu0 0.0
        %465 = vmatpush1.msra.mxu0 0.0
        %466 = vmatprep.subr.mxu0 0.0
        %467 = vmatpush1.msra.mxu0 0.0
        %468 = vmatprep.subr.mxu0 0.0
        %469 = vmatpush1.msra.mxu0 0.0
        %470 = vmatprep.subr.mxu0 0.0
        %471 = vmatpush1.msra.mxu0 0.0
        %472 = vmatprep.subr.mxu0 0.0
        %473 = vmatpush1.msra.mxu0 0.0
        %474 = vmatprep.subr.mxu0 0.0
        %475 = vmatpush1.msra.mxu0 0.0
        %476 = vmatprep.subr.mxu0 0.0
        %477 = vmatpush1.msra.mxu0 0.0
        %478 = vmatprep.subr.mxu0 0.0
        %479 = vmatpush1.msra.mxu0 0.0
        %480 = vmatprep.subr.mxu0 0.0
        %481 = vmatpush1.msra.mxu0 0.0
        %482 = vmatprep.subr.mxu0 0.0
        %483 = vmatpush1.msra.mxu0 0.0
        %484 = vmatprep.subr.mxu0 0.0
        %485 = vmatpush1.msra.mxu0 0.0
        %486 = vmatprep.subr.mxu0 0.0
        %487 = vmatpush1.msra.mxu0 0.0
        %488 = vmatprep.subr.mxu0 0.0
        %489 = vmatpush1.msra.mxu0 %v450
        %490 = vmatprep.subr.mxu0 0.0
        %491 = vmatpush2.msra.mxu0 0.0
        %492 = vmatprep.subr.mxu0 0.0
        %493 = vmatpush2.msra.mxu0 0.0
        %494 = vmatprep.subr.mxu0 0.0
        %495 = vmatpush2.msra.mxu0 0.0
        %496 = vmatprep.subr.mxu0 0.0
        %497 = vmatpush2.msra.mxu0 0.0
        %498 = vmatprep.subr.mxu0 0.0
        %499 = vmatpush2.msra.mxu0 0.0
        %500 = vmatprep.subr.mxu0 0.0
        %501 = vmatpush2.msra.mxu0 0.0
        %502 = vmatprep.subr.mxu0 0.0
        %503 = vmatpush2.msra.mxu0 0.0
        %504 = vmatprep.subr.mxu0 0.0
        %505 = vmatpush2.msra.mxu0 0.0
        %506 = vmatprep.subr.mxu0 0.0
        %507 = vmatpush2.msra.mxu0 0.0
        %508 = vmatprep.subr.mxu0 0.0
        %509 = vmatpush2.msra.mxu0 0.0
        %510 = vmatprep.subr.mxu0 0.0
        %511 = vmatpush2.msra.mxu0 0.0
        %512 = vmatprep.subr.mxu0 0.0
        %513 = vmatpush2.msra.mxu0 0.0
        %514 = vmatprep.subr.mxu0 0.0
        %515 = vmatpush2.msra.mxu0 0.0
        %516 = vmatprep.subr.mxu0 0.0
        %517 = vmatpush2.msra.mxu0 0.0
        %518 = vmatprep.subr.mxu0 0.0
        %519 = vmatpush2.msra.mxu0 0.0
        %520 = vmatprep.subr.mxu0 0.0
        %521 = vmatpush2.msra.mxu0 0.0
        %522 = vmatprep.mubr.f32.mxu0 0.0
        %523 = vmatmul.mubr.f32.gmra.mxu0 %v453
        %v524 = vpop.f32.mrf.mxu0
        %v525 = vadd.f32 0.0, %v524
        %v526 = vpop.f32.mrf.mxu0
        %527 = vmatprep.mubr.f32.mxu0 0.0
        %528 = vmatmul.mubr.f32.gmra.mxu0 %v456
        %v529 = vpop.f32.mrf.mxu0
        %v530 = vadd.f32 0.0, %v529
        %v531 = vpop.f32.mrf.mxu0
        %532 = vdwg.mxu0
        %v534 = vsel %vm451, %v525, 0
        %v537 = vsel %vm451, %v530, 0
        %539 = vmatprep.subr.mxu0 0.0
        %540 = vmatpush1.msra.mxu0 0.0
        %541 = vmatprep.subr.mxu0 0.0
        %542 = vmatpush1.msra.mxu0 0.0
        %543 = vmatprep.subr.mxu0 0.0
        %544 = vmatpush1.msra.mxu0 0.0
        %545 = vmatprep.subr.mxu0 0.0
        %546 = vmatpush1.msra.mxu0 0.0
        %547 = vmatprep.subr.mxu0 0.0
        %548 = vmatpush1.msra.mxu0 0.0
        %549 = vmatprep.subr.mxu0 0.0
        %550 = vmatpush1.msra.mxu0 0.0
        %551 = vmatprep.subr.mxu0 0.0
        %552 = vmatpush1.msra.mxu0 0.0
        %553 = vmatprep.subr.mxu0 0.0
        %554 = vmatpush1.msra.mxu0 0.0
        %555 = vmatprep.subr.mxu0 0.0
        %556 = vmatpush1.msra.mxu0 0.0
        %557 = vmatprep.subr.mxu0 0.0
        %558 = vmatpush1.msra.mxu0 0.0
        %559 = vmatprep.subr.mxu0 0.0
        %560 = vmatpush1.msra.mxu0 0.0
        %561 = vmatprep.subr.mxu0 0.0
        %562 = vmatpush1.msra.mxu0 0.0
        %563 = vmatprep.subr.mxu0 0.0
        %564 = vmatpush1.msra.mxu0 0.0
        %565 = vmatprep.subr.mxu0 0.0
        %566 = vmatpush1.msra.mxu0 0.0
        %567 = vmatprep.subr.mxu0 0.0
        %568 = vmatpush1.msra.mxu0 0.0
        %569 = vmatprep.subr.mxu0 0.0
        %570 = vmatpush1.msra.mxu0 %v449
        %571 = vmatprep.subr.mxu0 0.0
        %572 = vmatpush2.msra.mxu0 0.0
        %573 = vmatprep.subr.mxu0 0.0
        %574 = vmatpush2.msra.mxu0 0.0
        %575 = vmatprep.subr.mxu0 0.0
        %576 = vmatpush2.msra.mxu0 0.0
        %577 = vmatprep.subr.mxu0 0.0
        %578 = vmatpush2.msra.mxu0 0.0
        %579 = vmatprep.subr.mxu0 0.0
        %580 = vmatpush2.msra.mxu0 0.0
        %581 = vmatprep.subr.mxu0 0.0
        %582 = vmatpush2.msra.mxu0 0.0
        %583 = vmatprep.subr.mxu0 0.0
        %584 = vmatpush2.msra.mxu0 0.0
        %585 = vmatprep.subr.mxu0 0.0
        %586 = vmatpush2.msra.mxu0 0.0
        %587 = vmatprep.subr.mxu0 0.0
        %588 = vmatpush2.msra.mxu0 0.0
        %589 = vmatprep.subr.mxu0 0.0
        %590 = vmatpush2.msra.mxu0 0.0
        %591 = vmatprep.subr.mxu0 0.0
        %592 = vmatpush2.msra.mxu0 0.0
        %593 = vmatprep.subr.mxu0 0.0
        %594 = vmatpush2.msra.mxu0 0.0
        %595 = vmatprep.subr.mxu0 0.0
        %596 = vmatpush2.msra.mxu0 0.0
        %597 = vmatprep.subr.mxu0 0.0
        %598 = vmatpush2.msra.mxu0 0.0
        %599 = vmatprep.subr.mxu0 0.0
        %600 = vmatpush2.msra.mxu0 0.0
        %601 = vmatprep.subr.mxu0 0.0
        %602 = vmatpush2.msra.mxu0 0.0
        %603 = vmatprep.mubr.f32.mxu0 0.0
        %604 = vmatmul.mubr.f32.gmra.mxu0 %v534
        %v605 = vpop.f32.mrf.mxu0
        %v606 = vadd.f32 0.0, %v605
        %v607 = vpop.f32.mrf.mxu0
        %608 = vmatprep.mubr.f32.mxu0 0.0
        %609 = vmatmul.mubr.f32.gmra.mxu0 %v537
        %v610 = vpop.f32.mrf.mxu0
        %v611 = vadd.f32 0.0, %v610
        %v612 = vpop.f32.mrf.mxu0
        %613 = vdwg.mxu0
        %616 = vrot.lane.b32.xlu0 %v606, 1
        %v617 = vpop.permute.xlu0 %616
        %618 = vrot.lane.b32.xlu0 %v611, 1
        %v619 = vpop.permute.xlu0 %618
        %s622 = scalar_lea.vmem [#allocation2], 48
        %623 = vst.msk [vmem:[%s622 + $0x1] sm:$0xff] %vm430, %v617
        %624 = vst.msk [vmem:[%s622 + $0x9] sm:$0xff] %vm430, %v619
        %s625 = scalar_lea.vmem %s405, 8
        %v626 = vld [vmem:[%s625] sm:$0xff]
        %627 = vmatprep.subr.mxu0 0.0
        %628 = vmatpush1.msra.mxu0 0.0
        %629 = vmatprep.subr.mxu0 0.0
        %630 = vmatpush1.msra.mxu0 0.0
        %631 = vmatprep.subr.mxu0 0.0
        %632 = vmatpush1.msra.mxu0 0.0
        %633 = vmatprep.subr.mxu0 0.0
        %634 = vmatpush1.msra.mxu0 0.0
        %635 = vmatprep.subr.mxu0 0.0
        %636 = vmatpush1.msra.mxu0 0.0
        %637 = vmatprep.subr.mxu0 0.0
        %638 = vmatpush1.msra.mxu0 0.0
        %639 = vmatprep.subr.mxu0 0.0
        %640 = vmatpush1.msra.mxu0 0.0
        %641 = vmatprep.subr.mxu0 0.0
        %642 = vmatpush1.msra.mxu0 0.0
        %643 = vmatprep.subr.mxu0 0.0
        %644 = vmatpush1.msra.mxu0 0.0
        %645 = vmatprep.subr.mxu0 0.0
        %646 = vmatpush1.msra.mxu0 0.0
        %647 = vmatprep.subr.mxu0 0.0
        %648 = vmatpush1.msra.mxu0 0.0
        %649 = vmatprep.subr.mxu0 0.0
        %650 = vmatpush1.msra.mxu0 0.0
        %651 = vmatprep.subr.mxu0 0.0
        %652 = vmatpush1.msra.mxu0 0.0
        %653 = vmatprep.subr.mxu0 0.0
        %654 = vmatpush1.msra.mxu0 0.0
        %655 = vmatprep.subr.mxu0 0.0
        %656 = vmatpush1.msra.mxu0 0.0
        %657 = vmatprep.subr.mxu0 0.0
        %658 = vmatpush1.msra.mxu0 %v626
        %659 = vmatprep.subr.mxu0 0.0
        %660 = vmatpush2.msra.mxu0 0.0
        %661 = vmatprep.subr.mxu0 0.0
        %662 = vmatpush2.msra.mxu0 0.0
        %663 = vmatprep.subr.mxu0 0.0
        %664 = vmatpush2.msra.mxu0 0.0
        %665 = vmatprep.subr.mxu0 0.0
        %666 = vmatpush2.msra.mxu0 0.0
        %667 = vmatprep.subr.mxu0 0.0
        %668 = vmatpush2.msra.mxu0 0.0
        %669 = vmatprep.subr.mxu0 0.0
        %670 = vmatpush2.msra.mxu0 0.0
        %671 = vmatprep.subr.mxu0 0.0
        %672 = vmatpush2.msra.mxu0 0.0
        %673 = vmatprep.subr.mxu0 0.0
        %674 = vmatpush2.msra.mxu0 0.0
        %675 = vmatprep.subr.mxu0 0.0
        %676 = vmatpush2.msra.mxu0 0.0
        %677 = vmatprep.subr.mxu0 0.0
        %678 = vmatpush2.msra.mxu0 0.0
        %679 = vmatprep.subr.mxu0 0.0
        %680 = vmatpush2.msra.mxu0 0.0
        %681 = vmatprep.subr.mxu0 0.0
        %682 = vmatpush2.msra.mxu0 0.0
        %683 = vmatprep.subr.mxu0 0.0
        %684 = vmatpush2.msra.mxu0 0.0
        %685 = vmatprep.subr.mxu0 0.0
        %686 = vmatpush2.msra.mxu0 0.0
        %687 = vmatprep.subr.mxu0 0.0
        %688 = vmatpush2.msra.mxu0 0.0
        %689 = vmatprep.subr.mxu0 0.0
        %690 = vmatpush2.msra.mxu0 0.0
        %691 = vmatprep.mubr.f32.mxu0 0.0
        %692 = vmatmul.mubr.f32.gmra.mxu0 %v453
        %v693 = vpop.f32.mrf.mxu0
        %v694 = vadd.f32 0.0, %v693
        %v695 = vpop.f32.mrf.mxu0
        %696 = vmatprep.mubr.f32.mxu0 0.0
        %697 = vmatmul.mubr.f32.gmra.mxu0 %v456
        %v698 = vpop.f32.mrf.mxu0
        %v699 = vadd.f32 0.0, %v698
        %v700 = vpop.f32.mrf.mxu0
        %701 = vdwg.mxu0
        %v703 = vsel %vm451, %v694, 0
        %v706 = vsel %vm451, %v699, 0
        %708 = vmatprep.subr.mxu0 0.0
        %709 = vmatpush1.msra.mxu0 0.0
        %710 = vmatprep.subr.mxu0 0.0
        %711 = vmatpush1.msra.mxu0 0.0
        %712 = vmatprep.subr.mxu0 0.0
        %713 = vmatpush1.msra.mxu0 0.0
        %714 = vmatprep.subr.mxu0 0.0
        %715 = vmatpush1.msra.mxu0 0.0
        %716 = vmatprep.subr.mxu0 0.0
        %717 = vmatpush1.msra.mxu0 0.0
        %718 = vmatprep.subr.mxu0 0.0
        %719 = vmatpush1.msra.mxu0 0.0
        %720 = vmatprep.subr.mxu0 0.0
        %721 = vmatpush1.msra.mxu0 0.0
        %722 = vmatprep.subr.mxu0 0.0
        %723 = vmatpush1.msra.mxu0 0.0
        %724 = vmatprep.subr.mxu0 0.0
        %725 = vmatpush1.msra.mxu0 0.0
        %726 = vmatprep.subr.mxu0 0.0
        %727 = vmatpush1.msra.mxu0 0.0
        %728 = vmatprep.subr.mxu0 0.0
        %729 = vmatpush1.msra.mxu0 0.0
        %730 = vmatprep.subr.mxu0 0.0
        %731 = vmatpush1.msra.mxu0 0.0
        %732 = vmatprep.subr.mxu0 0.0
        %733 = vmatpush1.msra.mxu0 0.0
        %734 = vmatprep.subr.mxu0 0.0
        %735 = vmatpush1.msra.mxu0 0.0
        %736 = vmatprep.subr.mxu0 0.0
        %737 = vmatpush1.msra.mxu0 0.0
        %738 = vmatprep.subr.mxu0 0.0
        %739 = vmatpush1.msra.mxu0 %v449
        %740 = vmatprep.subr.mxu0 0.0
        %741 = vmatpush2.msra.mxu0 0.0
        %742 = vmatprep.subr.mxu0 0.0
        %743 = vmatpush2.msra.mxu0 0.0
        %744 = vmatprep.subr.mxu0 0.0
        %745 = vmatpush2.msra.mxu0 0.0
        %746 = vmatprep.subr.mxu0 0.0
        %747 = vmatpush2.msra.mxu0 0.0
        %748 = vmatprep.subr.mxu0 0.0
        %749 = vmatpush2.msra.mxu0 0.0
        %750 = vmatprep.subr.mxu0 0.0
        %751 = vmatpush2.msra.mxu0 0.0
        %752 = vmatprep.subr.mxu0 0.0
        %753 = vmatpush2.msra.mxu0 0.0
        %754 = vmatprep.subr.mxu0 0.0
        %755 = vmatpush2.msra.mxu0 0.0
        %756 = vmatprep.subr.mxu0 0.0
        %757 = vmatpush2.msra.mxu0 0.0
        %758 = vmatprep.subr.mxu0 0.0
        %759 = vmatpush2.msra.mxu0 0.0
        %760 = vmatprep.subr.mxu0 0.0
        %761 = vmatpush2.msra.mxu0 0.0
        %762 = vmatprep.subr.mxu0 0.0
        %763 = vmatpush2.msra.mxu0 0.0
        %764 = vmatprep.subr.mxu0 0.0
        %765 = vmatpush2.msra.mxu0 0.0
        %766 = vmatprep.subr.mxu0 0.0
        %767 = vmatpush2.msra.mxu0 0.0
        %768 = vmatprep.subr.mxu0 0.0
        %769 = vmatpush2.msra.mxu0 0.0
        %770 = vmatprep.subr.mxu0 0.0
        %771 = vmatpush2.msra.mxu0 0.0
        %772 = vmatprep.mubr.f32.mxu0 0.0
        %773 = vmatmul.mubr.f32.gmra.mxu0 %v703
        %v774 = vpop.f32.mrf.mxu0
        %v775 = vadd.f32 0.0, %v774
        %v776 = vpop.f32.mrf.mxu0
        %777 = vmatprep.mubr.f32.mxu0 0.0
        %778 = vmatmul.mubr.f32.gmra.mxu0 %v706
        %v779 = vpop.f32.mrf.mxu0
        %v780 = vadd.f32 0.0, %v779
        %v781 = vpop.f32.mrf.mxu0
        %782 = vdwg.mxu0
        %785 = vrot.lane.b32.xlu0 %v775, 1
        %v786 = vpop.permute.xlu0 %785
        %787 = vrot.lane.b32.xlu0 %v780, 1
        %v788 = vpop.permute.xlu0 %787
        %s791 = scalar_lea.vmem [#allocation2], 72
        %792 = vst.msk [vmem:[%s791 + $0x1] sm:$0xff] %vm430, %v786
        %793 = vst.msk [vmem:[%s791 + $0x9] sm:$0xff] %vm430, %v788
        %794 = vst.msk [vmem:[#allocation3] sm:$0xff] %vm406, 0.0
        %795 = vst.msk [vmem:[#allocation3 + $0x8] sm:$0xff] %vm406, 0.0
        %796 = vst.msk [vmem:[#allocation3 + $0x10] sm:$0x3] %vm409, 0.0
        %797 = vst.msk [vmem:[#allocation3 + $0x18] sm:$0xff] %vm406, 0.0
        %798 = vst.msk [vmem:[#allocation3 + $0x20] sm:$0xff] %vm406, 0.0
        %799 = vst.msk [vmem:[#allocation3 + $0x28] sm:$0x3] %vm409, 0.0
        %s800 = sld [smem:[#allocation9]]
        %v801 = vstv %s800
        %v802 = vadd.f32 %v801, 0.0
        %s803 = sld [smem:[#allocation4]]
        %v804 = vld [vmem:[#allocation2] sm:$0xff]
        %v805 = vld [vmem:[#allocation2 + $0x8] sm:$0xff]
        %v806 = vstv %s803
        %v807 = vmul.f32 %v806, %v804
        %v808 = vmul.f32 %v806, %v805
        %v809 = vadd.f32 %v802, %v807
        %v810 = vadd.f32 %v802, %v808
        %s811 = sld [smem:[#allocation4 + $0x1]]
        %v812 = vstv %s811
        %v813 = vmul.f32 %v812, %v804
        %v814 = vmul.f32 %v812, %v805
        %817 = vrot.lane.b32.xlu0 %v813, 127
        %v818 = vpop.permute.xlu0 %817
        %819 = vrot.lane.b32.xlu0 %v814, 127
        %v820 = vpop.permute.xlu0 %819
        %v823 = vadd.f32 %v809, %v818
        %v824 = vadd.f32 %v810, %v820
        %s825 = sld [smem:[#allocation4 + $0x2]]
        %v826 = vstv %s825
        %v827 = vmul.f32 %v826, %v804
        %v828 = vmul.f32 %v826, %v805
        %831 = vrot.lane.b32.xlu0 %v827, 126
        %v832 = vpop.permute.xlu0 %831
        %833 = vrot.lane.b32.xlu0 %v828, 126
        %v834 = vpop.permute.xlu0 %833
        %v837 = vadd.f32 %v823, %v832
        %v838 = vadd.f32 %v824, %v834
        %s839 = sld [smem:[#allocation4 + $0x3]]
        %v840 = vld [vmem:[#allocation2 + $0x1] sm:$0xff]
        %v841 = vld [vmem:[#allocation2 + $0x9] sm:$0xff]
        %v842 = vstv %s839
        %v843 = vmul.f32 %v842, %v840
        %v844 = vmul.f32 %v842, %v841
        %v845 = vadd.f32 %v837, %v843
        %v846 = vadd.f32 %v838, %v844
        %s847 = sld [smem:[#allocation4 + $0x4]]
        %v848 = vstv %s847
        %v849 = vmul.f32 %v848, %v840
        %v850 = vmul.f32 %v848, %v841
        %853 = vrot.lane.b32.xlu0 %v849, 127
        %v854 = vpop.permute.xlu0 %853
        %855 = vrot.lane.b32.xlu0 %v850, 127
        %v856 = vpop.permute.xlu0 %855
        %v859 = vadd.f32 %v845, %v854
        %v860 = vadd.f32 %v846, %v856
        %s861 = sld [smem:[#allocation4 + $0x5]]
        %v862 = vstv %s861
        %v863 = vmul.f32 %v862, %v840
        %v864 = vmul.f32 %v862, %v841
        %867 = vrot.lane.b32.xlu0 %v863, 126
        %v868 = vpop.permute.xlu0 %867
        %869 = vrot.lane.b32.xlu0 %v864, 126
        %v870 = vpop.permute.xlu0 %869
        %v873 = vadd.f32 %v859, %v868
        %v874 = vadd.f32 %v860, %v870
        %s875 = sld [smem:[#allocation4 + $0x6]]
        %v876 = vld [vmem:[#allocation2 + $0x2] sm:$0xff]
        %v877 = vld [vmem:[#allocation2 + $0xa] sm:$0xff]
        %v878 = vstv %s875
        %v879 = vmul.f32 %v878, %v876
        %v880 = vmul.f32 %v878, %v877
        %v881 = vadd.f32 %v873, %v879
        %v882 = vadd.f32 %v874, %v880
        %s883 = sld [smem:[#allocation4 + $0x7]]
        %v884 = vstv %s883
        %v885 = vmul.f32 %v884, %v876
        %v886 = vmul.f32 %v884, %v877
        %889 = vrot.lane.b32.xlu0 %v885, 127
        %v890 = vpop.permute.xlu0 %889
        %891 = vrot.lane.b32.xlu0 %v886, 127
        %v892 = vpop.permute.xlu0 %891
        %v895 = vadd.f32 %v881, %v890
        %v896 = vadd.f32 %v882, %v892
        %s897 = sld [smem:[#allocation4 + $0x8]]
        %v898 = vstv %s897
        %v899 = vmul.f32 %v898, %v876
        %v900 = vmul.f32 %v898, %v877
        %903 = vrot.lane.b32.xlu0 %v899, 126
        %v904 = vpop.permute.xlu0 %903
        %905 = vrot.lane.b32.xlu0 %v900, 126
        %v906 = vpop.permute.xlu0 %905
        %v909 = vadd.f32 %v895, %v904
        %v910 = vadd.f32 %v896, %v906
        %s911 = sld [smem:[#allocation4 + $0x9]]
        %v912 = vld [vmem:[%s444] sm:$0xff]
        %v913 = vld [vmem:[%s444 + $0x8] sm:$0xff]
        %v914 = vstv %s911
        %v915 = vmul.f32 %v914, %v912
        %v916 = vmul.f32 %v914, %v913
        %v917 = vadd.f32 %v909, %v915
        %v918 = vadd.f32 %v910, %v916
        %s919 = sld [smem:[#allocation4 + $0xa]]
        %v920 = vstv %s919
        %v921 = vmul.f32 %v920, %v912
        %v922 = vmul.f32 %v920, %v913
        %925 = vrot.lane.b32.xlu0 %v921, 127
        %v926 = vpop.permute.xlu0 %925
        %927 = vrot.lane.b32.xlu0 %v922, 127
        %v928 = vpop.permute.xlu0 %927
        %v931 = vadd.f32 %v917, %v926
        %v932 = vadd.f32 %v918, %v928
        %s933 = sld [smem:[#allocation4 + $0xb]]
        %v934 = vstv %s933
        %v935 = vmul.f32 %v934, %v912
        %v936 = vmul.f32 %v934, %v913
        %939 = vrot.lane.b32.xlu0 %v935, 126
        %v940 = vpop.permute.xlu0 %939
        %941 = vrot.lane.b32.xlu0 %v936, 126
        %v942 = vpop.permute.xlu0 %941
        %v945 = vadd.f32 %v931, %v940
        %v946 = vadd.f32 %v932, %v942
        %s947 = sld [smem:[#allocation4 + $0xc]]
        %v948 = vld [vmem:[%s444 + $0x1] sm:$0xff]
        %v949 = vld [vmem:[%s444 + $0x9] sm:$0xff]
        %v950 = vstv %s947
        %v951 = vmul.f32 %v950, %v948
        %v952 = vmul.f32 %v950, %v949
        %v953 = vadd.f32 %v945, %v951
        %v954 = vadd.f32 %v946, %v952
        %s955 = sld [smem:[#allocation4 + $0xd]]
        %v956 = vstv %s955
        %v957 = vmul.f32 %v956, %v948
        %v958 = vmul.f32 %v956, %v949
        %961 = vrot.lane.b32.xlu0 %v957, 127
        %v962 = vpop.permute.xlu0 %961
        %963 = vrot.lane.b32.xlu0 %v958, 127
        %v964 = vpop.permute.xlu0 %963
        %v967 = vadd.f32 %v953, %v962
        %v968 = vadd.f32 %v954, %v964
        %s969 = sld [smem:[#allocation4 + $0xe]]
        %v970 = vstv %s969
        %v971 = vmul.f32 %v970, %v948
        %v972 = vmul.f32 %v970, %v949
        %975 = vrot.lane.b32.xlu0 %v971, 126
        %v976 = vpop.permute.xlu0 %975
        %977 = vrot.lane.b32.xlu0 %v972, 126
        %v978 = vpop.permute.xlu0 %977
        %v981 = vadd.f32 %v967, %v976
        %v982 = vadd.f32 %v968, %v978
        %s983 = sld [smem:[#allocation4 + $0xf]]
        %v984 = vld [vmem:[%s444 + $0x2] sm:$0xff]
        %v985 = vld [vmem:[%s444 + $0xa] sm:$0xff]
        %v986 = vstv %s983
        %v987 = vmul.f32 %v986, %v984
        %v988 = vmul.f32 %v986, %v985
        %v989 = vadd.f32 %v981, %v987
        %v990 = vadd.f32 %v982, %v988
        %s991 = sld [smem:[#allocation4 + $0x10]]
        %v992 = vstv %s991
        %v993 = vmul.f32 %v992, %v984
        %v994 = vmul.f32 %v992, %v985
        %997 = vrot.lane.b32.xlu0 %v993, 127
        %v998 = vpop.permute.xlu0 %997
        %999 = vrot.lane.b32.xlu0 %v994, 127
        %v1000 = vpop.permute.xlu0 %999
        %v1003 = vadd.f32 %v989, %v998
        %v1004 = vadd.f32 %v990, %v1000
        %s1005 = sld [smem:[#allocation4 + $0x11]]
        %v1006 = vstv %s1005
        %v1007 = vmul.f32 %v1006, %v984
        %v1008 = vmul.f32 %v1006, %v985
        %1011 = vrot.lane.b32.xlu0 %v1007, 126
        %v1012 = vpop.permute.xlu0 %1011
        %1013 = vrot.lane.b32.xlu0 %v1008, 126
        %v1014 = vpop.permute.xlu0 %1013
        %v1017 = vadd.f32 %v1003, %v1012
        %v1018 = vadd.f32 %v1004, %v1014
        %s1019 = sld [smem:[#allocation4 + $0x12]]
        %v1020 = vld [vmem:[%s622] sm:$0xff]
        %v1021 = vld [vmem:[%s622 + $0x8] sm:$0xff]
        %v1022 = vstv %s1019
        %v1023 = vmul.f32 %v1022, %v1020
        %v1024 = vmul.f32 %v1022, %v1021
        %v1025 = vadd.f32 %v1017, %v1023
        %v1026 = vadd.f32 %v1018, %v1024
        %s1027 = sld [smem:[#allocation4 + $0x13]]
        %v1028 = vstv %s1027
        %v1029 = vmul.f32 %v1028, %v1020
        %v1030 = vmul.f32 %v1028, %v1021
        %1033 = vrot.lane.b32.xlu0 %v1029, 127
        %v1034 = vpop.permute.xlu0 %1033
        %1035 = vrot.lane.b32.xlu0 %v1030, 127
        %v1036 = vpop.permute.xlu0 %1035
        %v1039 = vadd.f32 %v1025, %v1034
        %v1040 = vadd.f32 %v1026, %v1036
        %s1041 = sld [smem:[#allocation4 + $0x14]]
        %v1042 = vstv %s1041
        %v1043 = vmul.f32 %v1042, %v1020
        %v1044 = vmul.f32 %v1042, %v1021
        %1047 = vrot.lane.b32.xlu0 %v1043, 126
        %v1048 = vpop.permute.xlu0 %1047
        %1049 = vrot.lane.b32.xlu0 %v1044, 126
        %v1050 = vpop.permute.xlu0 %1049
        %v1053 = vadd.f32 %v1039, %v1048
        %v1054 = vadd.f32 %v1040, %v1050
        %s1055 = sld [smem:[#allocation4 + $0x15]]
        %v1056 = vld [vmem:[%s622 + $0x1] sm:$0xff]
        %v1057 = vld [vmem:[%s622 + $0x9] sm:$0xff]
        %v1058 = vstv %s1055
        %v1059 = vmul.f32 %v1058, %v1056
        %v1060 = vmul.f32 %v1058, %v1057
        %v1061 = vadd.f32 %v1053, %v1059
        %v1062 = vadd.f32 %v1054, %v1060
        %s1063 = sld [smem:[#allocation4 + $0x16]]
        %v1064 = vstv %s1063
        %v1065 = vmul.f32 %v1064, %v1056
        %v1066 = vmul.f32 %v1064, %v1057
        %1069 = vrot.lane.b32.xlu0 %v1065, 127
        %v1070 = vpop.permute.xlu0 %1069
        %1071 = vrot.lane.b32.xlu0 %v1066, 127
        %v1072 = vpop.permute.xlu0 %1071
        %v1075 = vadd.f32 %v1061, %v1070
        %v1076 = vadd.f32 %v1062, %v1072
        %s1077 = sld [smem:[#allocation4 + $0x17]]
        %v1078 = vstv %s1077
        %v1079 = vmul.f32 %v1078, %v1056
        %v1080 = vmul.f32 %v1078, %v1057
        %1083 = vrot.lane.b32.xlu0 %v1079, 126
        %v1084 = vpop.permute.xlu0 %1083
        %1085 = vrot.lane.b32.xlu0 %v1080, 126
        %v1086 = vpop.permute.xlu0 %1085
        %v1089 = vadd.f32 %v1075, %v1084
        %v1090 = vadd.f32 %v1076, %v1086
        %s1091 = sld [smem:[#allocation4 + $0x18]]
        %v1092 = vld [vmem:[%s622 + $0x2] sm:$0xff]
        %v1093 = vld [vmem:[%s622 + $0xa] sm:$0xff]
        %v1094 = vstv %s1091
        %v1095 = vmul.f32 %v1094, %v1092
        %v1096 = vmul.f32 %v1094, %v1093
        %v1097 = vadd.f32 %v1089, %v1095
        %v1098 = vadd.f32 %v1090, %v1096
        %s1099 = sld [smem:[#allocation4 + $0x19]]
        %v1100 = vstv %s1099
        %v1101 = vmul.f32 %v1100, %v1092
        %v1102 = vmul.f32 %v1100, %v1093
        %1105 = vrot.lane.b32.xlu0 %v1101, 127
        %v1106 = vpop.permute.xlu0 %1105
        %1107 = vrot.lane.b32.xlu0 %v1102, 127
        %v1108 = vpop.permute.xlu0 %1107
        %v1111 = vadd.f32 %v1097, %v1106
        %v1112 = vadd.f32 %v1098, %v1108
        %s1113 = sld [smem:[#allocation4 + $0x1a]]
        %v1114 = vstv %s1113
        %v1115 = vmul.f32 %v1114, %v1092
        %v1116 = vmul.f32 %v1114, %v1093
        %1119 = vrot.lane.b32.xlu0 %v1115, 126
        %v1120 = vpop.permute.xlu0 %1119
        %1121 = vrot.lane.b32.xlu0 %v1116, 126
        %v1122 = vpop.permute.xlu0 %1121
        %v1125 = vadd.f32 %v1111, %v1120
        %v1126 = vadd.f32 %v1112, %v1122
        %s1127 = sld [smem:[#allocation4 + $0x1b]]
        %v1128 = vld [vmem:[%s791] sm:$0xff]
        %v1129 = vld [vmem:[%s791 + $0x8] sm:$0xff]
        %v1130 = vstv %s1127
        %v1131 = vmul.f32 %v1130, %v1128
        %v1132 = vmul.f32 %v1130, %v1129
        %v1133 = vadd.f32 %v1125, %v1131
        %v1134 = vadd.f32 %v1126, %v1132
        %s1135 = sld [smem:[#allocation4 + $0x1c]]
        %v1136 = vstv %s1135
        %v1137 = vmul.f32 %v1136, %v1128
        %v1138 = vmul.f32 %v1136, %v1129
        %1141 = vrot.lane.b32.xlu0 %v1137, 127
        %v1142 = vpop.permute.xlu0 %1141
        %1143 = vrot.lane.b32.xlu0 %v1138, 127
        %v1144 = vpop.permute.xlu0 %1143
        %v1147 = vadd.f32 %v1133, %v1142
        %v1148 = vadd.f32 %v1134, %v1144
        %s1149 = sld [smem:[#allocation4 + $0x1d]]
        %v1150 = vstv %s1149
        %v1151 = vmul.f32 %v1150, %v1128
        %v1152 = vmul.f32 %v1150, %v1129
        %1155 = vrot.lane.b32.xlu0 %v1151, 126
        %v1156 = vpop.permute.xlu0 %1155
        %1157 = vrot.lane.b32.xlu0 %v1152, 126
        %v1158 = vpop.permute.xlu0 %1157
        %v1161 = vadd.f32 %v1147, %v1156
        %v1162 = vadd.f32 %v1148, %v1158
        %s1163 = sld [smem:[#allocation4 + $0x1e]]
        %v1164 = vld [vmem:[%s791 + $0x1] sm:$0xff]
        %v1165 = vld [vmem:[%s791 + $0x9] sm:$0xff]
        %v1166 = vstv %s1163
        %v1167 = vmul.f32 %v1166, %v1164
        %v1168 = vmul.f32 %v1166, %v1165
        %v1169 = vadd.f32 %v1161, %v1167
        %v1170 = vadd.f32 %v1162, %v1168
        %s1171 = sld [smem:[#allocation4 + $0x1f]]
        %v1172 = vstv %s1171
        %v1173 = vmul.f32 %v1172, %v1164
        %v1174 = vmul.f32 %v1172, %v1165
        %1177 = vrot.lane.b32.xlu0 %v1173, 127
        %v1178 = vpop.permute.xlu0 %1177
        %1179 = vrot.lane.b32.xlu0 %v1174, 127
        %v1180 = vpop.permute.xlu0 %1179
        %v1183 = vadd.f32 %v1169, %v1178
        %v1184 = vadd.f32 %v1170, %v1180
        %s1185 = sld [smem:[#allocation4 + $0x20]]
        %v1186 = vstv %s1185
        %v1187 = vmul.f32 %v1186, %v1164
        %v1188 = vmul.f32 %v1186, %v1165
        %1191 = vrot.lane.b32.xlu0 %v1187, 126
        %v1192 = vpop.permute.xlu0 %1191
        %1193 = vrot.lane.b32.xlu0 %v1188, 126
        %v1194 = vpop.permute.xlu0 %1193
        %v1197 = vadd.f32 %v1183, %v1192
        %v1198 = vadd.f32 %v1184, %v1194
        %s1199 = sld [smem:[#allocation4 + $0x21]]
        %v1200 = vld [vmem:[%s791 + $0x2] sm:$0xff]
        %v1201 = vld [vmem:[%s791 + $0xa] sm:$0xff]
        %v1202 = vstv %s1199
        %v1203 = vmul.f32 %v1202, %v1200
        %v1204 = vmul.f32 %v1202, %v1201
        %v1205 = vadd.f32 %v1197, %v1203
        %v1206 = vadd.f32 %v1198, %v1204
        %s1207 = sld [smem:[#allocation4 + $0x22]]
        %v1208 = vstv %s1207
        %v1209 = vmul.f32 %v1208, %v1200
        %v1210 = vmul.f32 %v1208, %v1201
        %1213 = vrot.lane.b32.xlu0 %v1209, 127
        %v1214 = vpop.permute.xlu0 %1213
        %1215 = vrot.lane.b32.xlu0 %v1210, 127
        %v1216 = vpop.permute.xlu0 %1215
        %v1219 = vadd.f32 %v1205, %v1214
        %v1220 = vadd.f32 %v1206, %v1216
        %s1221 = sld [smem:[#allocation4 + $0x23]]
        %v1222 = vstv %s1221
        %v1223 = vmul.f32 %v1222, %v1200
        %v1224 = vmul.f32 %v1222, %v1201
        %1227 = vrot.lane.b32.xlu0 %v1223, 126
        %v1228 = vpop.permute.xlu0 %1227
        %1229 = vrot.lane.b32.xlu0 %v1224, 126
        %v1230 = vpop.permute.xlu0 %1229
        %v1233 = vadd.f32 %v1219, %v1228
        %v1234 = vadd.f32 %v1220, %v1230
        %v1235 = vmax.f32 %v1233, 0.0
        %v1236 = vmax.f32 %v1234, 0.0
        %1239 = vrot.lane.b32.xlu0 %v1235, 1
        %v1240 = vpop.permute.xlu0 %1239
        %1241 = vrot.lane.b32.xlu0 %v1236, 1
        %v1242 = vpop.permute.xlu0 %1241
        %1245 = vst.msk [vmem:[#allocation3 + $0x1] sm:$0xff] %vm430, %v1240
        %1246 = vst.msk [vmem:[#allocation3 + $0x9] sm:$0xff] %vm430, %v1242
        %s1247 = sld [smem:[#allocation9 + $0x1]]
        %v1248 = vstv %s1247
        %v1249 = vadd.f32 %v1248, 0.0
        %s1250 = sld [smem:[#allocation4 + $0x24]]
        %v1251 = vld [vmem:[#allocation2] sm:$0xff]
        %v1252 = vld [vmem:[#allocation2 + $0x8] sm:$0xff]
        %v1253 = vstv %s1250
        %v1254 = vmul.f32 %v1253, %v1251
        %v1255 = vmul.f32 %v1253, %v1252
        %v1256 = vadd.f32 %v1249, %v1254
        %v1257 = vadd.f32 %v1249, %v1255
        %s1258 = sld [smem:[#allocation4 + $0x25]]
        %v1259 = vstv %s1258
        %v1260 = vmul.f32 %v1259, %v1251
        %v1261 = vmul.f32 %v1259, %v1252
        %1264 = vrot.lane.b32.xlu0 %v1260, 127
        %v1265 = vpop.permute.xlu0 %1264
        %1266 = vrot.lane.b32.xlu0 %v1261, 127
        %v1267 = vpop.permute.xlu0 %1266
        %v1270 = vadd.f32 %v1256, %v1265
        %v1271 = vadd.f32 %v1257, %v1267
        %s1272 = sld [smem:[#allocation4 + $0x26]]
        %v1273 = vstv %s1272
        %v1274 = vmul.f32 %v1273, %v1251
        %v1275 = vmul.f32 %v1273, %v1252
        %1278 = vrot.lane.b32.xlu0 %v1274, 126
        %v1279 = vpop.permute.xlu0 %1278
        %1280 = vrot.lane.b32.xlu0 %v1275, 126
        %v1281 = vpop.permute.xlu0 %1280
        %v1284 = vadd.f32 %v1270, %v1279
        %v1285 = vadd.f32 %v1271, %v1281
        %s1286 = sld [smem:[#allocation4 + $0x27]]
        %v1287 = vld [vmem:[#allocation2 + $0x1] sm:$0xff]
        %v1288 = vld [vmem:[#allocation2 + $0x9] sm:$0xff]
        %v1289 = vstv %s1286
        %v1290 = vmul.f32 %v1289, %v1287
        %v1291 = vmul.f32 %v1289, %v1288
        %v1292 = vadd.f32 %v1284, %v1290
        %v1293 = vadd.f32 %v1285, %v1291
        %s1294 = sld [smem:[#allocation4 + $0x28]]
        %v1295 = vstv %s1294
        %v1296 = vmul.f32 %v1295, %v1287
        %v1297 = vmul.f32 %v1295, %v1288
        %1300 = vrot.lane.b32.xlu0 %v1296, 127
        %v1301 = vpop.permute.xlu0 %1300
        %1302 = vrot.lane.b32.xlu0 %v1297, 127
        %v1303 = vpop.permute.xlu0 %1302
        %v1306 = vadd.f32 %v1292, %v1301
        %v1307 = vadd.f32 %v1293, %v1303
        %s1308 = sld [smem:[#allocation4 + $0x29]]
        %v1309 = vstv %s1308
        %v1310 = vmul.f32 %v1309, %v1287
        %v1311 = vmul.f32 %v1309, %v1288
        %1314 = vrot.lane.b32.xlu0 %v1310, 126
        %v1315 = vpop.permute.xlu0 %1314
        %1316 = vrot.lane.b32.xlu0 %v1311, 126
        %v1317 = vpop.permute.xlu0 %1316
        %v1320 = vadd.f32 %v1306, %v1315
        %v1321 = vadd.f32 %v1307, %v1317
        %s1322 = sld [smem:[#allocation4 + $0x2a]]
        %v1323 = vld [vmem:[#allocation2 + $0x2] sm:$0xff]
        %v1324 = vld [vmem:[#allocation2 + $0xa] sm:$0xff]
        %v1325 = vstv %s1322
        %v1326 = vmul.f32 %v1325, %v1323
        %v1327 = vmul.f32 %v1325, %v1324
        %v1328 = vadd.f32 %v1320, %v1326
        %v1329 = vadd.f32 %v1321, %v1327
        %s1330 = sld [smem:[#allocation4 + $0x2b]]
        %v1331 = vstv %s1330
        %v1332 = vmul.f32 %v1331, %v1323
        %v1333 = vmul.f32 %v1331, %v1324
        %1336 = vrot.lane.b32.xlu0 %v1332, 127
        %v1337 = vpop.permute.xlu0 %1336
        %1338 = vrot.lane.b32.xlu0 %v1333, 127
        %v1339 = vpop.permute.xlu0 %1338
        %v1342 = vadd.f32 %v1328, %v1337
        %v1343 = vadd.f32 %v1329, %v1339
        %s1344 = sld [smem:[#allocation4 + $0x2c]]
        %v1345 = vstv %s1344
        %v1346 = vmul.f32 %v1345, %v1323
        %v1347 = vmul.f32 %v1345, %v1324
        %1350 = vrot.lane.b32.xlu0 %v1346, 126
        %v1351 = vpop.permute.xlu0 %1350
        %1352 = vrot.lane.b32.xlu0 %v1347, 126
        %v1353 = vpop.permute.xlu0 %1352
        %v1356 = vadd.f32 %v1342, %v1351
        %v1357 = vadd.f32 %v1343, %v1353
        %s1358 = sld [smem:[#allocation4 + $0x2d]]
        %v1359 = vld [vmem:[%s444] sm:$0xff]
        %v1360 = vld [vmem:[%s444 + $0x8] sm:$0xff]
        %v1361 = vstv %s1358
        %v1362 = vmul.f32 %v1361, %v1359
        %v1363 = vmul.f32 %v1361, %v1360
        %v1364 = vadd.f32 %v1356, %v1362
        %v1365 = vadd.f32 %v1357, %v1363
        %s1366 = sld [smem:[#allocation4 + $0x2e]]
        %v1367 = vstv %s1366
        %v1368 = vmul.f32 %v1367, %v1359
        %v1369 = vmul.f32 %v1367, %v1360
        %1372 = vrot.lane.b32.xlu0 %v1368, 127
        %v1373 = vpop.permute.xlu0 %1372
        %1374 = vrot.lane.b32.xlu0 %v1369, 127
        %v1375 = vpop.permute.xlu0 %1374
        %v1378 = vadd.f32 %v1364, %v1373
        %v1379 = vadd.f32 %v1365, %v1375
        %s1380 = sld [smem:[#allocation4 + $0x2f]]
        %v1381 = vstv %s1380
        %v1382 = vmul.f32 %v1381, %v1359
        %v1383 = vmul.f32 %v1381, %v1360
        %1386 = vrot.lane.b32.xlu0 %v1382, 126
        %v1387 = vpop.permute.xlu0 %1386
        %1388 = vrot.lane.b32.xlu0 %v1383, 126
        %v1389 = vpop.permute.xlu0 %1388
        %v1392 = vadd.f32 %v1378, %v1387
        %v1393 = vadd.f32 %v1379, %v1389
        %s1394 = sld [smem:[#allocation4 + $0x30]]
        %v1395 = vld [vmem:[%s444 + $0x1] sm:$0xff]
        %v1396 = vld [vmem:[%s444 + $0x9] sm:$0xff]
        %v1397 = vstv %s1394
        %v1398 = vmul.f32 %v1397, %v1395
        %v1399 = vmul.f32 %v1397, %v1396
        %v1400 = vadd.f32 %v1392, %v1398
        %v1401 = vadd.f32 %v1393, %v1399
        %s1402 = sld [smem:[#allocation4 + $0x31]]
        %v1403 = vstv %s1402
        %v1404 = vmul.f32 %v1403, %v1395
        %v1405 = vmul.f32 %v1403, %v1396
        %1408 = vrot.lane.b32.xlu0 %v1404, 127
        %v1409 = vpop.permute.xlu0 %1408
        %1410 = vrot.lane.b32.xlu0 %v1405, 127
        %v1411 = vpop.permute.xlu0 %1410
        %v1414 = vadd.f32 %v1400, %v1409
        %v1415 = vadd.f32 %v1401, %v1411
        %s1416 = sld [smem:[#allocation4 + $0x32]]
        %v1417 = vstv %s1416
        %v1418 = vmul.f32 %v1417, %v1395
        %v1419 = vmul.f32 %v1417, %v1396
        %1422 = vrot.lane.b32.xlu0 %v1418, 126
        %v1423 = vpop.permute.xlu0 %1422
        %1424 = vrot.lane.b32.xlu0 %v1419, 126
        %v1425 = vpop.permute.xlu0 %1424
        %v1428 = vadd.f32 %v1414, %v1423
        %v1429 = vadd.f32 %v1415, %v1425
        %s1430 = sld [smem:[#allocation4 + $0x33]]
        %v1431 = vld [vmem:[%s444 + $0x2] sm:$0xff]
        %v1432 = vld [vmem:[%s444 + $0xa] sm:$0xff]
        %v1433 = vstv %s1430
        %v1434 = vmul.f32 %v1433, %v1431
        %v1435 = vmul.f32 %v1433, %v1432
        %v1436 = vadd.f32 %v1428, %v1434
        %v1437 = vadd.f32 %v1429, %v1435
        %s1438 = sld [smem:[#allocation4 + $0x34]]
        %v1439 = vstv %s1438
        %v1440 = vmul.f32 %v1439, %v1431
        %v1441 = vmul.f32 %v1439, %v1432
        %1444 = vrot.lane.b32.xlu0 %v1440, 127
        %v1445 = vpop.permute.xlu0 %1444
        %1446 = vrot.lane.b32.xlu0 %v1441, 127
        %v1447 = vpop.permute.xlu0 %1446
        %v1450 = vadd.f32 %v1436, %v1445
        %v1451 = vadd.f32 %v1437, %v1447
        %s1452 = sld [smem:[#allocation4 + $0x35]]
        %v1453 = vstv %s1452
        %v1454 = vmul.f32 %v1453, %v1431
        %v1455 = vmul.f32 %v1453, %v1432
        %1458 = vrot.lane.b32.xlu0 %v1454, 126
        %v1459 = vpop.permute.xlu0 %1458
        %1460 = vrot.lane.b32.xlu0 %v1455, 126
        %v1461 = vpop.permute.xlu0 %1460
        %v1464 = vadd.f32 %v1450, %v1459
        %v1465 = vadd.f32 %v1451, %v1461
        %s1466 = sld [smem:[#allocation4 + $0x36]]
        %v1467 = vld [vmem:[%s622] sm:$0xff]
        %v1468 = vld [vmem:[%s622 + $0x8] sm:$0xff]
        %v1469 = vstv %s1466
        %v1470 = vmul.f32 %v1469, %v1467
        %v1471 = vmul.f32 %v1469, %v1468
        %v1472 = vadd.f32 %v1464, %v1470
        %v1473 = vadd.f32 %v1465, %v1471
        %s1474 = sld [smem:[#allocation4 + $0x37]]
        %v1475 = vstv %s1474
        %v1476 = vmul.f32 %v1475, %v1467
        %v1477 = vmul.f32 %v1475, %v1468
        %1480 = vrot.lane.b32.xlu0 %v1476, 127
        %v1481 = vpop.permute.xlu0 %1480
        %1482 = vrot.lane.b32.xlu0 %v1477, 127
        %v1483 = vpop.permute.xlu0 %1482
        %v1486 = vadd.f32 %v1472, %v1481
        %v1487 = vadd.f32 %v1473, %v1483
        %s1488 = sld [smem:[#allocation4 + $0x38]]
        %v1489 = vstv %s1488
        %v1490 = vmul.f32 %v1489, %v1467
        %v1491 = vmul.f32 %v1489, %v1468
        %1494 = vrot.lane.b32.xlu0 %v1490, 126
        %v1495 = vpop.permute.xlu0 %1494
        %1496 = vrot.lane.b32.xlu0 %v1491, 126
        %v1497 = vpop.permute.xlu0 %1496
        %v1500 = vadd.f32 %v1486, %v1495
        %v1501 = vadd.f32 %v1487, %v1497
        %s1502 = sld [smem:[#allocation4 + $0x39]]
        %v1503 = vld [vmem:[%s622 + $0x1] sm:$0xff]
        %v1504 = vld [vmem:[%s622 + $0x9] sm:$0xff]
        %v1505 = vstv %s1502
        %v1506 = vmul.f32 %v1505, %v1503
        %v1507 = vmul.f32 %v1505, %v1504
        %v1508 = vadd.f32 %v1500, %v1506
        %v1509 = vadd.f32 %v1501, %v1507
        %s1510 = sld [smem:[#allocation4 + $0x3a]]
        %v1511 = vstv %s1510
        %v1512 = vmul.f32 %v1511, %v1503
        %v1513 = vmul.f32 %v1511, %v1504
        %1516 = vrot.lane.b32.xlu0 %v1512, 127
        %v1517 = vpop.permute.xlu0 %1516
        %1518 = vrot.lane.b32.xlu0 %v1513, 127
        %v1519 = vpop.permute.xlu0 %1518
        %v1522 = vadd.f32 %v1508, %v1517
        %v1523 = vadd.f32 %v1509, %v1519
        %s1524 = sld [smem:[#allocation4 + $0x3b]]
        %v1525 = vstv %s1524
        %v1526 = vmul.f32 %v1525, %v1503
        %v1527 = vmul.f32 %v1525, %v1504
        %1530 = vrot.lane.b32.xlu0 %v1526, 126
        %v1531 = vpop.permute.xlu0 %1530
        %1532 = vrot.lane.b32.xlu0 %v1527, 126
        %v1533 = vpop.permute.xlu0 %1532
        %v1536 = vadd.f32 %v1522, %v1531
        %v1537 = vadd.f32 %v1523, %v1533
        %s1538 = sld [smem:[#allocation4 + $0x3c]]
        %v1539 = vld [vmem:[%s622 + $0x2] sm:$0xff]
        %v1540 = vld [vmem:[%s622 + $0xa] sm:$0xff]
        %v1541 = vstv %s1538
        %v1542 = vmul.f32 %v1541, %v1539
        %v1543 = vmul.f32 %v1541, %v1540
        %v1544 = vadd.f32 %v1536, %v1542
        %v1545 = vadd.f32 %v1537, %v1543
        %s1546 = sld [smem:[#allocation4 + $0x3d]]
        %v1547 = vstv %s1546
        %v1548 = vmul.f32 %v1547, %v1539
        %v1549 = vmul.f32 %v1547, %v1540
        %1552 = vrot.lane.b32.xlu0 %v1548, 127
        %v1553 = vpop.permute.xlu0 %1552
        %1554 = vrot.lane.b32.xlu0 %v1549, 127
        %v1555 = vpop.permute.xlu0 %1554
        %v1558 = vadd.f32 %v1544, %v1553
        %v1559 = vadd.f32 %v1545, %v1555
        %s1560 = sld [smem:[#allocation4 + $0x3e]]
        %v1561 = vstv %s1560
        %v1562 = vmul.f32 %v1561, %v1539
        %v1563 = vmul.f32 %v1561, %v1540
        %1566 = vrot.lane.b32.xlu0 %v1562, 126
        %v1567 = vpop.permute.xlu0 %1566
        %1568 = vrot.lane.b32.xlu0 %v1563, 126
        %v1569 = vpop.permute.xlu0 %1568
        %v1572 = vadd.f32 %v1558, %v1567
        %v1573 = vadd.f32 %v1559, %v1569
        %s1574 = sld [smem:[#allocation4 + $0x3f]]
        %v1575 = vld [vmem:[%s791] sm:$0xff]
        %v1576 = vld [vmem:[%s791 + $0x8] sm:$0xff]
        %v1577 = vstv %s1574
        %v1578 = vmul.f32 %v1577, %v1575
        %v1579 = vmul.f32 %v1577, %v1576
        %v1580 = vadd.f32 %v1572, %v1578
        %v1581 = vadd.f32 %v1573, %v1579
        %s1582 = sld [smem:[#allocation4 + $0x40]]
        %v1583 = vstv %s1582
        %v1584 = vmul.f32 %v1583, %v1575
        %v1585 = vmul.f32 %v1583, %v1576
        %1588 = vrot.lane.b32.xlu0 %v1584, 127
        %v1589 = vpop.permute.xlu0 %1588
        %1590 = vrot.lane.b32.xlu0 %v1585, 127
        %v1591 = vpop.permute.xlu0 %1590
        %v1594 = vadd.f32 %v1580, %v1589
        %v1595 = vadd.f32 %v1581, %v1591
        %s1596 = sld [smem:[#allocation4 + $0x41]]
        %v1597 = vstv %s1596
        %v1598 = vmul.f32 %v1597, %v1575
        %v1599 = vmul.f32 %v1597, %v1576
        %1602 = vrot.lane.b32.xlu0 %v1598, 126
        %v1603 = vpop.permute.xlu0 %1602
        %1604 = vrot.lane.b32.xlu0 %v1599, 126
        %v1605 = vpop.permute.xlu0 %1604
        %v1608 = vadd.f32 %v1594, %v1603
        %v1609 = vadd.f32 %v1595, %v1605
        %s1610 = sld [smem:[#allocation4 + $0x42]]
        %v1611 = vld [vmem:[%s791 + $0x1] sm:$0xff]
        %v1612 = vld [vmem:[%s791 + $0x9] sm:$0xff]
        %v1613 = vstv %s1610
        %v1614 = vmul.f32 %v1613, %v1611
        %v1615 = vmul.f32 %v1613, %v1612
        %v1616 = vadd.f32 %v1608, %v1614
        %v1617 = vadd.f32 %v1609, %v1615
        %s1618 = sld [smem:[#allocation4 + $0x43]]
        %v1619 = vstv %s1618
        %v1620 = vmul.f32 %v1619, %v1611
        %v1621 = vmul.f32 %v1619, %v1612
        %1624 = vrot.lane.b32.xlu0 %v1620, 127
        %v1625 = vpop.permute.xlu0 %1624
        %1626 = vrot.lane.b32.xlu0 %v1621, 127
        %v1627 = vpop.permute.xlu0 %1626
        %v1630 = vadd.f32 %v1616, %v1625
        %v1631 = vadd.f32 %v1617, %v1627
        %s1632 = sld [smem:[#allocation4 + $0x44]]
        %v1633 = vstv %s1632
        %v1634 = vmul.f32 %v1633, %v1611
        %v1635 = vmul.f32 %v1633, %v1612
        %1638 = vrot.lane.b32.xlu0 %v1634, 126
        %v1639 = vpop.permute.xlu0 %1638
        %1640 = vrot.lane.b32.xlu0 %v1635, 126
        %v1641 = vpop.permute.xlu0 %1640
        %v1644 = vadd.f32 %v1630, %v1639
        %v1645 = vadd.f32 %v1631, %v1641
        %s1646 = sld [smem:[#allocation4 + $0x45]]
        %v1647 = vld [vmem:[%s791 + $0x2] sm:$0xff]
        %v1648 = vld [vmem:[%s791 + $0xa] sm:$0xff]
        %v1649 = vstv %s1646
        %v1650 = vmul.f32 %v1649, %v1647
        %v1651 = vmul.f32 %v1649, %v1648
        %v1652 = vadd.f32 %v1644, %v1650
        %v1653 = vadd.f32 %v1645, %v1651
        %s1654 = sld [smem:[#allocation4 + $0x46]]
        %v1655 = vstv %s1654
        %v1656 = vmul.f32 %v1655, %v1647
        %v1657 = vmul.f32 %v1655, %v1648
        %1660 = vrot.lane.b32.xlu0 %v1656, 127
        %v1661 = vpop.permute.xlu0 %1660
        %1662 = vrot.lane.b32.xlu0 %v1657, 127
        %v1663 = vpop.permute.xlu0 %1662
        %v1666 = vadd.f32 %v1652, %v1661
        %v1667 = vadd.f32 %v1653, %v1663
        %s1668 = sld [smem:[#allocation4 + $0x47]]
        %v1669 = vstv %s1668
        %v1670 = vmul.f32 %v1669, %v1647
        %v1671 = vmul.f32 %v1669, %v1648
        %1674 = vrot.lane.b32.xlu0 %v1670, 126
        %v1675 = vpop.permute.xlu0 %1674
        %1676 = vrot.lane.b32.xlu0 %v1671, 126
        %v1677 = vpop.permute.xlu0 %1676
        %v1680 = vadd.f32 %v1666, %v1675
        %v1681 = vadd.f32 %v1667, %v1677
        %v1682 = vmax.f32 %v1680, 0.0
        %v1683 = vmax.f32 %v1681, 0.0
        %1686 = vrot.lane.b32.xlu0 %v1682, 1
        %v1687 = vpop.permute.xlu0 %1686
        %1688 = vrot.lane.b32.xlu0 %v1683, 1
        %v1689 = vpop.permute.xlu0 %1688
        %s1692 = scalar_lea.vmem [#allocation3], 24
        %1693 = vst.msk [vmem:[%s1692 + $0x1] sm:$0xff] %vm430, %v1687
        %1694 = vst.msk [vmem:[%s1692 + $0x9] sm:$0xff] %vm430, %v1689
        %s1695 = sld [smem:[#allocation12]]
        %v1696 = vstv %s1695
        %v1697 = vadd.f32 %v1696, 0.0
        %s1698 = sld [smem:[#allocation11]]
        %v1699 = vld [vmem:[#allocation3] sm:$0xff]
        %v1700 = vld [vmem:[#allocation3 + $0x8] sm:$0xff]
        %v1701 = vstv %s1698
        %v1702 = vmul.f32 %v1701, %v1699
        %v1703 = vmul.f32 %v1701, %v1700
        %v1704 = vadd.f32 %v1697, %v1702
        %v1705 = vadd.f32 %v1697, %v1703
        %s1706 = sld [smem:[#allocation11 + $0x1]]
        %v1707 = vstv %s1706
        %v1708 = vmul.f32 %v1707, %v1699
        %v1709 = vmul.f32 %v1707, %v1700
        %1712 = vrot.lane.b32.xlu0 %v1708, 127
        %v1713 = vpop.permute.xlu0 %1712
        %1714 = vrot.lane.b32.xlu0 %v1709, 127
        %v1715 = vpop.permute.xlu0 %1714
        %v1718 = vadd.f32 %v1704, %v1713
        %v1719 = vadd.f32 %v1705, %v1715
        %s1720 = sld [smem:[#allocation11 + $0x2]]
        %v1721 = vstv %s1720
        %v1722 = vmul.f32 %v1721, %v1699
        %v1723 = vmul.f32 %v1721, %v1700
        %1726 = vrot.lane.b32.xlu0 %v1722, 126
        %v1727 = vpop.permute.xlu0 %1726
        %1728 = vrot.lane.b32.xlu0 %v1723, 126
        %v1729 = vpop.permute.xlu0 %1728
        %v1732 = vadd.f32 %v1718, %v1727
        %v1733 = vadd.f32 %v1719, %v1729
        %s1734 = sld [smem:[#allocation11 + $0x3]]
        %v1735 = vld [vmem:[#allocation3 + $0x1] sm:$0xff]
        %v1736 = vld [vmem:[#allocation3 + $0x9] sm:$0xff]
        %v1737 = vstv %s1734
        %v1738 = vmul.f32 %v1737, %v1735
        %v1739 = vmul.f32 %v1737, %v1736
        %v1740 = vadd.f32 %v1732, %v1738
        %v1741 = vadd.f32 %v1733, %v1739
        %s1742 = sld [smem:[#allocation11 + $0x4]]
        %v1743 = vstv %s1742
        %v1744 = vmul.f32 %v1743, %v1735
        %v1745 = vmul.f32 %v1743, %v1736
        %1748 = vrot.lane.b32.xlu0 %v1744, 127
        %v1749 = vpop.permute.xlu0 %1748
        %1750 = vrot.lane.b32.xlu0 %v1745, 127
        %v1751 = vpop.permute.xlu0 %1750
        %v1754 = vadd.f32 %v1740, %v1749
        %v1755 = vadd.f32 %v1741, %v1751
        %s1756 = sld [smem:[#allocation11 + $0x5]]
        %v1757 = vstv %s1756
        %v1758 = vmul.f32 %v1757, %v1735
        %v1759 = vmul.f32 %v1757, %v1736
        %1762 = vrot.lane.b32.xlu0 %v1758, 126
        %v1763 = vpop.permute.xlu0 %1762
        %1764 = vrot.lane.b32.xlu0 %v1759, 126
        %v1765 = vpop.permute.xlu0 %1764
        %v1768 = vadd.f32 %v1754, %v1763
        %v1769 = vadd.f32 %v1755, %v1765
        %s1770 = sld [smem:[#allocation11 + $0x6]]
        %v1771 = vld [vmem:[#allocation3 + $0x2] sm:$0xff]
        %v1772 = vld [vmem:[#allocation3 + $0xa] sm:$0xff]
        %v1773 = vstv %s1770
        %v1774 = vmul.f32 %v1773, %v1771
        %v1775 = vmul.f32 %v1773, %v1772
        %v1776 = vadd.f32 %v1768, %v1774
        %v1777 = vadd.f32 %v1769, %v1775
        %s1778 = sld [smem:[#allocation11 + $0x7]]
        %v1779 = vstv %s1778
        %v1780 = vmul.f32 %v1779, %v1771
        %v1781 = vmul.f32 %v1779, %v1772
        %1784 = vrot.lane.b32.xlu0 %v1780, 127
        %v1785 = vpop.permute.xlu0 %1784
        %1786 = vrot.lane.b32.xlu0 %v1781, 127
        %v1787 = vpop.permute.xlu0 %1786
        %v1790 = vadd.f32 %v1776, %v1785
        %v1791 = vadd.f32 %v1777, %v1787
        %s1792 = sld [smem:[#allocation11 + $0x8]]
        %v1793 = vstv %s1792
        %v1794 = vmul.f32 %v1793, %v1771
        %v1795 = vmul.f32 %v1793, %v1772
        %1798 = vrot.lane.b32.xlu0 %v1794, 126
        %v1799 = vpop.permute.xlu0 %1798
        %1800 = vrot.lane.b32.xlu0 %v1795, 126
        %v1801 = vpop.permute.xlu0 %1800
        %v1804 = vadd.f32 %v1790, %v1799
        %v1805 = vadd.f32 %v1791, %v1801
        %s1806 = sld [smem:[#allocation11 + $0x9]]
        %v1807 = vld [vmem:[%s1692] sm:$0xff]
        %v1808 = vld [vmem:[%s1692 + $0x8] sm:$0xff]
        %v1809 = vstv %s1806
        %v1810 = vmul.f32 %v1809, %v1807
        %v1811 = vmul.f32 %v1809, %v1808
        %v1812 = vadd.f32 %v1804, %v1810
        %v1813 = vadd.f32 %v1805, %v1811
        %s1814 = sld [smem:[#allocation11 + $0xa]]
        %v1815 = vstv %s1814
        %v1816 = vmul.f32 %v1815, %v1807
        %v1817 = vmul.f32 %v1815, %v1808
        %1820 = vrot.lane.b32.xlu0 %v1816, 127
        %v1821 = vpop.permute.xlu0 %1820
        %1822 = vrot.lane.b32.xlu0 %v1817, 127
        %v1823 = vpop.permute.xlu0 %1822
        %v1826 = vadd.f32 %v1812, %v1821
        %v1827 = vadd.f32 %v1813, %v1823
        %s1828 = sld [smem:[#allocation11 + $0xb]]
        %v1829 = vstv %s1828
        %v1830 = vmul.f32 %v1829, %v1807
        %v1831 = vmul.f32 %v1829, %v1808
        %1834 = vrot.lane.b32.xlu0 %v1830, 126
        %v1835 = vpop.permute.xlu0 %1834
        %1836 = vrot.lane.b32.xlu0 %v1831, 126
        %v1837 = vpop.permute.xlu0 %1836
        %v1840 = vadd.f32 %v1826, %v1835
        %v1841 = vadd.f32 %v1827, %v1837
        %s1842 = sld [smem:[#allocation11 + $0xc]]
        %v1843 = vld [vmem:[%s1692 + $0x1] sm:$0xff]
        %v1844 = vld [vmem:[%s1692 + $0x9] sm:$0xff]
        %v1845 = vstv %s1842
        %v1846 = vmul.f32 %v1845, %v1843
        %v1847 = vmul.f32 %v1845, %v1844
        %v1848 = vadd.f32 %v1840, %v1846
        %v1849 = vadd.f32 %v1841, %v1847
        %s1850 = sld [smem:[#allocation11 + $0xd]]
        %v1851 = vstv %s1850
        %v1852 = vmul.f32 %v1851, %v1843
        %v1853 = vmul.f32 %v1851, %v1844
        %1856 = vrot.lane.b32.xlu0 %v1852, 127
        %v1857 = vpop.permute.xlu0 %1856
        %1858 = vrot.lane.b32.xlu0 %v1853, 127
        %v1859 = vpop.permute.xlu0 %1858
        %v1862 = vadd.f32 %v1848, %v1857
        %v1863 = vadd.f32 %v1849, %v1859
        %s1864 = sld [smem:[#allocation11 + $0xe]]
        %v1865 = vstv %s1864
        %v1866 = vmul.f32 %v1865, %v1843
        %v1867 = vmul.f32 %v1865, %v1844
        %1870 = vrot.lane.b32.xlu0 %v1866, 126
        %v1871 = vpop.permute.xlu0 %1870
        %1872 = vrot.lane.b32.xlu0 %v1867, 126
        %v1873 = vpop.permute.xlu0 %1872
        %v1876 = vadd.f32 %v1862, %v1871
        %v1877 = vadd.f32 %v1863, %v1873
        %s1878 = sld [smem:[#allocation11 + $0xf]]
        %v1879 = vld [vmem:[%s1692 + $0x2] sm:$0xff]
        %v1880 = vld [vmem:[%s1692 + $0xa] sm:$0xff]
        %v1881 = vstv %s1878
        %v1882 = vmul.f32 %v1881, %v1879
        %v1883 = vmul.f32 %v1881, %v1880
        %v1884 = vadd.f32 %v1876, %v1882
        %v1885 = vadd.f32 %v1877, %v1883
        %s1886 = sld [smem:[#allocation11 + $0x10]]
        %v1887 = vstv %s1886
        %v1888 = vmul.f32 %v1887, %v1879
        %v1889 = vmul.f32 %v1887, %v1880
        %1892 = vrot.lane.b32.xlu0 %v1888, 127
        %v1893 = vpop.permute.xlu0 %1892
        %1894 = vrot.lane.b32.xlu0 %v1889, 127
        %v1895 = vpop.permute.xlu0 %1894
        %v1898 = vadd.f32 %v1884, %v1893
        %v1899 = vadd.f32 %v1885, %v1895
        %s1900 = sld [smem:[#allocation11 + $0x11]]
        %v1901 = vstv %s1900
        %v1902 = vmul.f32 %v1901, %v1879
        %v1903 = vmul.f32 %v1901, %v1880
        %1906 = vrot.lane.b32.xlu0 %v1902, 126
        %v1907 = vpop.permute.xlu0 %1906
        %1908 = vrot.lane.b32.xlu0 %v1903, 126
        %v1909 = vpop.permute.xlu0 %1908
        %v1912 = vadd.f32 %v1898, %v1907
        %v1913 = vadd.f32 %v1899, %v1909
        %v1914 = vmax.f32 %v1912, 0.0
        %v1915 = vmax.f32 %v1913, 0.0
        %vm1916 = vcmask 130048
        %1917 = vst.msk [vmem:[%s400] sm:$0xff] %vm1916, %v1914
        %1918 = vst.msk [vmem:[%s400 + $0x8] sm:$0xff] %vm1916, %v1915
        %s1919 = sld [smem:[#allocation12 + $0x1]]
        %v1920 = vstv %s1919
        %v1921 = vadd.f32 %v1920, 0.0
        %s1922 = sld [smem:[#allocation11 + $0x12]]
        %v1923 = vld [vmem:[#allocation3] sm:$0xff]
        %v1924 = vld [vmem:[#allocation3 + $0x8] sm:$0xff]
        %v1925 = vstv %s1922
        %v1926 = vmul.f32 %v1925, %v1923
        %v1927 = vmul.f32 %v1925, %v1924
        %v1928 = vadd.f32 %v1921, %v1926
        %v1929 = vadd.f32 %v1921, %v1927
        %s1930 = sld [smem:[#allocation11 + $0x13]]
        %v1931 = vstv %s1930
        %v1932 = vmul.f32 %v1931, %v1923
        %v1933 = vmul.f32 %v1931, %v1924
        %1936 = vrot.lane.b32.xlu0 %v1932, 127
        %v1937 = vpop.permute.xlu0 %1936
        %1938 = vrot.lane.b32.xlu0 %v1933, 127
        %v1939 = vpop.permute.xlu0 %1938
        %v1942 = vadd.f32 %v1928, %v1937
        %v1943 = vadd.f32 %v1929, %v1939
        %s1944 = sld [smem:[#allocation11 + $0x14]]
        %v1945 = vstv %s1944
        %v1946 = vmul.f32 %v1945, %v1923
        %v1947 = vmul.f32 %v1945, %v1924
        %1950 = vrot.lane.b32.xlu0 %v1946, 126
        %v1951 = vpop.permute.xlu0 %1950
        %1952 = vrot.lane.b32.xlu0 %v1947, 126
        %v1953 = vpop.permute.xlu0 %1952
        %v1956 = vadd.f32 %v1942, %v1951
        %v1957 = vadd.f32 %v1943, %v1953
        %s1958 = sld [smem:[#allocation11 + $0x15]]
        %v1959 = vld [vmem:[#allocation3 + $0x1] sm:$0xff]
        %v1960 = vld [vmem:[#allocation3 + $0x9] sm:$0xff]
        %v1961 = vstv %s1958
        %v1962 = vmul.f32 %v1961, %v1959
        %v1963 = vmul.f32 %v1961, %v1960
        %v1964 = vadd.f32 %v1956, %v1962
        %v1965 = vadd.f32 %v1957, %v1963
        %s1966 = sld [smem:[#allocation11 + $0x16]]
        %v1967 = vstv %s1966
        %v1968 = vmul.f32 %v1967, %v1959
        %v1969 = vmul.f32 %v1967, %v1960
        %1972 = vrot.lane.b32.xlu0 %v1968, 127
        %v1973 = vpop.permute.xlu0 %1972
        %1974 = vrot.lane.b32.xlu0 %v1969, 127
        %v1975 = vpop.permute.xlu0 %1974
        %v1978 = vadd.f32 %v1964, %v1973
        %v1979 = vadd.f32 %v1965, %v1975
        %s1980 = sld [smem:[#allocation11 + $0x17]]
        %v1981 = vstv %s1980
        %v1982 = vmul.f32 %v1981, %v1959
        %v1983 = vmul.f32 %v1981, %v1960
        %1986 = vrot.lane.b32.xlu0 %v1982, 126
        %v1987 = vpop.permute.xlu0 %1986
        %1988 = vrot.lane.b32.xlu0 %v1983, 126
        %v1989 = vpop.permute.xlu0 %1988
        %v1992 = vadd.f32 %v1978, %v1987
        %v1993 = vadd.f32 %v1979, %v1989
        %s1994 = sld [smem:[#allocation11 + $0x18]]
        %v1995 = vld [vmem:[#allocation3 + $0x2] sm:$0xff]
        %v1996 = vld [vmem:[#allocation3 + $0xa] sm:$0xff]
        %v1997 = vstv %s1994
        %v1998 = vmul.f32 %v1997, %v1995
        %v1999 = vmul.f32 %v1997, %v1996
        %v2000 = vadd.f32 %v1992, %v1998
        %v2001 = vadd.f32 %v1993, %v1999
        %s2002 = sld [smem:[#allocation11 + $0x19]]
        %v2003 = vstv %s2002
        %v2004 = vmul.f32 %v2003, %v1995
        %v2005 = vmul.f32 %v2003, %v1996
        %2008 = vrot.lane.b32.xlu0 %v2004, 127
        %v2009 = vpop.permute.xlu0 %2008
        %2010 = vrot.lane.b32.xlu0 %v2005, 127
        %v2011 = vpop.permute.xlu0 %2010
        %v2014 = vadd.f32 %v2000, %v2009
        %v2015 = vadd.f32 %v2001, %v2011
        %s2016 = sld [smem:[#allocation11 + $0x1a]]
        %v2017 = vstv %s2016
        %v2018 = vmul.f32 %v2017, %v1995
        %v2019 = vmul.f32 %v2017, %v1996
        %2022 = vrot.lane.b32.xlu0 %v2018, 126
        %v2023 = vpop.permute.xlu0 %2022
        %2024 = vrot.lane.b32.xlu0 %v2019, 126
        %v2025 = vpop.permute.xlu0 %2024
        %v2028 = vadd.f32 %v2014, %v2023
        %v2029 = vadd.f32 %v2015, %v2025
        %s2030 = sld [smem:[#allocation11 + $0x1b]]
        %v2031 = vld [vmem:[%s1692] sm:$0xff]
        %v2032 = vld [vmem:[%s1692 + $0x8] sm:$0xff]
        %v2033 = vstv %s2030
        %v2034 = vmul.f32 %v2033, %v2031
        %v2035 = vmul.f32 %v2033, %v2032
        %v2036 = vadd.f32 %v2028, %v2034
        %v2037 = vadd.f32 %v2029, %v2035
        %s2038 = sld [smem:[#allocation11 + $0x1c]]
        %v2039 = vstv %s2038
        %v2040 = vmul.f32 %v2039, %v2031
        %v2041 = vmul.f32 %v2039, %v2032
        %2044 = vrot.lane.b32.xlu0 %v2040, 127
        %v2045 = vpop.permute.xlu0 %2044
        %2046 = vrot.lane.b32.xlu0 %v2041, 127
        %v2047 = vpop.permute.xlu0 %2046
        %v2050 = vadd.f32 %v2036, %v2045
        %v2051 = vadd.f32 %v2037, %v2047
        %s2052 = sld [smem:[#allocation11 + $0x1d]]
        %v2053 = vstv %s2052
        %v2054 = vmul.f32 %v2053, %v2031
        %v2055 = vmul.f32 %v2053, %v2032
        %2058 = vrot.lane.b32.xlu0 %v2054, 126
        %v2059 = vpop.permute.xlu0 %2058
        %2060 = vrot.lane.b32.xlu0 %v2055, 126
        %v2061 = vpop.permute.xlu0 %2060
        %v2064 = vadd.f32 %v2050, %v2059
        %v2065 = vadd.f32 %v2051, %v2061
        %s2066 = sld [smem:[#allocation11 + $0x1e]]
        %v2067 = vld [vmem:[%s1692 + $0x1] sm:$0xff]
        %v2068 = vld [vmem:[%s1692 + $0x9] sm:$0xff]
        %v2069 = vstv %s2066
        %v2070 = vmul.f32 %v2069, %v2067
        %v2071 = vmul.f32 %v2069, %v2068
        %v2072 = vadd.f32 %v2064, %v2070
        %v2073 = vadd.f32 %v2065, %v2071
        %s2074 = sld [smem:[#allocation11 + $0x1f]]
        %v2075 = vstv %s2074
        %v2076 = vmul.f32 %v2075, %v2067
        %v2077 = vmul.f32 %v2075, %v2068
        %2080 = vrot.lane.b32.xlu0 %v2076, 127
        %v2081 = vpop.permute.xlu0 %2080
        %2082 = vrot.lane.b32.xlu0 %v2077, 127
        %v2083 = vpop.permute.xlu0 %2082
        %v2086 = vadd.f32 %v2072, %v2081
        %v2087 = vadd.f32 %v2073, %v2083
        %s2088 = sld [smem:[#allocation11 + $0x20]]
        %v2089 = vstv %s2088
        %v2090 = vmul.f32 %v2089, %v2067
        %v2091 = vmul.f32 %v2089, %v2068
        %2094 = vrot.lane.b32.xlu0 %v2090, 126
        %v2095 = vpop.permute.xlu0 %2094
        %2096 = vrot.lane.b32.xlu0 %v2091, 126
        %v2097 = vpop.permute.xlu0 %2096
        %v2100 = vadd.f32 %v2086, %v2095
        %v2101 = vadd.f32 %v2087, %v2097
        %s2102 = sld [smem:[#allocation11 + $0x21]]
        %v2103 = vld [vmem:[%s1692 + $0x2] sm:$0xff]
        %v2104 = vld [vmem:[%s1692 + $0xa] sm:$0xff]
        %v2105 = vstv %s2102
        %v2106 = vmul.f32 %v2105, %v2103
        %v2107 = vmul.f32 %v2105, %v2104
        %v2108 = vadd.f32 %v2100, %v2106
        %v2109 = vadd.f32 %v2101, %v2107
        %s2110 = sld [smem:[#allocation11 + $0x22]]
        %v2111 = vstv %s2110
        %v2112 = vmul.f32 %v2111, %v2103
        %v2113 = vmul.f32 %v2111, %v2104
        %2116 = vrot.lane.b32.xlu0 %v2112, 127
        %v2117 = vpop.permute.xlu0 %2116
        %2118 = vrot.lane.b32.xlu0 %v2113, 127
        %v2119 = vpop.permute.xlu0 %2118
        %v2122 = vadd.f32 %v2108, %v2117
        %v2123 = vadd.f32 %v2109, %v2119
        %s2124 = sld [smem:[#allocation11 + $0x23]]
        %v2125 = vstv %s2124
        %v2126 = vmul.f32 %v2125, %v2103
        %v2127 = vmul.f32 %v2125, %v2104
        %2130 = vrot.lane.b32.xlu0 %v2126, 126
        %v2131 = vpop.permute.xlu0 %2130
        %2132 = vrot.lane.b32.xlu0 %v2127, 126
        %v2133 = vpop.permute.xlu0 %2132
        %v2136 = vadd.f32 %v2122, %v2131
        %v2137 = vadd.f32 %v2123, %v2133
        %v2138 = vmax.f32 %v2136, 0.0
        %v2139 = vmax.f32 %v2137, 0.0
        %s2140 = scalar_lea.vmem %s400, 16 [#allocation17]
        %2141 = vst.msk [vmem:[%s2140] sm:$0xff] %vm1916, %v2138
        %2142 = vst.msk [vmem:[%s2140 + $0x8] sm:$0xff] %vm1916, %v2139
        %s2143 = sld [smem:[#allocation12 + $0x2]]
        %v2144 = vstv %s2143
        %v2145 = vadd.f32 %v2144, 0.0
        %s2146 = sld [smem:[#allocation11 + $0x24]]
        %v2147 = vld [vmem:[#allocation3] sm:$0xff]
        %v2148 = vld [vmem:[#allocation3 + $0x8] sm:$0xff]
        %v2149 = vstv %s2146
        %v2150 = vmul.f32 %v2149, %v2147
        %v2151 = vmul.f32 %v2149, %v2148
        %v2152 = vadd.f32 %v2145, %v2150
        %v2153 = vadd.f32 %v2145, %v2151
        %s2154 = sld [smem:[#allocation11 + $0x25]]
        %v2155 = vstv %s2154
        %v2156 = vmul.f32 %v2155, %v2147
        %v2157 = vmul.f32 %v2155, %v2148
        %2160 = vrot.lane.b32.xlu0 %v2156, 127
        %v2161 = vpop.permute.xlu0 %2160
        %2162 = vrot.lane.b32.xlu0 %v2157, 127
        %v2163 = vpop.permute.xlu0 %2162
        %v2166 = vadd.f32 %v2152, %v2161
        %v2167 = vadd.f32 %v2153, %v2163
        %s2168 = sld [smem:[#allocation11 + $0x26]]
        %v2169 = vstv %s2168
        %v2170 = vmul.f32 %v2169, %v2147
        %v2171 = vmul.f32 %v2169, %v2148
        %2174 = vrot.lane.b32.xlu0 %v2170, 126
        %v2175 = vpop.permute.xlu0 %2174
        %2176 = vrot.lane.b32.xlu0 %v2171, 126
        %v2177 = vpop.permute.xlu0 %2176
        %v2180 = vadd.f32 %v2166, %v2175
        %v2181 = vadd.f32 %v2167, %v2177
        %s2182 = sld [smem:[#allocation11 + $0x27]]
        %v2183 = vld [vmem:[#allocation3 + $0x1] sm:$0xff]
        %v2184 = vld [vmem:[#allocation3 + $0x9] sm:$0xff]
        %v2185 = vstv %s2182
        %v2186 = vmul.f32 %v2185, %v2183
        %v2187 = vmul.f32 %v2185, %v2184
        %v2188 = vadd.f32 %v2180, %v2186
        %v2189 = vadd.f32 %v2181, %v2187
        %s2190 = sld [smem:[#allocation11 + $0x28]]
        %v2191 = vstv %s2190
        %v2192 = vmul.f32 %v2191, %v2183
        %v2193 = vmul.f32 %v2191, %v2184
        %2196 = vrot.lane.b32.xlu0 %v2192, 127
        %v2197 = vpop.permute.xlu0 %2196
        %2198 = vrot.lane.b32.xlu0 %v2193, 127
        %v2199 = vpop.permute.xlu0 %2198
        %v2202 = vadd.f32 %v2188, %v2197
        %v2203 = vadd.f32 %v2189, %v2199
        %s2204 = sld [smem:[#allocation11 + $0x29]]
        %v2205 = vstv %s2204
        %v2206 = vmul.f32 %v2205, %v2183
        %v2207 = vmul.f32 %v2205, %v2184
        %2210 = vrot.lane.b32.xlu0 %v2206, 126
        %v2211 = vpop.permute.xlu0 %2210
        %2212 = vrot.lane.b32.xlu0 %v2207, 126
        %v2213 = vpop.permute.xlu0 %2212
        %v2216 = vadd.f32 %v2202, %v2211
        %v2217 = vadd.f32 %v2203, %v2213
        %s2218 = sld [smem:[#allocation11 + $0x2a]]
        %v2219 = vld [vmem:[#allocation3 + $0x2] sm:$0xff]
        %v2220 = vld [vmem:[#allocation3 + $0xa] sm:$0xff]
        %v2221 = vstv %s2218
        %v2222 = vmul.f32 %v2221, %v2219
        %v2223 = vmul.f32 %v2221, %v2220
        %v2224 = vadd.f32 %v2216, %v2222
        %v2225 = vadd.f32 %v2217, %v2223
        %s2226 = sld [smem:[#allocation11 + $0x2b]]
        %v2227 = vstv %s2226
        %v2228 = vmul.f32 %v2227, %v2219
        %v2229 = vmul.f32 %v2227, %v2220
        %2232 = vrot.lane.b32.xlu0 %v2228, 127
        %v2233 = vpop.permute.xlu0 %2232
        %2234 = vrot.lane.b32.xlu0 %v2229, 127
        %v2235 = vpop.permute.xlu0 %2234
        %v2238 = vadd.f32 %v2224, %v2233
        %v2239 = vadd.f32 %v2225, %v2235
        %s2240 = sld [smem:[#allocation11 + $0x2c]]
        %v2241 = vstv %s2240
        %v2242 = vmul.f32 %v2241, %v2219
        %v2243 = vmul.f32 %v2241, %v2220
        %2246 = vrot.lane.b32.xlu0 %v2242, 126
        %v2247 = vpop.permute.xlu0 %2246
        %2248 = vrot.lane.b32.xlu0 %v2243, 126
        %v2249 = vpop.permute.xlu0 %2248
        %v2252 = vadd.f32 %v2238, %v2247
        %v2253 = vadd.f32 %v2239, %v2249
        %s2254 = sld [smem:[#allocation11 + $0x2d]]
        %v2255 = vld [vmem:[%s1692] sm:$0xff]
        %v2256 = vld [vmem:[%s1692 + $0x8] sm:$0xff]
        %v2257 = vstv %s2254
        %v2258 = vmul.f32 %v2257, %v2255
        %v2259 = vmul.f32 %v2257, %v2256
        %v2260 = vadd.f32 %v2252, %v2258
        %v2261 = vadd.f32 %v2253, %v2259
        %s2262 = sld [smem:[#allocation11 + $0x2e]]
        %v2263 = vstv %s2262
        %v2264 = vmul.f32 %v2263, %v2255
        %v2265 = vmul.f32 %v2263, %v2256
        %2268 = vrot.lane.b32.xlu0 %v2264, 127
        %v2269 = vpop.permute.xlu0 %2268
        %2270 = vrot.lane.b32.xlu0 %v2265, 127
        %v2271 = vpop.permute.xlu0 %2270
        %v2274 = vadd.f32 %v2260, %v2269
        %v2275 = vadd.f32 %v2261, %v2271
        %s2276 = sld [smem:[#allocation11 + $0x2f]]
        %v2277 = vstv %s2276
        %v2278 = vmul.f32 %v2277, %v2255
        %v2279 = vmul.f32 %v2277, %v2256
        %2282 = vrot.lane.b32.xlu0 %v2278, 126
        %v2283 = vpop.permute.xlu0 %2282
        %2284 = vrot.lane.b32.xlu0 %v2279, 126
        %v2285 = vpop.permute.xlu0 %2284
        %v2288 = vadd.f32 %v2274, %v2283
        %v2289 = vadd.f32 %v2275, %v2285
        %s2290 = sld [smem:[#allocation11 + $0x30]]
        %v2291 = vld [vmem:[%s1692 + $0x1] sm:$0xff]
        %v2292 = vld [vmem:[%s1692 + $0x9] sm:$0xff]
        %v2293 = vstv %s2290
        %v2294 = vmul.f32 %v2293, %v2291
        %v2295 = vmul.f32 %v2293, %v2292
        %v2296 = vadd.f32 %v2288, %v2294
        %v2297 = vadd.f32 %v2289, %v2295
        %s2298 = sld [smem:[#allocation11 + $0x31]]
        %v2299 = vstv %s2298
        %v2300 = vmul.f32 %v2299, %v2291
        %v2301 = vmul.f32 %v2299, %v2292
        %2304 = vrot.lane.b32.xlu0 %v2300, 127
        %v2305 = vpop.permute.xlu0 %2304
        %2306 = vrot.lane.b32.xlu0 %v2301, 127
        %v2307 = vpop.permute.xlu0 %2306
        %v2310 = vadd.f32 %v2296, %v2305
        %v2311 = vadd.f32 %v2297, %v2307
        %s2312 = sld [smem:[#allocation11 + $0x32]]
        %v2313 = vstv %s2312
        %v2314 = vmul.f32 %v2313, %v2291
        %v2315 = vmul.f32 %v2313, %v2292
        %2318 = vrot.lane.b32.xlu0 %v2314, 126
        %v2319 = vpop.permute.xlu0 %2318
        %2320 = vrot.lane.b32.xlu0 %v2315, 126
        %v2321 = vpop.permute.xlu0 %2320
        %v2324 = vadd.f32 %v2310, %v2319
        %v2325 = vadd.f32 %v2311, %v2321
        %s2326 = sld [smem:[#allocation11 + $0x33]]
        %v2327 = vld [vmem:[%s1692 + $0x2] sm:$0xff]
        %v2328 = vld [vmem:[%s1692 + $0xa] sm:$0xff]
        %v2329 = vstv %s2326
        %v2330 = vmul.f32 %v2329, %v2327
        %v2331 = vmul.f32 %v2329, %v2328
        %v2332 = vadd.f32 %v2324, %v2330
        %v2333 = vadd.f32 %v2325, %v2331
        %s2334 = sld [smem:[#allocation11 + $0x34]]
        %v2335 = vstv %s2334
        %v2336 = vmul.f32 %v2335, %v2327
        %v2337 = vmul.f32 %v2335, %v2328
        %2340 = vrot.lane.b32.xlu0 %v2336, 127
        %v2341 = vpop.permute.xlu0 %2340
        %2342 = vrot.lane.b32.xlu0 %v2337, 127
        %v2343 = vpop.permute.xlu0 %2342
        %v2346 = vadd.f32 %v2332, %v2341
        %v2347 = vadd.f32 %v2333, %v2343
        %s2348 = sld [smem:[#allocation11 + $0x35]]
        %v2349 = vstv %s2348
        %v2350 = vmul.f32 %v2349, %v2327
        %v2351 = vmul.f32 %v2349, %v2328
        %2354 = vrot.lane.b32.xlu0 %v2350, 126
        %v2355 = vpop.permute.xlu0 %2354
        %2356 = vrot.lane.b32.xlu0 %v2351, 126
        %v2357 = vpop.permute.xlu0 %2356
        %v2360 = vadd.f32 %v2346, %v2355
        %v2361 = vadd.f32 %v2347, %v2357
        %v2362 = vmax.f32 %v2360, 0.0
        %v2363 = vmax.f32 %v2361, 0.0
        %s2364 = scalar_lea.vmem %s400, 32 [#allocation17]
        %2365 = vst.msk [vmem:[%s2364] sm:$0xff] %vm1916, %v2362
        %2366 = vst.msk [vmem:[%s2364 + $0x8] sm:$0xff] %vm1916, %v2363
        %s2367 = sld [smem:[#allocation12 + $0x3]]
        %v2368 = vstv %s2367
        %v2369 = vadd.f32 %v2368, 0.0
        %s2370 = sld [smem:[#allocation11 + $0x36]]
        %v2371 = vld [vmem:[#allocation3] sm:$0xff]
        %v2372 = vld [vmem:[#allocation3 + $0x8] sm:$0xff]
        %v2373 = vstv %s2370
        %v2374 = vmul.f32 %v2373, %v2371
        %v2375 = vmul.f32 %v2373, %v2372
        %v2376 = vadd.f32 %v2369, %v2374
        %v2377 = vadd.f32 %v2369, %v2375
        %s2378 = sld [smem:[#allocation11 + $0x37]]
        %v2379 = vstv %s2378
        %v2380 = vmul.f32 %v2379, %v2371
        %v2381 = vmul.f32 %v2379, %v2372
        %2384 = vrot.lane.b32.xlu0 %v2380, 127
        %v2385 = vpop.permute.xlu0 %2384
        %2386 = vrot.lane.b32.xlu0 %v2381, 127
        %v2387 = vpop.permute.xlu0 %2386
        %v2390 = vadd.f32 %v2376, %v2385
        %v2391 = vadd.f32 %v2377, %v2387
        %s2392 = sld [smem:[#allocation11 + $0x38]]
        %v2393 = vstv %s2392
        %v2394 = vmul.f32 %v2393, %v2371
        %v2395 = vmul.f32 %v2393, %v2372
        %2398 = vrot.lane.b32.xlu0 %v2394, 126
        %v2399 = vpop.permute.xlu0 %2398
        %2400 = vrot.lane.b32.xlu0 %v2395, 126
        %v2401 = vpop.permute.xlu0 %2400
        %v2404 = vadd.f32 %v2390, %v2399
        %v2405 = vadd.f32 %v2391, %v2401
        %s2406 = sld [smem:[#allocation11 + $0x39]]
        %v2407 = vld [vmem:[#allocation3 + $0x1] sm:$0xff]
        %v2408 = vld [vmem:[#allocation3 + $0x9] sm:$0xff]
        %v2409 = vstv %s2406
        %v2410 = vmul.f32 %v2409, %v2407
        %v2411 = vmul.f32 %v2409, %v2408
        %v2412 = vadd.f32 %v2404, %v2410
        %v2413 = vadd.f32 %v2405, %v2411
        %s2414 = sld [smem:[#allocation11 + $0x3a]]
        %v2415 = vstv %s2414
        %v2416 = vmul.f32 %v2415, %v2407
        %v2417 = vmul.f32 %v2415, %v2408
        %2420 = vrot.lane.b32.xlu0 %v2416, 127
        %v2421 = vpop.permute.xlu0 %2420
        %2422 = vrot.lane.b32.xlu0 %v2417, 127
        %v2423 = vpop.permute.xlu0 %2422
        %v2426 = vadd.f32 %v2412, %v2421
        %v2427 = vadd.f32 %v2413, %v2423
        %s2428 = sld [smem:[#allocation11 + $0x3b]]
        %v2429 = vstv %s2428
        %v2430 = vmul.f32 %v2429, %v2407
        %v2431 = vmul.f32 %v2429, %v2408
        %2434 = vrot.lane.b32.xlu0 %v2430, 126
        %v2435 = vpop.permute.xlu0 %2434
        %2436 = vrot.lane.b32.xlu0 %v2431, 126
        %v2437 = vpop.permute.xlu0 %2436
        %v2440 = vadd.f32 %v2426, %v2435
        %v2441 = vadd.f32 %v2427, %v2437
        %s2442 = sld [smem:[#allocation11 + $0x3c]]
        %v2443 = vld [vmem:[#allocation3 + $0x2] sm:$0xff]
        %v2444 = vld [vmem:[#allocation3 + $0xa] sm:$0xff]
        %v2445 = vstv %s2442
        %v2446 = vmul.f32 %v2445, %v2443
        %v2447 = vmul.f32 %v2445, %v2444
        %v2448 = vadd.f32 %v2440, %v2446
        %v2449 = vadd.f32 %v2441, %v2447
        %s2450 = sld [smem:[#allocation11 + $0x3d]]
        %v2451 = vstv %s2450
        %v2452 = vmul.f32 %v2451, %v2443
        %v2453 = vmul.f32 %v2451, %v2444
        %2456 = vrot.lane.b32.xlu0 %v2452, 127
        %v2457 = vpop.permute.xlu0 %2456
        %2458 = vrot.lane.b32.xlu0 %v2453, 127
        %v2459 = vpop.permute.xlu0 %2458
        %v2462 = vadd.f32 %v2448, %v2457
        %v2463 = vadd.f32 %v2449, %v2459
        %s2464 = sld [smem:[#allocation11 + $0x3e]]
        %v2465 = vstv %s2464
        %v2466 = vmul.f32 %v2465, %v2443
        %v2467 = vmul.f32 %v2465, %v2444
        %2470 = vrot.lane.b32.xlu0 %v2466, 126
        %v2471 = vpop.permute.xlu0 %2470
        %2472 = vrot.lane.b32.xlu0 %v2467, 126
        %v2473 = vpop.permute.xlu0 %2472
        %v2476 = vadd.f32 %v2462, %v2471
        %v2477 = vadd.f32 %v2463, %v2473
        %s2478 = sld [smem:[#allocation11 + $0x3f]]
        %v2479 = vld [vmem:[%s1692] sm:$0xff]
        %v2480 = vld [vmem:[%s1692 + $0x8] sm:$0xff]
        %v2481 = vstv %s2478
        %v2482 = vmul.f32 %v2481, %v2479
        %v2483 = vmul.f32 %v2481, %v2480
        %v2484 = vadd.f32 %v2476, %v2482
        %v2485 = vadd.f32 %v2477, %v2483
        %s2486 = sld [smem:[#allocation11 + $0x40]]
        %v2487 = vstv %s2486
        %v2488 = vmul.f32 %v2487, %v2479
        %v2489 = vmul.f32 %v2487, %v2480
        %2492 = vrot.lane.b32.xlu0 %v2488, 127
        %v2493 = vpop.permute.xlu0 %2492
        %2494 = vrot.lane.b32.xlu0 %v2489, 127
        %v2495 = vpop.permute.xlu0 %2494
        %v2498 = vadd.f32 %v2484, %v2493
        %v2499 = vadd.f32 %v2485, %v2495
        %s2500 = sld [smem:[#allocation11 + $0x41]]
        %v2501 = vstv %s2500
        %v2502 = vmul.f32 %v2501, %v2479
        %v2503 = vmul.f32 %v2501, %v2480
        %2506 = vrot.lane.b32.xlu0 %v2502, 126
        %v2507 = vpop.permute.xlu0 %2506
        %2508 = vrot.lane.b32.xlu0 %v2503, 126
        %v2509 = vpop.permute.xlu0 %2508
        %v2512 = vadd.f32 %v2498, %v2507
        %v2513 = vadd.f32 %v2499, %v2509
        %s2514 = sld [smem:[#allocation11 + $0x42]]
        %v2515 = vld [vmem:[%s1692 + $0x1] sm:$0xff]
        %v2516 = vld [vmem:[%s1692 + $0x9] sm:$0xff]
        %v2517 = vstv %s2514
        %v2518 = vmul.f32 %v2517, %v2515
        %v2519 = vmul.f32 %v2517, %v2516
        %v2520 = vadd.f32 %v2512, %v2518
        %v2521 = vadd.f32 %v2513, %v2519
        %s2522 = sld [smem:[#allocation11 + $0x43]]
        %v2523 = vstv %s2522
        %v2524 = vmul.f32 %v2523, %v2515
        %v2525 = vmul.f32 %v2523, %v2516
        %2528 = vrot.lane.b32.xlu0 %v2524, 127
        %v2529 = vpop.permute.xlu0 %2528
        %2530 = vrot.lane.b32.xlu0 %v2525, 127
        %v2531 = vpop.permute.xlu0 %2530
        %v2534 = vadd.f32 %v2520, %v2529
        %v2535 = vadd.f32 %v2521, %v2531
        %s2536 = sld [smem:[#allocation11 + $0x44]]
        %v2537 = vstv %s2536
        %v2538 = vmul.f32 %v2537, %v2515
        %v2539 = vmul.f32 %v2537, %v2516
        %2542 = vrot.lane.b32.xlu0 %v2538, 126
        %v2543 = vpop.permute.xlu0 %2542
        %2544 = vrot.lane.b32.xlu0 %v2539, 126
        %v2545 = vpop.permute.xlu0 %2544
        %v2548 = vadd.f32 %v2534, %v2543
        %v2549 = vadd.f32 %v2535, %v2545
        %s2550 = sld [smem:[#allocation11 + $0x45]]
        %v2551 = vld [vmem:[%s1692 + $0x2] sm:$0xff]
        %v2552 = vld [vmem:[%s1692 + $0xa] sm:$0xff]
        %v2553 = vstv %s2550
        %v2554 = vmul.f32 %v2553, %v2551
        %v2555 = vmul.f32 %v2553, %v2552
        %v2556 = vadd.f32 %v2548, %v2554
        %v2557 = vadd.f32 %v2549, %v2555
        %s2558 = sld [smem:[#allocation11 + $0x46]]
        %v2559 = vstv %s2558
        %v2560 = vmul.f32 %v2559, %v2551
        %v2561 = vmul.f32 %v2559, %v2552
        %2564 = vrot.lane.b32.xlu0 %v2560, 127
        %v2565 = vpop.permute.xlu0 %2564
        %2566 = vrot.lane.b32.xlu0 %v2561, 127
        %v2567 = vpop.permute.xlu0 %2566
        %v2570 = vadd.f32 %v2556, %v2565
        %v2571 = vadd.f32 %v2557, %v2567
        %s2572 = sld [smem:[#allocation11 + $0x47]]
        %v2573 = vstv %s2572
        %v2574 = vmul.f32 %v2573, %v2551
        %v2575 = vmul.f32 %v2573, %v2552
        %2578 = vrot.lane.b32.xlu0 %v2574, 126
        %v2579 = vpop.permute.xlu0 %2578
        %2580 = vrot.lane.b32.xlu0 %v2575, 126
        %v2581 = vpop.permute.xlu0 %2580
        %v2584 = vadd.f32 %v2570, %v2579
        %v2585 = vadd.f32 %v2571, %v2581
        %v2586 = vmax.f32 %v2584, 0.0
        %v2587 = vmax.f32 %v2585, 0.0
        %s2588 = scalar_lea.vmem %s400, 48 [#allocation17]
        %2589 = vst.msk [vmem:[%s2588] sm:$0xff] %vm1916, %v2586
        %2590 = vst.msk [vmem:[%s2588 + $0x8] sm:$0xff] %vm1916, %v2587
        %s2591 = sand.u32 %s216, 1
        %s2592 = scalar_lea.sflag [#allocation6], %s2591
        %s2593 = sand.u32 %s216, 1
        %s2594 = smul.addr %s2593, 64
        %s2595 = scalar_lea.vmem [#allocation17], %s2594
        // Predicated region
        $region77: #{tpu_custom_call.1} parent=51 // pred_check
          %p2596 = pneg %p226
        $region78: #{tpu_custom_call.1} parent=51 // pred_check_branch
          %2598 = sbr.rel (%p2596) target = $region80
        $region79: #{tpu_custom_call.1} parent=51 // pred_region
          %s2600 = ssub.s32 1024, 1024
          %2601 = vsyncadd %s2592, %s2600
          %s2602 = smul.addr %s30, 8
          %s2603 = smul.addr %s2602, 128
          %s2604 = scalar_lea.hbm %s8, %s2603
          %s2605 = sshll.u32 %s2595, 4
          %s2606 = int_to_ptr.vmem [resolvable:$true] %s2605
          %2611 = dma.vmem_to_hbm [thread:$0]  %s2606, 1024, %s2604, %s2592, 128, 128, 8
        $region80: #{tpu_custom_call.1} parent=51 // pred_fallthru
          _
      $region52: #{tpu_custom_call.1} parent=5 // pred_fallthru
        _
      %p2612 = scmp.le.s32.totalorder 2, %s25
      // Predicated region
      $region81: #{tpu_custom_call.1} parent=5 // pred_check
        %p2613 = pneg %p2612
      $region82: #{tpu_custom_call.1} parent=5 // pred_check_branch
        %2615 = sbr.rel (%p2613) target = $region84
      $region83: #{tpu_custom_call.1} parent=5 // pred_region
        %s2616 = ssub.s32 %s25, 2
        // Predicated region
        $region85: #{tpu_custom_call.1} parent=83 // pred_check
          %p2617 = pneg %p232
        $region86: #{tpu_custom_call.1} parent=83 // pred_check_branch
          %2619 = sbr.rel (%p2617) target = $region88
        $region87: #{tpu_custom_call.1} parent=83 // pred_region
          %s2620 = sand.u32 %s217, 1
          %s2621 = scalar_lea.sflag [#allocation6], %s2620
          %s2622 = sand.u32 %s217, 1
          %s2623 = smul.addr %s2622, 64
          %s2624 = scalar_lea.vmem [#allocation17], %s2623
          %2625 = dma.done %s2621, 1024
        $region88: #{tpu_custom_call.1} parent=83 // pred_fallthru
          _
      $region84: #{tpu_custom_call.1} parent=5 // pred_fallthru
        _
    $region6: #{tpu_custom_call.1} parent=1 // loop_footer
      %s29 = sadd.s32 1, %s25
    $region7: #{tpu_custom_call.1} parent=1 // loop_footer_branch
      %24 = sbr.rel target = $region3
    $region8: #{tpu_custom_call.1} parent=1 // loop_exit
      _
    %2626 = vsyncpa [#allocation5], 1
    %s2627 = scalar_lea.sflag [#allocation5], 1
    %2628 = vsyncpa %s2627, 1
    %2629 = vsyncpa [#allocation16], 1
    %s2630 = scalar_lea.sflag [#allocation16], 1
    %2631 = vsyncpa %s2630, 1
    %2632 = vsyncpa [#allocation6], 1
    %s2633 = scalar_lea.sflag [#allocation6], 1
    %2634 = vsyncpa %s2633, 1
    %2635 = vsyncpa [#allocation7], 1
    %s2636 = scalar_lea.sflag [#allocation7], 1
    %2637 = vsyncpa %s2636, 1
    %2638 = vsyncpa [#allocation13], 1
    %2639 = vsyncpa [#allocation8], 1
    %s2640 = scalar_lea.sflag [#allocation8], 1
    %2641 = vsyncpa %s2640, 1
    %2642 = vsyncpa [#allocation10], 1

</llo_original>
